<compile_context>
chip_gen: v5e
topology: v5e:2x2
jax: 0.10.0
libtpu: 0.0.40
codegen_flags: <defaults>
</compile_context>

<pallas_src>
import jax
import jax.numpy as jnp
from jax.experimental import pallas as pl
from jax.experimental.pallas import tpu as pltpu

# ---------------- small synthetic dims (analogs of the full model) ----------
B = 2
IMG_C, IMG_H, IMG_W = 3, 8, 8          # analog of 3 x 256 x 256 input image
RENDER = 16                            # decoder output resolution (analog of 512)
POOLED = IMG_H                         # adaptive_avg_pool2d target (analog of 256)
N_STYLES, LATENT = 4, 32               # analog of 14 x 512 W+ codes
CAM = 16                               # analog of 25-dim camera params
CAM_PAD = 128                          # camera padded to a full 128-lane segment
TRI_C, TRI_H, TRI_W = 12, 8, 8         # analog of 96 x 256 x 256 triplane offsets

IMG_FLAT = IMG_C * IMG_H * IMG_W       # 192
RENDER_FLAT = IMG_C * RENDER * RENDER  # 768
CODE_FLAT = N_STYLES * LATENT          # 128
TRI_FLAT = TRI_C * TRI_H * TRI_W       # 768
K_DEC1 = CODE_FLAT + CAM_PAD           # 256  (synthesis #1: offsets known zero)
K_DEC = K_DEC1 + TRI_FLAT              # 1024 (synthesis #2: full stacked operand)
POOL_FLAT = IMG_C * POOLED * POOLED    # 192 (== IMG_FLAT)

_VMEM = pl.BlockSpec(memory_space=pltpu.MemorySpace.VMEM)


# ---------------------------- fused Pallas kernel ----------------------------
def _fused_forward_kernel(x_ref, cam_ref, ncam_ref,
                          w_psp_ref, b_psp_ref, lat_ref,
                          w_dec_ref, b_dec_ref,
                          w_tri_y_ref, w_tri_r_ref, b_tri_ref,
                          pool_ref,
                          o_ref, opnd):
    bf16 = jnp.bfloat16
    x = x_ref[...]                                                   # (B, 192) f32

    # --- psp_encoder surrogate: image -> W+ codes, then + latent_avg ---------
    codes = jnp.dot(x.astype(bf16), w_psp_ref[...],
                    preferred_element_type=jnp.float32)
    codes = codes + b_psp_ref[...] + lat_ref[...]                    # (B, 128) f32

    # --- stacked decoder operand: 128-lane-aligned segments ------------------
    # [codes (0:128) | cam_pad (128:256) | triplane offsets (256:1024)]
    opnd[:, :CODE_FLAT] = codes
    opnd[:, CODE_FLAT:K_DEC1] = cam_ref[...]

    # --- synthesis #1 (offsets known-zero -> skip w_dec offset rows entirely) -
    y1 = jnp.dot(opnd[:, :K_DEC1].astype(bf16), w_dec_ref[:K_DEC1, :],
                 preferred_element_type=jnp.float32)
    y1 = jnp.tanh(y1 + b_dec_ref[...])                               # (B, 768) f32

    # --- adaptive_avg_pool2d as block-diag Kronecker box filter (MXU) --------
    y1_pool = jnp.dot(y1, pool_ref[...],
                      preferred_element_type=jnp.float32)            # (B, 192) f32

    # --- triplanenet_encoder surrogate: cat([y, x-y], 1) folded into split W -
    resid = x - y1_pool
    off = jnp.dot(y1_pool.astype(bf16), w_tri_y_ref[...],
                  preferred_element_type=jnp.float32)
    off = off + jnp.dot(resid.astype(bf16), w_tri_r_ref[...],
                        preferred_element_type=jnp.float32)
    off = off + b_tri_ref[...]                                       # (B, 768) f32

    # --- synthesis #2 at novel view with offsets: one stacked K=1024 dot -----
    opnd[:, CODE_FLAT:K_DEC1] = ncam_ref[...]
    opnd[:, K_DEC1:] = off
    y2 = jnp.dot(opnd[...].astype(bf16), w_dec_ref[...],
                 preferred_element_type=jnp.float32)
    y2 = jnp.tanh(y2 + b_dec_ref[...])                               # (B, 768) f32

    # --- final resize pool ----------------------------------------------------
    o_ref[...] = jnp.dot(y2, pool_ref[...],
                         preferred_element_type=jnp.float32)         # (B, 192) f32


# ---------------------------- parameters -------------------------------------
def make_pooling_matrix():
    # F.adaptive_avg_pool2d with RENDER % POOLED == 0 is a uniform box filter;
    # express it as a block-diagonal Kronecker averaging matrix over C*H*W so the
    # reduction fuses into the kernel as a single lane-dense MXU matmul.
    f = RENDER // POOLED
    a = jnp.zeros((RENDER, POOLED), jnp.float32)
    a = a.at[jnp.arange(RENDER), jnp.arange(RENDER) // f].set(1.0 / f)
    k = jnp.kron(a, a)                        # (RENDER^2, POOLED^2) = (256, 64)
    return jnp.kron(jnp.eye(IMG_C, dtype=jnp.float32), k)   # (768, 192)


def init_params(key):
    ks = jax.random.split(key, 6)

    def w(k, shape, fan_in):
        return jax.random.normal(k, shape, jnp.float32) / jnp.sqrt(jnp.float32(fan_in))

    # EG3D decoder surrogate weights, stacked along K: [codes ; cam_pad ; offsets]
    w_dec_codes = w(ks[3], (CODE_FLAT, RENDER_FLAT), CODE_FLAT)
    w_dec_cam = jnp.zeros((CAM_PAD, RENDER_FLAT), jnp.float32)
    w_dec_cam = w_dec_cam.at[:CAM, :].set(w(ks[4], (CAM, RENDER_FLAT), CAM))
    w_dec_off = w(ks[5], (TRI_FLAT, RENDER_FLAT), TRI_FLAT)
    w_dec = jnp.concatenate([w_dec_codes, w_dec_cam, w_dec_off], axis=0)  # (1024, 768)

    # triplanenet_encoder surrogate: split weight so cat([y, x-y]) is folded away
    w_tri = w(ks[2], (2 * IMG_FLAT, TRI_FLAT), 2 * IMG_FLAT)

    bf16 = jnp.bfloat16
    return dict(
        # psp_encoder surrogate: image -> W+ codes
        w_psp=w(ks[0], (IMG_FLAT, CODE_FLAT), IMG_FLAT).astype(bf16),
        b_psp=jnp.zeros((1, CODE_FLAT), jnp.float32),
        # latent average (repeated over n_styles, flattened)
        latent_avg=w(ks[1], (1, CODE_FLAT), LATENT),
        # triplane encoder (rows 0:192 act on y, rows 192:384 act on x - y)
        w_tri_y=w_tri[:IMG_FLAT].astype(bf16),
        w_tri_res=w_tri[IMG_FLAT:].astype(bf16),
        b_tri=jnp.zeros((1, TRI_FLAT), jnp.float32),
        # stacked EG3D decoder surrogate
        w_dec=w_dec.astype(bf16),
        b_dec=jnp.zeros((1, RENDER_FLAT), jnp.float32),
        # pooling box filter (exact values, kept f32)
        pool_p=make_pooling_matrix(),
    )


# ---------------------------- forward pass ------------------------------------
def triplanenet_forward(params, x, camera_params,
                        novel_view_camera_params=None, resize=True):
    if novel_view_camera_params is None:
        novel_view_camera_params = camera_params
    del resize  # only the default resize=True path is implemented (see TODO above)

    x_flat = x.reshape(B, IMG_FLAT)
    cam_pad = jnp.zeros((B, CAM_PAD), jnp.float32).at[:, :CAM].set(camera_params)
    ncam_pad = jnp.zeros((B, CAM_PAD), jnp.float32).at[:, :CAM].set(
        novel_view_camera_params)

    y_flat = pl.pallas_call(
        _fused_forward_kernel,
        out_shape=jax.ShapeDtypeStruct((B, POOL_FLAT), jnp.float32),
        in_specs=[_VMEM] * 12,
        out_specs=_VMEM,
        scratch_shapes=[pltpu.VMEM((B, K_DEC), jnp.float32)],
    )(x_flat, cam_pad, ncam_pad,
      params["w_psp"], params["b_psp"], params["latent_avg"],
      params["w_dec"], params["b_dec"],
      params["w_tri_y"], params["w_tri_res"], params["b_tri"],
      params["pool_p"])
    return y_flat.reshape(B, IMG_C, POOLED, POOLED)


# ---------------------------- pure-JAX reference -------------------------------
def reference_forward(params, x, camera_params, novel_view_camera_params=None):
    if novel_view_camera_params is None:
        novel_view_camera_params = camera_params
    bf16 = jnp.bfloat16
    x_flat = x.reshape(B, IMG_FLAT)
    cam_pad = jnp.zeros((B, CAM_PAD), jnp.float32).at[:, :CAM].set(camera_params)
    ncam_pad = jnp.zeros((B, CAM_PAD), jnp.float32).at[:, :CAM].set(
        novel_view_camera_params)

    codes = jnp.dot(x_flat.astype(bf16), params["w_psp"],
                    preferred_element_type=jnp.float32)
    codes = codes + params["b_psp"] + params["latent_avg"]

    opnd1 = jnp.concatenate([codes, cam_pad], axis=1)
    y1 = jnp.tanh(jnp.dot(opnd1.astype(bf16), params["w_dec"][:K_DEC1],
                          preferred_element_type=jnp.float32) + params["b_dec"])
    y1_pool = jnp.dot(y1, params["pool_p"], preferred_element_type=jnp.float32)

    resid = x_flat - y1_pool
    off = (jnp.dot(y1_pool.astype(bf16), params["w_tri_y"],
                   preferred_element_type=jnp.float32)
           + jnp.dot(resid.astype(bf16), params["w_tri_res"],
                     preferred_element_type=jnp.float32)
           + params["b_tri"])

    opnd2 = jnp.concatenate([codes, ncam_pad, off], axis=1)
    y2 = jnp.tanh(jnp.dot(opnd2.astype(bf16), params["w_dec"],
                          preferred_element_type=jnp.float32) + params["b_dec"])
    y_flat = jnp.dot(y2, params["pool_p"], preferred_element_type=jnp.float32)
    return y_flat.reshape(B, IMG_C, POOLED, POOLED)


# ---------------------------- main ---------------------------------------------
if __name__ == "__main__":
    key = jax.random.PRNGKey(0)
    k_params, k_x, k_cam = jax.random.split(key, 3)

    params = init_params(k_params)
    x = jax.random.normal(k_x, (B, IMG_C, IMG_H, IMG_W), jnp.float32)
    camera_params = jax.random.normal(k_cam, (B, CAM), jnp.float32)

    y_hat = triplanenet_forward(params, x, camera_params)
    y_hat = jax.block_until_ready(y_hat)

    assert y_hat.shape == (B, IMG_C, POOLED, POOLED), y_hat.shape
    assert y_hat.dtype == jnp.float32
    assert bool(jnp.all(jnp.isfinite(y_hat)))

    y_ref = jax.block_until_ready(reference_forward(params, x, camera_params))
    assert jnp.allclose(y_hat, y_ref, atol=2e-2, rtol=2e-2), (
        float(jnp.max(jnp.abs(y_hat - y_ref))))

    print("KERNEL_OK")
</pallas_src>

<mosaic_0001>
module attributes {stable_mosaic.version = 11 : i64} {
  func.func @_fused_forward_kernel(%arg0: memref<2x192xf32, #tpu.memory_space<vmem>>, %arg1: memref<2x128xf32, #tpu.memory_space<vmem>>, %arg2: memref<2x128xf32, #tpu.memory_space<vmem>>, %arg3: memref<192x128xbf16, #tpu.memory_space<vmem>>, %arg4: memref<1x128xf32, #tpu.memory_space<vmem>>, %arg5: memref<1x128xf32, #tpu.memory_space<vmem>>, %arg6: memref<1024x768xbf16, #tpu.memory_space<vmem>>, %arg7: memref<1x768xf32, #tpu.memory_space<vmem>>, %arg8: memref<192x768xbf16, #tpu.memory_space<vmem>>, %arg9: memref<192x768xbf16, #tpu.memory_space<vmem>>, %arg10: memref<1x768xf32, #tpu.memory_space<vmem>>, %arg11: memref<768x192xf32, #tpu.memory_space<vmem>>, %arg12: memref<2x192xf32, #tpu.memory_space<vmem>>, %arg13: memref<2x1024xf32, #tpu.memory_space<vmem>>) attributes {dimension_semantics = [], scalar_prefetch = 0 : i64, scratch_operands = 1 : i64, tpu.core_type = #tpu.core_type<tc>} {
    %c0 = arith.constant 0 : index
    %c0_0 = arith.constant 0 : index
    %0 = vector.load %arg0[%c0, %c0_0] : memref<2x192xf32, #tpu.memory_space<vmem>>, vector<2x192xf32>
    %1 = arith.truncf %0 : vector<2x192xf32> to vector<2x192xbf16>
    %c0_1 = arith.constant 0 : index
    %c0_2 = arith.constant 0 : index
    %2 = vector.load %arg3[%c0_1, %c0_2] : memref<192x128xbf16, #tpu.memory_space<vmem>>, vector<192x128xbf16>
    %cst = arith.constant dense<0.000000e+00> : vector<2x128xf32>
    %3 = tpu.matmul %1, %2, %cst {dimension_numbers = #tpu.dot_dimension_numbers<[1], [0], [0], [1], [0, 0, 1, 1], [], []>} : vector<2x192xbf16>, vector<192x128xbf16>, vector<2x128xf32> -> vector<2x128xf32>
    %c0_3 = arith.constant 0 : index
    %c0_4 = arith.constant 0 : index
    %4 = vector.load %arg4[%c0_3, %c0_4] : memref<1x128xf32, #tpu.memory_space<vmem>>, vector<1x128xf32>
    %5 = vector.broadcast %4 : vector<1x128xf32> to vector<2x128xf32>
    %6 = arith.addf %3, %5 : vector<2x128xf32>
    %c0_5 = arith.constant 0 : index
    %c0_6 = arith.constant 0 : index
    %7 = vector.load %arg5[%c0_5, %c0_6] : memref<1x128xf32, #tpu.memory_space<vmem>>, vector<1x128xf32>
    %8 = vector.broadcast %7 : vector<1x128xf32> to vector<2x128xf32>
    %9 = arith.addf %6, %8 : vector<2x128xf32>
    %c0_7 = arith.constant 0 : index
    %c0_8 = arith.constant 0 : index
    %10 = vector.load %arg13[%c0_7, %c0_8] : memref<2x1024xf32, #tpu.memory_space<vmem>>, vector<2x128xf32>
    tpu.vector_store %arg13[%c0_7, %c0_8], %9 {strides = array<i32>} : memref<2x1024xf32, #tpu.memory_space<vmem>>, vector<2x128xf32>,
    %c0_9 = arith.constant 0 : index
    %c0_10 = arith.constant 0 : index
    %11 = vector.load %arg1[%c0_9, %c0_10] : memref<2x128xf32, #tpu.memory_space<vmem>>, vector<2x128xf32>
    %c0_11 = arith.constant 0 : index
    %c128 = arith.constant 128 : index
    %12 = vector.load %arg13[%c0_11, %c128] : memref<2x1024xf32, #tpu.memory_space<vmem>>, vector<2x128xf32>
    tpu.vector_store %arg13[%c0_11, %c128], %11 {strides = array<i32>} : memref<2x1024xf32, #tpu.memory_space<vmem>>, vector<2x128xf32>,
    %c0_12 = arith.constant 0 : index
    %c0_13 = arith.constant 0 : index
    %13 = vector.load %arg13[%c0_12, %c0_13] : memref<2x1024xf32, #tpu.memory_space<vmem>>, vector<2x256xf32>
    %14 = arith.truncf %13 : vector<2x256xf32> to vector<2x256xbf16>
    %c0_14 = arith.constant 0 : index
    %c0_15 = arith.constant 0 : index
    %15 = vector.load %arg6[%c0_14, %c0_15] : memref<1024x768xbf16, #tpu.memory_space<vmem>>, vector<256x768xbf16>
    %cst_16 = arith.constant dense<0.000000e+00> : vector<2x768xf32>
    %16 = tpu.matmul %14, %15, %cst_16 {dimension_numbers = #tpu.dot_dimension_numbers<[1], [0], [0], [1], [0, 0, 1, 1], [], []>} : vector<2x256xbf16>, vector<256x768xbf16>, vector<2x768xf32> -> vector<2x768xf32>
    %c0_17 = arith.constant 0 : index
    %c0_18 = arith.constant 0 : index
    %17 = vector.load %arg7[%c0_17, %c0_18] : memref<1x768xf32, #tpu.memory_space<vmem>>, vector<1x768xf32>
    %18 = vector.broadcast %17 : vector<1x768xf32> to vector<2x768xf32>
    %19 = arith.addf %16, %18 : vector<2x768xf32>
    %20 = math.tanh %19 : vector<2x768xf32>
    %c0_19 = arith.constant 0 : index
    %c0_20 = arith.constant 0 : index
    %21 = vector.load %arg11[%c0_19, %c0_20] : memref<768x192xf32, #tpu.memory_space<vmem>>, vector<768x192xf32>
    %cst_21 = arith.constant dense<0.000000e+00> : vector<2x192xf32>
    %22 = tpu.matmul %20, %21, %cst_21 {dimension_numbers = #tpu.dot_dimension_numbers<[1], [0], [0], [1], [0, 0, 1, 1], [], []>} : vector<2x768xf32>, vector<768x192xf32>, vector<2x192xf32> -> vector<2x192xf32>
    %23 = arith.subf %0, %22 : vector<2x192xf32>
    %24 = arith.truncf %22 : vector<2x192xf32> to vector<2x192xbf16>
    %c0_22 = arith.constant 0 : index
    %c0_23 = arith.constant 0 : index
    %25 = vector.load %arg8[%c0_22, %c0_23] : memref<192x768xbf16, #tpu.memory_space<vmem>>, vector<192x768xbf16>
    %cst_24 = arith.constant dense<0.000000e+00> : vector<2x768xf32>
    %26 = tpu.matmul %24, %25, %cst_24 {dimension_numbers = #tpu.dot_dimension_numbers<[1], [0], [0], [1], [0, 0, 1, 1], [], []>} : vector<2x192xbf16>, vector<192x768xbf16>, vector<2x768xf32> -> vector<2x768xf32>
    %27 = arith.truncf %23 : vector<2x192xf32> to vector<2x192xbf16>
    %c0_25 = arith.constant 0 : index
    %c0_26 = arith.constant 0 : index
    %28 = vector.load %arg9[%c0_25, %c0_26] : memref<192x768xbf16, #tpu.memory_space<vmem>>, vector<192x768xbf16>
    %cst_27 = arith.constant dense<0.000000e+00> : vector<2x768xf32>
    %29 = tpu.matmul %27, %28, %cst_27 {dimension_numbers = #tpu.dot_dimension_numbers<[1], [0], [0], [1], [0, 0, 1, 1], [], []>} : vector<2x192xbf16>, vector<192x768xbf16>, vector<2x768xf32> -> vector<2x768xf32>
    %30 = arith.addf %26, %29 : vector<2x768xf32>
    %c0_28 = arith.constant 0 : index
    %c0_29 = arith.constant 0 : index
    %31 = vector.load %arg10[%c0_28, %c0_29] : memref<1x768xf32, #tpu.memory_space<vmem>>, vector<1x768xf32>
    %32 = vector.broadcast %31 : vector<1x768xf32> to vector<2x768xf32>
    %33 = arith.addf %30, %32 : vector<2x768xf32>
    %c0_30 = arith.constant 0 : index
    %c0_31 = arith.constant 0 : index
    %34 = vector.load %arg2[%c0_30, %c0_31] : memref<2x128xf32, #tpu.memory_space<vmem>>, vector<2x128xf32>
    %c0_32 = arith.constant 0 : index
    %c128_33 = arith.constant 128 : index
    %35 = vector.load %arg13[%c0_32, %c128_33] : memref<2x1024xf32, #tpu.memory_space<vmem>>, vector<2x128xf32>
    tpu.vector_store %arg13[%c0_32, %c128_33], %34 {strides = array<i32>} : memref<2x1024xf32, #tpu.memory_space<vmem>>, vector<2x128xf32>,
    %c0_34 = arith.constant 0 : index
    %c256 = arith.constant 256 : index
    %36 = vector.load %arg13[%c0_34, %c256] : memref<2x1024xf32, #tpu.memory_space<vmem>>, vector<2x768xf32>
    tpu.vector_store %arg13[%c0_34, %c256], %33 {strides = array<i32>} : memref<2x1024xf32, #tpu.memory_space<vmem>>, vector<2x768xf32>,
    %c0_35 = arith.constant 0 : index
    %c0_36 = arith.constant 0 : index
    %37 = vector.load %arg13[%c0_35, %c0_36] : memref<2x1024xf32, #tpu.memory_space<vmem>>, vector<2x1024xf32>
    %38 = arith.truncf %37 : vector<2x1024xf32> to vector<2x1024xbf16>
    %c0_37 = arith.constant 0 : index
    %c0_38 = arith.constant 0 : index
    %39 = vector.load %arg6[%c0_37, %c0_38] : memref<1024x768xbf16, #tpu.memory_space<vmem>>, vector<1024x768xbf16>
    %cst_39 = arith.constant dense<0.000000e+00> : vector<2x768xf32>
    %40 = tpu.matmul %38, %39, %cst_39 {dimension_numbers = #tpu.dot_dimension_numbers<[1], [0], [0], [1], [0, 0, 1, 1], [], []>} : vector<2x1024xbf16>, vector<1024x768xbf16>, vector<2x768xf32> -> vector<2x768xf32>
    %c0_40 = arith.constant 0 : index
    %c0_41 = arith.constant 0 : index
    %41 = vector.load %arg7[%c0_40, %c0_41] : memref<1x768xf32, #tpu.memory_space<vmem>>, vector<1x768xf32>
    %42 = vector.broadcast %41 : vector<1x768xf32> to vector<2x768xf32>
    %43 = arith.addf %40, %42 : vector<2x768xf32>
    %44 = math.tanh %43 : vector<2x768xf32>
    %c0_42 = arith.constant 0 : index
    %c0_43 = arith.constant 0 : index
    %45 = vector.load %arg11[%c0_42, %c0_43] : memref<768x192xf32, #tpu.memory_space<vmem>>, vector<768x192xf32>
    %cst_44 = arith.constant dense<0.000000e+00> : vector<2x192xf32>
    %46 = tpu.matmul %44, %45, %cst_44 {dimension_numbers = #tpu.dot_dimension_numbers<[1], [0], [0], [1], [0, 0, 1, 1], [], []>} : vector<2x768xf32>, vector<768x192xf32>, vector<2x192xf32> -> vector<2x192xf32>
    %c0_45 = arith.constant 0 : index
    %c0_46 = arith.constant 0 : index
    %47 = vector.load %arg12[%c0_45, %c0_46] : memref<2x192xf32, #tpu.memory_space<vmem>>, vector<2x192xf32>
    tpu.vector_store %arg12[%c0_45, %c0_46], %46 {strides = array<i32>} : memref<2x192xf32, #tpu.memory_space<vmem>>, vector<2x192xf32>,
    return
  }
}

</mosaic_0001>

<llo_original>
// kernel: tpu_custom_call.1
$region0: #{tpu_custom_call.1}
  #allocation0 [shape = 'u32[]', space=smem, size = 0x4, offset = 0x4, fixed_abs, tag = 'smem constant byte address 0x4 - core index']
  #allocation1 [shape = 'u32[72,128]{1,0:T(1,128)}', space=vmem, size = 0x9000, scoped, tag = 'internal scratch']
  #allocation2 [shape = 'f32[2,1024]{1,0:T(2,128)}', space=vmem, size = 0x2000, scoped, tag = 'scratch operand']
  %s0 = inlined_call_operand.hbm [shape: f32[2,192], index: 0, kind: input, shape index: {}]
  %s1 = inlined_call_operand.hbm [shape: f32[2,128], index: 1, kind: input, shape index: {}]
  %s2 = inlined_call_operand.hbm [shape: f32[2,128], index: 2, kind: input, shape index: {}]
  %s3 = inlined_call_operand.hbm [shape: bf16[192,128], index: 3, kind: input, shape index: {}]
  %s4 = inlined_call_operand.hbm [shape: f32[1,128], index: 4, kind: input, shape index: {}]
  %s5 = inlined_call_operand.hbm [shape: f32[1,128], index: 5, kind: input, shape index: {}]
  %s6 = inlined_call_operand.hbm [shape: bf16[1024,768], index: 6, kind: input, shape index: {}]
  %s7 = inlined_call_operand.hbm [shape: f32[1,768], index: 7, kind: input, shape index: {}]
  %s8 = inlined_call_operand.hbm [shape: bf16[192,768], index: 8, kind: input, shape index: {}]
  %s9 = inlined_call_operand.hbm [shape: bf16[192,768], index: 9, kind: input, shape index: {}]
  %s10 = inlined_call_operand.hbm [shape: f32[1,768], index: 10, kind: input, shape index: {}]
  %s11 = inlined_call_operand.vmem [shape: f32[768,192], index: 11, kind: input, shape index: {}]
  %s12 = inlined_call_operand.hbm [shape: f32[2,192], index: 12, kind: output, shape index: {}]
  %s13 = sld [smem:[#allocation0]]
  $region102: #{tpu_custom_call.1} parent=0
    _
  %s15 = ssub.s32 1, %s13
  %s16 = scalar_select 0, %s15, %s13
  $region1: #{tpu_custom_call.1} parent=0
    #allocation3 [shape = 'u8[2048]{0}', space=vmem, size = 0x800, scoped, tag = 'input window, operand 0, single buffered']
    #allocation4 [shape = 's32[1]{0}', space=sflag, size = 0x4, scoped, tag = 'scoped memory for tpu_custom_call.1']
    #allocation5 [shape = 's32[1]{0}', space=sflag, size = 0x4, scoped, tag = 'scoped memory for tpu_custom_call.1']
    #allocation6 [shape = 'u8[1024]{0}', space=vmem, size = 0x400, scoped, tag = 'input window, operand 1, single buffered']
    #allocation7 [shape = 's32[1]{0}', space=sflag, size = 0x4, scoped, tag = 'scoped memory for tpu_custom_call.1']
    #allocation8 [shape = 'u8[1024]{0}', space=vmem, size = 0x400, scoped, tag = 'input window, operand 2, single buffered']
    #allocation9 [shape = 'u8[49152]{0}', space=vmem, size = 0xc000, scoped, tag = 'input window, operand 3, single buffered']
    #allocation10 [shape = 's32[1]{0}', space=sflag, size = 0x4, scoped, tag = 'scoped memory for tpu_custom_call.1']
    #allocation11 [shape = 'u8[512]{0}', space=vmem, size = 0x400, scoped, tag = 'input window, operand 4, single buffered']
    #allocation12 [shape = 'u8[512]{0}', space=vmem, size = 0x400, scoped, tag = 'input window, operand 5, single buffered']
    #allocation13 [shape = 's32[1]{0}', space=sflag, size = 0x4, scoped, tag = 'scoped memory for tpu_custom_call.1']
    #allocation14 [shape = 'u8[1572864]{0}', space=vmem, size = 0x180000, scoped, tag = 'input window, operand 6, single buffered']
    #allocation15 [shape = 'u8[3072]{0}', space=vmem, size = 0xc00, scoped, tag = 'input window, operand 7, single buffered']
    #allocation16 [shape = 's32[1]{0}', space=sflag, size = 0x4, scoped, tag = 'scoped memory for tpu_custom_call.1']
    #allocation17 [shape = 'u8[294912]{0}', space=vmem, size = 0x48000, scoped, tag = 'input window, operand 8, single buffered']
    #allocation18 [shape = 'u8[294912]{0}', space=vmem, size = 0x48000, scoped, tag = 'input window, operand 9, single buffered']
    #allocation19 [shape = 's32[1]{0}', space=sflag, size = 0x4, scoped, tag = 'scoped memory for tpu_custom_call.1']
    #allocation20 [shape = 'u8[3072]{0}', space=vmem, size = 0xc00, scoped, tag = 'input window, operand 10, single buffered']
    #allocation21 [shape = 'u8[2048]{0}', space=vmem, size = 0x800, scoped, tag = 'output window, operand 0, single buffered']
    %17 = vsyncpa [#allocation4], 0
    %18 = vsyncpa [#allocation7], 0
    %19 = vsyncpa [#allocation10], 0
    %20 = vsyncpa [#allocation13], 0
    %21 = vsyncpa [#allocation16], 0
    %22 = vsyncpa [#allocation19], 0
    %23 = vsyncpa [#allocation5], 0
    // Predicated region
    $region2: #{tpu_custom_call.1} parent=1 // pred_check
      _
    $region3: #{tpu_custom_call.1} parent=1 // pred_check_branch
      %25 = sbr.rel (0) target = $region5
    $region4: #{tpu_custom_call.1} parent=1 // pred_region
      %27 = vsyncadd [#allocation4], 0
      %s29 = sshll.u32 %s0, 4
      %s30 = int_to_ptr.hbm [resolvable:$true] %s29
      %s31 = sshll.u32 [#allocation3], 4
      %s32 = int_to_ptr.vmem [resolvable:$true] %s31
      %34 = dma.hbm_to_vmem [thread:$0]  %s30, 64, %s32, [#allocation4]
    $region5: #{tpu_custom_call.1} parent=1 // pred_fallthru
      _
    // Predicated region
    $region6: #{tpu_custom_call.1} parent=1 // pred_check
      _
    $region7: #{tpu_custom_call.1} parent=1 // pred_check_branch
      %36 = sbr.rel (0) target = $region9
    $region8: #{tpu_custom_call.1} parent=1 // pred_region
      %38 = vsyncadd [#allocation7], 0
      %s40 = sshll.u32 %s1, 4
      %s41 = int_to_ptr.hbm [resolvable:$true] %s40
      %s42 = sshll.u32 [#allocation6], 4
      %s43 = int_to_ptr.vmem [resolvable:$true] %s42
      %45 = dma.hbm_to_vmem [thread:$0]  %s41, 32, %s43, [#allocation7]
    $region9: #{tpu_custom_call.1} parent=1 // pred_fallthru
      _
    // Predicated region
    $region10: #{tpu_custom_call.1} parent=1 // pred_check
      _
    $region11: #{tpu_custom_call.1} parent=1 // pred_check_branch
      %47 = sbr.rel (0) target = $region13
    $region12: #{tpu_custom_call.1} parent=1 // pred_region
      %49 = vsyncadd [#allocation7], 0
      %s51 = sshll.u32 %s2, 4
      %s52 = int_to_ptr.hbm [resolvable:$true] %s51
      %s53 = sshll.u32 [#allocation8], 4
      %s54 = int_to_ptr.vmem [resolvable:$true] %s53
      %56 = dma.hbm_to_vmem [thread:$0]  %s52, 32, %s54, [#allocation7]
    $region13: #{tpu_custom_call.1} parent=1 // pred_fallthru
      _
    // Predicated region
    $region14: #{tpu_custom_call.1} parent=1 // pred_check
      _
    $region15: #{tpu_custom_call.1} parent=1 // pred_check_branch
      %58 = sbr.rel (0) target = $region17
    $region16: #{tpu_custom_call.1} parent=1 // pred_region
      %60 = vsyncadd [#allocation10], 0
      %s61 = sshll.u32 %s3, 4
      %s62 = int_to_ptr.hbm [resolvable:$true] %s61
      %s63 = sshll.u32 [#allocation9], 4
      %s64 = int_to_ptr.vmem [resolvable:$true] %s63
      %69 = dma.hbm_to_vmem [thread:$0]  %s62, 1536, %s64, [#allocation10], 64, 64, 4
    $region17: #{tpu_custom_call.1} parent=1 // pred_fallthru
      _
    // Predicated region
    $region18: #{tpu_custom_call.1} parent=1 // pred_check
      _
    $region19: #{tpu_custom_call.1} parent=1 // pred_check_branch
      %71 = sbr.rel (0) target = $region21
    $region20: #{tpu_custom_call.1} parent=1 // pred_region
      %73 = vsyncadd [#allocation10], 0
      %s75 = sshll.u32 %s4, 4
      %s76 = int_to_ptr.hbm [resolvable:$true] %s75
      %s77 = sshll.u32 [#allocation11], 4
      %s78 = int_to_ptr.vmem [resolvable:$true] %s77
      %80 = dma.hbm_to_vmem [thread:$0]  %s76, 16, %s78, [#allocation10]
    $region21: #{tpu_custom_call.1} parent=1 // pred_fallthru
      _
    // Predicated region
    $region22: #{tpu_custom_call.1} parent=1 // pred_check
      _
    $region23: #{tpu_custom_call.1} parent=1 // pred_check_branch
      %82 = sbr.rel (0) target = $region25
    $region24: #{tpu_custom_call.1} parent=1 // pred_region
      %84 = vsyncadd [#allocation13], 0
      %s86 = sshll.u32 %s5, 4
      %s87 = int_to_ptr.hbm [resolvable:$true] %s86
      %s88 = sshll.u32 [#allocation12], 4
      %s89 = int_to_ptr.vmem [resolvable:$true] %s88
      %91 = dma.hbm_to_vmem [thread:$0]  %s87, 16, %s89, [#allocation13]
    $region25: #{tpu_custom_call.1} parent=1 // pred_fallthru
      _
    // Predicated region
    $region26: #{tpu_custom_call.1} parent=1 // pred_check
      _
    $region27: #{tpu_custom_call.1} parent=1 // pred_check_branch
      %93 = sbr.rel (0) target = $region29
    $region28: #{tpu_custom_call.1} parent=1 // pred_region
      %95 = vsyncadd [#allocation13], 0
      %s96 = sshll.u32 %s6, 4
      %s97 = int_to_ptr.hbm [resolvable:$true] %s96
      %s98 = sshll.u32 [#allocation14], 4
      %s99 = int_to_ptr.vmem [resolvable:$true] %s98
      %104 = dma.hbm_to_vmem [thread:$0]  %s97, 49152, %s99, [#allocation13], 384, 384, 24
    $region29: #{tpu_custom_call.1} parent=1 // pred_fallthru
      _
    // Predicated region
    $region30: #{tpu_custom_call.1} parent=1 // pred_check
      _
    $region31: #{tpu_custom_call.1} parent=1 // pred_check_branch
      %106 = sbr.rel (0) target = $region33
    $region32: #{tpu_custom_call.1} parent=1 // pred_region
      %108 = vsyncadd [#allocation16], 0
      %s110 = sshll.u32 %s7, 4
      %s111 = int_to_ptr.hbm [resolvable:$true] %s110
      %s112 = sshll.u32 [#allocation15], 4
      %s113 = int_to_ptr.vmem [resolvable:$true] %s112
      %115 = dma.hbm_to_vmem [thread:$0]  %s111, 96, %s113, [#allocation16]
    $region33: #{tpu_custom_call.1} parent=1 // pred_fallthru
      _
    // Predicated region
    $region34: #{tpu_custom_call.1} parent=1 // pred_check
      _
    $region35: #{tpu_custom_call.1} parent=1 // pred_check_branch
      %117 = sbr.rel (0) target = $region37
    $region36: #{tpu_custom_call.1} parent=1 // pred_region
      %119 = vsyncadd [#allocation16], 0
      %s120 = sshll.u32 %s8, 4
      %s121 = int_to_ptr.hbm [resolvable:$true] %s120
      %s122 = sshll.u32 [#allocation17], 4
      %s123 = int_to_ptr.vmem [resolvable:$true] %s122
      %128 = dma.hbm_to_vmem [thread:$0]  %s121, 9216, %s123, [#allocation16], 384, 384, 24
    $region37: #{tpu_custom_call.1} parent=1 // pred_fallthru
      _
    // Predicated region
    $region38: #{tpu_custom_call.1} parent=1 // pred_check
      _
    $region39: #{tpu_custom_call.1} parent=1 // pred_check_branch
      %130 = sbr.rel (0) target = $region41
    $region40: #{tpu_custom_call.1} parent=1 // pred_region
      %132 = vsyncadd [#allocation19], 0
      %s133 = sshll.u32 %s9, 4
      %s134 = int_to_ptr.hbm [resolvable:$true] %s133
      %s135 = sshll.u32 [#allocation18], 4
      %s136 = int_to_ptr.vmem [resolvable:$true] %s135
      %141 = dma.hbm_to_vmem [thread:$0]  %s134, 9216, %s136, [#allocation19], 384, 384, 24
    $region41: #{tpu_custom_call.1} parent=1 // pred_fallthru
      _
    // Predicated region
    $region42: #{tpu_custom_call.1} parent=1 // pred_check
      _
    $region43: #{tpu_custom_call.1} parent=1 // pred_check_branch
      %143 = sbr.rel (0) target = $region45
    $region44: #{tpu_custom_call.1} parent=1 // pred_region
      %145 = vsyncadd [#allocation19], 0
      %s147 = sshll.u32 %s10, 4
      %s148 = int_to_ptr.hbm [resolvable:$true] %s147
      %s149 = sshll.u32 [#allocation20], 4
      %s150 = int_to_ptr.vmem [resolvable:$true] %s149
      %152 = dma.hbm_to_vmem [thread:$0]  %s148, 96, %s150, [#allocation19]
    $region45: #{tpu_custom_call.1} parent=1 // pred_fallthru
      _
    // Predicated region
    $region46: #{tpu_custom_call.1} parent=1 // pred_check
      _
    $region47: #{tpu_custom_call.1} parent=1 // pred_check_branch
      %154 = sbr.rel (0) target = $region49
    $region48: #{tpu_custom_call.1} parent=1 // pred_region
      _
    $region49: #{tpu_custom_call.1} parent=1 // pred_fallthru
      _
    // Predicated region
    $region50: #{tpu_custom_call.1} parent=1 // pred_check
      _
    $region51: #{tpu_custom_call.1} parent=1 // pred_check_branch
      %156 = sbr.rel (0) target = $region53
    $region52: #{tpu_custom_call.1} parent=1 // pred_region
      %158 = dma.done [#allocation4], 64
    $region53: #{tpu_custom_call.1} parent=1 // pred_fallthru
      _
    // Predicated region
    $region54: #{tpu_custom_call.1} parent=1 // pred_check
      _
    $region55: #{tpu_custom_call.1} parent=1 // pred_check_branch
      %160 = sbr.rel (0) target = $region57
    $region56: #{tpu_custom_call.1} parent=1 // pred_region
      %162 = dma.done [#allocation7], 32
    $region57: #{tpu_custom_call.1} parent=1 // pred_fallthru
      _
    // Predicated region
    $region58: #{tpu_custom_call.1} parent=1 // pred_check
      _
    $region59: #{tpu_custom_call.1} parent=1 // pred_check_branch
      %164 = sbr.rel (0) target = $region61
    $region60: #{tpu_custom_call.1} parent=1 // pred_region
      %166 = dma.done [#allocation7], 32
    $region61: #{tpu_custom_call.1} parent=1 // pred_fallthru
      _
    // Predicated region
    $region62: #{tpu_custom_call.1} parent=1 // pred_check
      _
    $region63: #{tpu_custom_call.1} parent=1 // pred_check_branch
      %168 = sbr.rel (0) target = $region65
    $region64: #{tpu_custom_call.1} parent=1 // pred_region
      %170 = dma.done [#allocation10], 1536
    $region65: #{tpu_custom_call.1} parent=1 // pred_fallthru
      _
    // Predicated region
    $region66: #{tpu_custom_call.1} parent=1 // pred_check
      _
    $region67: #{tpu_custom_call.1} parent=1 // pred_check_branch
      %172 = sbr.rel (0) target = $region69
    $region68: #{tpu_custom_call.1} parent=1 // pred_region
      %174 = dma.done [#allocation10], 16
    $region69: #{tpu_custom_call.1} parent=1 // pred_fallthru
      _
    // Predicated region
    $region70: #{tpu_custom_call.1} parent=1 // pred_check
      _
    $region71: #{tpu_custom_call.1} parent=1 // pred_check_branch
      %176 = sbr.rel (0) target = $region73
    $region72: #{tpu_custom_call.1} parent=1 // pred_region
      %178 = dma.done [#allocation13], 16
    $region73: #{tpu_custom_call.1} parent=1 // pred_fallthru
      _
    // Predicated region
    $region74: #{tpu_custom_call.1} parent=1 // pred_check
      _
    $region75: #{tpu_custom_call.1} parent=1 // pred_check_branch
      %180 = sbr.rel (0) target = $region77
    $region76: #{tpu_custom_call.1} parent=1 // pred_region
      %182 = dma.done [#allocation13], 49152
    $region77: #{tpu_custom_call.1} parent=1 // pred_fallthru
      _
    // Predicated region
    $region78: #{tpu_custom_call.1} parent=1 // pred_check
      _
    $region79: #{tpu_custom_call.1} parent=1 // pred_check_branch
      %184 = sbr.rel (0) target = $region81
    $region80: #{tpu_custom_call.1} parent=1 // pred_region
      %186 = dma.done [#allocation16], 96
    $region81: #{tpu_custom_call.1} parent=1 // pred_fallthru
      _
    // Predicated region
    $region82: #{tpu_custom_call.1} parent=1 // pred_check
      _
    $region83: #{tpu_custom_call.1} parent=1 // pred_check_branch
      %188 = sbr.rel (0) target = $region85
    $region84: #{tpu_custom_call.1} parent=1 // pred_region
      %190 = dma.done [#allocation16], 9216
    $region85: #{tpu_custom_call.1} parent=1 // pred_fallthru
      _
    // Predicated region
    $region86: #{tpu_custom_call.1} parent=1 // pred_check
      _
    $region87: #{tpu_custom_call.1} parent=1 // pred_check_branch
      %192 = sbr.rel (0) target = $region89
    $region88: #{tpu_custom_call.1} parent=1 // pred_region
      %194 = dma.done [#allocation19], 9216
    $region89: #{tpu_custom_call.1} parent=1 // pred_fallthru
      _
    // Predicated region
    $region90: #{tpu_custom_call.1} parent=1 // pred_check
      _
    $region91: #{tpu_custom_call.1} parent=1 // pred_check_branch
      %196 = sbr.rel (0) target = $region93
    $region92: #{tpu_custom_call.1} parent=1 // pred_region
      %198 = dma.done [#allocation19], 96
    $region93: #{tpu_custom_call.1} parent=1 // pred_fallthru
      _
    %v200 = vld [vmem:[#allocation3] sm:$0xf]
    %202 = vst [vmem:[#allocation1] ss:$4 sm:$0xff] %v200
    %v203 = vld.sshfl [vmem:[#allocation1] sm:$0xff pattern:$0x73625140]
    %v204 = vld.sshfl [vmem:[#allocation1 + $0x8] sm:$0xff pattern:$0x73625140]
    %v207 = vpack.c.bf16 %v203, %v203
    %v208 = vpack.c.bf16 %v204, %v204
    %v209 = vld [vmem:[#allocation9] sm:$0xf]
    %v210 = vld [vmem:[#allocation9 + $0x4] sm:$0xf]
    %v211 = vld [vmem:[#allocation9 + $0x8] sm:$0xf]
    %v212 = vld [vmem:[#allocation9 + $0xc] sm:$0xf]
    %v213 = vld [vmem:[#allocation9 + $0x10] sm:$0xf]
    %v214 = vld [vmem:[#allocation9 + $0x14] sm:$0xf]
    %v215 = vld [vmem:[#allocation9 + $0x18] sm:$0xf]
    %v216 = vld [vmem:[#allocation9 + $0x1c] sm:$0xf]
    %v217 = vld [vmem:[#allocation9 + $0x20] sm:$0xf]
    %v218 = vld [vmem:[#allocation9 + $0x24] sm:$0xf]
    %v219 = vld [vmem:[#allocation9 + $0x28] sm:$0xf]
    %v220 = vld [vmem:[#allocation9 + $0x2c] sm:$0xf]
    %v221 = vld [vmem:[#allocation9 + $0x30] sm:$0xf]
    %v222 = vld [vmem:[#allocation9 + $0x34] sm:$0xf]
    %v223 = vld [vmem:[#allocation9 + $0x38] sm:$0xf]
    %v224 = vld [vmem:[#allocation9 + $0x3c] sm:$0xf]
    %v225 = vld [vmem:[#allocation9 + $0x40] sm:$0xf]
    %v226 = vld [vmem:[#allocation9 + $0x44] sm:$0xf]
    %v227 = vld [vmem:[#allocation9 + $0x48] sm:$0xf]
    %v228 = vld [vmem:[#allocation9 + $0x4c] sm:$0xf]
    %v229 = vld [vmem:[#allocation9 + $0x50] sm:$0xf]
    %v230 = vld [vmem:[#allocation9 + $0x54] sm:$0xf]
    %v231 = vld [vmem:[#allocation9 + $0x58] sm:$0xf]
    %v232 = vld [vmem:[#allocation9 + $0x5c] sm:$0xf]
    %v233 = vld [vmem:[#allocation11] sm:$0x1]
    %v235 = vperm.slane %v233, 0
    %v261 = vunpack.c.l.b16 %v209
    %v262 = vunpack.c.l.b16 %v210
    %v263 = vunpack.c.l.b16 %v211
    %v264 = vunpack.c.l.b16 %v212
    %v265 = vunpack.c.l.b16 %v213
    %v266 = vunpack.c.l.b16 %v214
    %v267 = vunpack.c.l.b16 %v215
    %v268 = vunpack.c.l.b16 %v216
    %v269 = vunpack.c.l.b16 %v217
    %v270 = vunpack.c.l.b16 %v218
    %v271 = vunpack.c.l.b16 %v219
    %v272 = vunpack.c.l.b16 %v220
    %v273 = vunpack.c.l.b16 %v221
    %v274 = vunpack.c.l.b16 %v222
    %v275 = vunpack.c.l.b16 %v223
    %v276 = vunpack.c.l.b16 %v224
    %v277 = vunpack.c.l.b16 %v225
    %v278 = vunpack.c.l.b16 %v226
    %v279 = vunpack.c.l.b16 %v227
    %v280 = vunpack.c.l.b16 %v228
    %v281 = vunpack.c.l.b16 %v229
    %v282 = vunpack.c.l.b16 %v230
    %v283 = vunpack.c.l.b16 %v231
    %v284 = vunpack.c.l.b16 %v232
    %v285 = vpack.c.b16 %v262, %v261
    %v286 = vpack.c.b16 %v264, %v263
    %v287 = vpack.c.b16 %v266, %v265
    %v288 = vpack.c.b16 %v268, %v267
    %v289 = vpack.c.b16 %v270, %v269
    %v290 = vpack.c.b16 %v272, %v271
    %v291 = vpack.c.b16 %v274, %v273
    %v292 = vpack.c.b16 %v276, %v275
    %v293 = vpack.c.b16 %v278, %v277
    %v294 = vpack.c.b16 %v280, %v279
    %v295 = vpack.c.b16 %v282, %v281
    %v296 = vpack.c.b16 %v284, %v283
    %vm309 = vcmask 523264
    %v311 = vsel %vm309, %v208, 0
    %313 = vmatpush.bf16.msra.mxu0 %v292
    %314 = vmatpush.bf16.msra.mxu0 %v291
    %315 = vmatpush.bf16.msra.mxu0 %v290
    %316 = vmatpush.bf16.msra.mxu0 %v289
    %317 = vmatpush.bf16.msra.mxu0 %v288
    %318 = vmatpush.bf16.msra.mxu0 %v287
    %319 = vmatpush.bf16.msra.mxu0 %v286
    %320 = vmatpush.bf16.msra.mxu0 %v285
    %321 = vmatmul.bf16.gmra.mxu0 %v207
    %v322 = vpop.f32.mrf.mxu0
    %v323 = vadd.f32 %v235, %v322
    %v324 = vpop.f32.mrf.mxu0
    %325 = vdwg.mxu0
    %326 = vmatpush.bf16.msra.mxu0 0
    %327 = vmatpush.bf16.msra.mxu0 0
    %328 = vmatpush.bf16.msra.mxu0 0
    %329 = vmatpush.bf16.msra.mxu0 0
    %330 = vmatpush.bf16.msra.mxu0 %v296
    %331 = vmatpush.bf16.msra.mxu0 %v295
    %332 = vmatpush.bf16.msra.mxu0 %v294
    %333 = vmatpush.bf16.msra.mxu0 %v293
    %334 = vmatmul.bf16.gmra.mxu0 %v311
    %v335 = vpop.f32.mrf.mxu0
    %v336 = vadd.f32 %v323, %v335
    %v337 = vpop.f32.mrf.mxu0
    %338 = vdwg.mxu0
    %v339 = vld [vmem:[#allocation12] sm:$0x1]
    %v341 = vperm.slane %v339, 0
    %v343 = vadd.f32 %v336, %v341
    %344 = vst [vmem:[#allocation2] sm:$0x3] %v343
    %v345 = vld [vmem:[#allocation6] sm:$0x3]
    %346 = vst [vmem:[#allocation2 + $0x2] sm:$0x3] %v345
    %v347 = vld [vmem:[#allocation2] sm:$0xf]
    %349 = vst [vmem:[#allocation1] ss:$4 sm:$0xff] %v347
    %v350 = vld.sshfl [vmem:[#allocation1] sm:$0xff pattern:$0x73625140]
    %v351 = vld.sshfl [vmem:[#allocation1 + $0x8] sm:$0xff pattern:$0x73625140]
    %v354 = vpack.c.bf16 %v350, %v350
    %v355 = vpack.c.bf16 %v351, %v351
    %v356 = vld [vmem:[#allocation14] sm:$0xff]
    %v357 = vld [vmem:[#allocation14 + $0x8] sm:$0xff]
    %v358 = vld [vmem:[#allocation14 + $0x10] sm:$0xff]
    %v359 = vld [vmem:[#allocation14 + $0x18] sm:$0xff]
    %v360 = vld [vmem:[#allocation14 + $0x20] sm:$0xff]
    %v361 = vld [vmem:[#allocation14 + $0x28] sm:$0xff]
    %v362 = vld [vmem:[#allocation14 + $0x30] sm:$0xff]
    %v363 = vld [vmem:[#allocation14 + $0x38] sm:$0xff]
    %v364 = vld [vmem:[#allocation14 + $0x40] sm:$0xff]
    %v365 = vld [vmem:[#allocation14 + $0x48] sm:$0xff]
    %v366 = vld [vmem:[#allocation14 + $0x50] sm:$0xff]
    %v367 = vld [vmem:[#allocation14 + $0x58] sm:$0xff]
    %v368 = vld [vmem:[#allocation14 + $0x60] sm:$0xff]
    %v369 = vld [vmem:[#allocation14 + $0x68] sm:$0xff]
    %v370 = vld [vmem:[#allocation14 + $0x70] sm:$0xff]
    %v371 = vld [vmem:[#allocation14 + $0x78] sm:$0xff]
    %v372 = vld [vmem:[#allocation14 + $0x80] sm:$0xff]
    %v373 = vld [vmem:[#allocation14 + $0x88] sm:$0xff]
    %v374 = vld [vmem:[#allocation14 + $0x90] sm:$0xff]
    %v375 = vld [vmem:[#allocation14 + $0x98] sm:$0xff]
    %v376 = vld [vmem:[#allocation14 + $0xa0] sm:$0xff]
    %v377 = vld [vmem:[#allocation14 + $0xa8] sm:$0xff]
    %v378 = vld [vmem:[#allocation14 + $0xb0] sm:$0xff]
    %v379 = vld [vmem:[#allocation14 + $0xb8] sm:$0xff]
    %v380 = vld [vmem:[#allocation14 + $0xc0] sm:$0xff]
    %v381 = vld [vmem:[#allocation14 + $0xc8] sm:$0xff]
    %v382 = vld [vmem:[#allocation14 + $0xd0] sm:$0xff]
    %v383 = vld [vmem:[#allocation14 + $0xd8] sm:$0xff]
    %v384 = vld [vmem:[#allocation14 + $0xe0] sm:$0xff]
    %v385 = vld [vmem:[#allocation14 + $0xe8] sm:$0xff]
    %v386 = vld [vmem:[#allocation14 + $0xf0] sm:$0xff]
    %v387 = vld [vmem:[#allocation14 + $0xf8] sm:$0xff]
    %v388 = vld [vmem:[#allocation14 + $0x100] sm:$0xff]
    %v389 = vld [vmem:[#allocation14 + $0x108] sm:$0xff]
    %v390 = vld [vmem:[#allocation14 + $0x110] sm:$0xff]
    %v391 = vld [vmem:[#allocation14 + $0x118] sm:$0xff]
    %v392 = vld [vmem:[#allocation14 + $0x120] sm:$0xff]
    %v393 = vld [vmem:[#allocation14 + $0x128] sm:$0xff]
    %v394 = vld [vmem:[#allocation14 + $0x130] sm:$0xff]
    %v395 = vld [vmem:[#allocation14 + $0x138] sm:$0xff]
    %v396 = vld [vmem:[#allocation14 + $0x140] sm:$0xff]
    %v397 = vld [vmem:[#allocation14 + $0x148] sm:$0xff]
    %v398 = vld [vmem:[#allocation14 + $0x150] sm:$0xff]
    %v399 = vld [vmem:[#allocation14 + $0x158] sm:$0xff]
    %v400 = vld [vmem:[#allocation14 + $0x160] sm:$0xff]
    %v401 = vld [vmem:[#allocation14 + $0x168] sm:$0xff]
    %v402 = vld [vmem:[#allocation14 + $0x170] sm:$0xff]
    %v403 = vld [vmem:[#allocation14 + $0x178] sm:$0xff]
    %v404 = vld [vmem:[#allocation14 + $0x180] sm:$0xff]
    %v405 = vld [vmem:[#allocation14 + $0x188] sm:$0xff]
    %v406 = vld [vmem:[#allocation14 + $0x190] sm:$0xff]
    %v407 = vld [vmem:[#allocation14 + $0x198] sm:$0xff]
    %v408 = vld [vmem:[#allocation14 + $0x1a0] sm:$0xff]
    %v409 = vld [vmem:[#allocation14 + $0x1a8] sm:$0xff]
    %v410 = vld [vmem:[#allocation14 + $0x1b0] sm:$0xff]
    %v411 = vld [vmem:[#allocation14 + $0x1b8] sm:$0xff]
    %v412 = vld [vmem:[#allocation14 + $0x1c0] sm:$0xff]
    %v413 = vld [vmem:[#allocation14 + $0x1c8] sm:$0xff]
    %v414 = vld [vmem:[#allocation14 + $0x1d0] sm:$0xff]
    %v415 = vld [vmem:[#allocation14 + $0x1d8] sm:$0xff]
    %v416 = vld [vmem:[#allocation14 + $0x1e0] sm:$0xff]
    %v417 = vld [vmem:[#allocation14 + $0x1e8] sm:$0xff]
    %v418 = vld [vmem:[#allocation14 + $0x1f0] sm:$0xff]
    %v419 = vld [vmem:[#allocation14 + $0x1f8] sm:$0xff]
    %v420 = vld [vmem:[#allocation14 + $0x200] sm:$0xff]
    %v421 = vld [vmem:[#allocation14 + $0x208] sm:$0xff]
    %v422 = vld [vmem:[#allocation14 + $0x210] sm:$0xff]
    %v423 = vld [vmem:[#allocation14 + $0x218] sm:$0xff]
    %v424 = vld [vmem:[#allocation14 + $0x220] sm:$0xff]
    %v425 = vld [vmem:[#allocation14 + $0x228] sm:$0xff]
    %v426 = vld [vmem:[#allocation14 + $0x230] sm:$0xff]
    %v427 = vld [vmem:[#allocation14 + $0x238] sm:$0xff]
    %v428 = vld [vmem:[#allocation14 + $0x240] sm:$0xff]
    %v429 = vld [vmem:[#allocation14 + $0x248] sm:$0xff]
    %v430 = vld [vmem:[#allocation14 + $0x250] sm:$0xff]
    %v431 = vld [vmem:[#allocation14 + $0x258] sm:$0xff]
    %v432 = vld [vmem:[#allocation14 + $0x260] sm:$0xff]
    %v433 = vld [vmem:[#allocation14 + $0x268] sm:$0xff]
    %v434 = vld [vmem:[#allocation14 + $0x270] sm:$0xff]
    %v435 = vld [vmem:[#allocation14 + $0x278] sm:$0xff]
    %v436 = vld [vmem:[#allocation14 + $0x280] sm:$0xff]
    %v437 = vld [vmem:[#allocation14 + $0x288] sm:$0xff]
    %v438 = vld [vmem:[#allocation14 + $0x290] sm:$0xff]
    %v439 = vld [vmem:[#allocation14 + $0x298] sm:$0xff]
    %v440 = vld [vmem:[#allocation14 + $0x2a0] sm:$0xff]
    %v441 = vld [vmem:[#allocation14 + $0x2a8] sm:$0xff]
    %v442 = vld [vmem:[#allocation14 + $0x2b0] sm:$0xff]
    %v443 = vld [vmem:[#allocation14 + $0x2b8] sm:$0xff]
    %v444 = vld [vmem:[#allocation14 + $0x2c0] sm:$0xff]
    %v445 = vld [vmem:[#allocation14 + $0x2c8] sm:$0xff]
    %v446 = vld [vmem:[#allocation14 + $0x2d0] sm:$0xff]
    %v447 = vld [vmem:[#allocation14 + $0x2d8] sm:$0xff]
    %v448 = vld [vmem:[#allocation14 + $0x2e0] sm:$0xff]
    %v449 = vld [vmem:[#allocation14 + $0x2e8] sm:$0xff]
    %v450 = vld [vmem:[#allocation14 + $0x2f0] sm:$0xff]
    %v451 = vld [vmem:[#allocation14 + $0x2f8] sm:$0xff]
    %v452 = vld [vmem:[#allocation15] sm:$0x3f]
    %v454 = vperm.slane %v452, 0
    %v455 = vperm.slane %v452, 1
    %v456 = vperm.slane %v452, 2
    %v457 = vperm.slane %v452, 3
    %v458 = vperm.slane %v452, 4
    %v459 = vperm.slane %v452, 5
    %v562 = vunpack.c.l.b16 %v356
    %v563 = vunpack.c.h.b16 %v356
    %v564 = vunpack.c.l.b16 %v357
    %v565 = vunpack.c.h.b16 %v357
    %v566 = vunpack.c.l.b16 %v358
    %v567 = vunpack.c.h.b16 %v358
    %v568 = vunpack.c.l.b16 %v359
    %v569 = vunpack.c.h.b16 %v359
    %v570 = vunpack.c.l.b16 %v360
    %v571 = vunpack.c.h.b16 %v360
    %v572 = vunpack.c.l.b16 %v361
    %v573 = vunpack.c.h.b16 %v361
    %v574 = vunpack.c.l.b16 %v362
    %v575 = vunpack.c.h.b16 %v362
    %v576 = vunpack.c.l.b16 %v363
    %v577 = vunpack.c.h.b16 %v363
    %v578 = vunpack.c.l.b16 %v364
    %v579 = vunpack.c.h.b16 %v364
    %v580 = vunpack.c.l.b16 %v365
    %v581 = vunpack.c.h.b16 %v365
    %v582 = vunpack.c.l.b16 %v366
    %v583 = vunpack.c.h.b16 %v366
    %v584 = vunpack.c.l.b16 %v367
    %v585 = vunpack.c.h.b16 %v367
    %v586 = vunpack.c.l.b16 %v368
    %v587 = vunpack.c.h.b16 %v368
    %v588 = vunpack.c.l.b16 %v369
    %v589 = vunpack.c.h.b16 %v369
    %v590 = vunpack.c.l.b16 %v370
    %v591 = vunpack.c.h.b16 %v370
    %v592 = vunpack.c.l.b16 %v371
    %v593 = vunpack.c.h.b16 %v371
    %v594 = vunpack.c.l.b16 %v372
    %v595 = vunpack.c.h.b16 %v372
    %v596 = vunpack.c.l.b16 %v373
    %v597 = vunpack.c.h.b16 %v373
    %v598 = vunpack.c.l.b16 %v374
    %v599 = vunpack.c.h.b16 %v374
    %v600 = vunpack.c.l.b16 %v375
    %v601 = vunpack.c.h.b16 %v375
    %v602 = vunpack.c.l.b16 %v376
    %v603 = vunpack.c.h.b16 %v376
    %v604 = vunpack.c.l.b16 %v377
    %v605 = vunpack.c.h.b16 %v377
    %v606 = vunpack.c.l.b16 %v378
    %v607 = vunpack.c.h.b16 %v378
    %v608 = vunpack.c.l.b16 %v379
    %v609 = vunpack.c.h.b16 %v379
    %v610 = vunpack.c.l.b16 %v380
    %v611 = vunpack.c.h.b16 %v380
    %v612 = vunpack.c.l.b16 %v381
    %v613 = vunpack.c.h.b16 %v381
    %v614 = vunpack.c.l.b16 %v382
    %v615 = vunpack.c.h.b16 %v382
    %v616 = vunpack.c.l.b16 %v383
    %v617 = vunpack.c.h.b16 %v383
    %v618 = vunpack.c.l.b16 %v384
    %v619 = vunpack.c.h.b16 %v384
    %v620 = vunpack.c.l.b16 %v385
    %v621 = vunpack.c.h.b16 %v385
    %v622 = vunpack.c.l.b16 %v386
    %v623 = vunpack.c.h.b16 %v386
    %v624 = vunpack.c.l.b16 %v387
    %v625 = vunpack.c.h.b16 %v387
    %v626 = vunpack.c.l.b16 %v388
    %v627 = vunpack.c.h.b16 %v388
    %v628 = vunpack.c.l.b16 %v389
    %v629 = vunpack.c.h.b16 %v389
    %v630 = vunpack.c.l.b16 %v390
    %v631 = vunpack.c.h.b16 %v390
    %v632 = vunpack.c.l.b16 %v391
    %v633 = vunpack.c.h.b16 %v391
    %v634 = vunpack.c.l.b16 %v392
    %v635 = vunpack.c.h.b16 %v392
    %v636 = vunpack.c.l.b16 %v393
    %v637 = vunpack.c.h.b16 %v393
    %v638 = vunpack.c.l.b16 %v394
    %v639 = vunpack.c.h.b16 %v394
    %v640 = vunpack.c.l.b16 %v395
    %v641 = vunpack.c.h.b16 %v395
    %v642 = vunpack.c.l.b16 %v396
    %v643 = vunpack.c.h.b16 %v396
    %v644 = vunpack.c.l.b16 %v397
    %v645 = vunpack.c.h.b16 %v397
    %v646 = vunpack.c.l.b16 %v398
    %v647 = vunpack.c.h.b16 %v398
    %v648 = vunpack.c.l.b16 %v399
    %v649 = vunpack.c.h.b16 %v399
    %v650 = vunpack.c.l.b16 %v400
    %v651 = vunpack.c.h.b16 %v400
    %v652 = vunpack.c.l.b16 %v401
    %v653 = vunpack.c.h.b16 %v401
    %v654 = vunpack.c.l.b16 %v402
    %v655 = vunpack.c.h.b16 %v402
    %v656 = vunpack.c.l.b16 %v403
    %v657 = vunpack.c.h.b16 %v403
    %v658 = vunpack.c.l.b16 %v404
    %v659 = vunpack.c.h.b16 %v404
    %v660 = vunpack.c.l.b16 %v405
    %v661 = vunpack.c.h.b16 %v405
    %v662 = vunpack.c.l.b16 %v406
    %v663 = vunpack.c.h.b16 %v406
    %v664 = vunpack.c.l.b16 %v407
    %v665 = vunpack.c.h.b16 %v407
    %v666 = vunpack.c.l.b16 %v408
    %v667 = vunpack.c.h.b16 %v408
    %v668 = vunpack.c.l.b16 %v409
    %v669 = vunpack.c.h.b16 %v409
    %v670 = vunpack.c.l.b16 %v410
    %v671 = vunpack.c.h.b16 %v410
    %v672 = vunpack.c.l.b16 %v411
    %v673 = vunpack.c.h.b16 %v411
    %v674 = vunpack.c.l.b16 %v412
    %v675 = vunpack.c.h.b16 %v412
    %v676 = vunpack.c.l.b16 %v413
    %v677 = vunpack.c.h.b16 %v413
    %v678 = vunpack.c.l.b16 %v414
    %v679 = vunpack.c.h.b16 %v414
    %v680 = vunpack.c.l.b16 %v415
    %v681 = vunpack.c.h.b16 %v415
    %v682 = vunpack.c.l.b16 %v416
    %v683 = vunpack.c.h.b16 %v416
    %v684 = vunpack.c.l.b16 %v417
    %v685 = vunpack.c.h.b16 %v417
    %v686 = vunpack.c.l.b16 %v418
    %v687 = vunpack.c.h.b16 %v418
    %v688 = vunpack.c.l.b16 %v419
    %v689 = vunpack.c.h.b16 %v419
    %v690 = vunpack.c.l.b16 %v420
    %v691 = vunpack.c.h.b16 %v420
    %v692 = vunpack.c.l.b16 %v421
    %v693 = vunpack.c.h.b16 %v421
    %v694 = vunpack.c.l.b16 %v422
    %v695 = vunpack.c.h.b16 %v422
    %v696 = vunpack.c.l.b16 %v423
    %v697 = vunpack.c.h.b16 %v423
    %v698 = vunpack.c.l.b16 %v424
    %v699 = vunpack.c.h.b16 %v424
    %v700 = vunpack.c.l.b16 %v425
    %v701 = vunpack.c.h.b16 %v425
    %v702 = vunpack.c.l.b16 %v426
    %v703 = vunpack.c.h.b16 %v426
    %v704 = vunpack.c.l.b16 %v427
    %v705 = vunpack.c.h.b16 %v427
    %v706 = vunpack.c.l.b16 %v428
    %v707 = vunpack.c.h.b16 %v428
    %v708 = vunpack.c.l.b16 %v429
    %v709 = vunpack.c.h.b16 %v429
    %v710 = vunpack.c.l.b16 %v430
    %v711 = vunpack.c.h.b16 %v430
    %v712 = vunpack.c.l.b16 %v431
    %v713 = vunpack.c.h.b16 %v431
    %v714 = vunpack.c.l.b16 %v432
    %v715 = vunpack.c.h.b16 %v432
    %v716 = vunpack.c.l.b16 %v433
    %v717 = vunpack.c.h.b16 %v433
    %v718 = vunpack.c.l.b16 %v434
    %v719 = vunpack.c.h.b16 %v434
    %v720 = vunpack.c.l.b16 %v435
    %v721 = vunpack.c.h.b16 %v435
    %v722 = vunpack.c.l.b16 %v436
    %v723 = vunpack.c.h.b16 %v436
    %v724 = vunpack.c.l.b16 %v437
    %v725 = vunpack.c.h.b16 %v437
    %v726 = vunpack.c.l.b16 %v438
    %v727 = vunpack.c.h.b16 %v438
    %v728 = vunpack.c.l.b16 %v439
    %v729 = vunpack.c.h.b16 %v439
    %v730 = vunpack.c.l.b16 %v440
    %v731 = vunpack.c.h.b16 %v440
    %v732 = vunpack.c.l.b16 %v441
    %v733 = vunpack.c.h.b16 %v441
    %v734 = vunpack.c.l.b16 %v442
    %v735 = vunpack.c.h.b16 %v442
    %v736 = vunpack.c.l.b16 %v443
    %v737 = vunpack.c.h.b16 %v443
    %v738 = vunpack.c.l.b16 %v444
    %v739 = vunpack.c.h.b16 %v444
    %v740 = vunpack.c.l.b16 %v445
    %v741 = vunpack.c.h.b16 %v445
    %v742 = vunpack.c.l.b16 %v446
    %v743 = vunpack.c.h.b16 %v446
    %v744 = vunpack.c.l.b16 %v447
    %v745 = vunpack.c.h.b16 %v447
    %v746 = vunpack.c.l.b16 %v448
    %v747 = vunpack.c.h.b16 %v448
    %v748 = vunpack.c.l.b16 %v449
    %v749 = vunpack.c.h.b16 %v449
    %v750 = vunpack.c.l.b16 %v450
    %v751 = vunpack.c.h.b16 %v450
    %v752 = vunpack.c.l.b16 %v451
    %v753 = vunpack.c.h.b16 %v451
    %v754 = vpack.c.b16 %v568, %v562
    %v755 = vpack.c.b16 %v569, %v563
    %v756 = vpack.c.b16 %v570, %v564
    %v757 = vpack.c.b16 %v571, %v565
    %v758 = vpack.c.b16 %v572, %v566
    %v759 = vpack.c.b16 %v573, %v567
    %v760 = vpack.c.b16 %v580, %v574
    %v761 = vpack.c.b16 %v581, %v575
    %v762 = vpack.c.b16 %v582, %v576
    %v763 = vpack.c.b16 %v583, %v577
    %v764 = vpack.c.b16 %v584, %v578
    %v765 = vpack.c.b16 %v585, %v579
    %v766 = vpack.c.b16 %v592, %v586
    %v767 = vpack.c.b16 %v593, %v587
    %v768 = vpack.c.b16 %v594, %v588
    %v769 = vpack.c.b16 %v595, %v589
    %v770 = vpack.c.b16 %v596, %v590
    %v771 = vpack.c.b16 %v597, %v591
    %v772 = vpack.c.b16 %v604, %v598
    %v773 = vpack.c.b16 %v605, %v599
    %v774 = vpack.c.b16 %v606, %v600
    %v775 = vpack.c.b16 %v607, %v601
    %v776 = vpack.c.b16 %v608, %v602
    %v777 = vpack.c.b16 %v609, %v603
    %v778 = vpack.c.b16 %v616, %v610
    %v779 = vpack.c.b16 %v617, %v611
    %v780 = vpack.c.b16 %v618, %v612
    %v781 = vpack.c.b16 %v619, %v613
    %v782 = vpack.c.b16 %v620, %v614
    %v783 = vpack.c.b16 %v621, %v615
    %v784 = vpack.c.b16 %v628, %v622
    %v785 = vpack.c.b16 %v629, %v623
    %v786 = vpack.c.b16 %v630, %v624
    %v787 = vpack.c.b16 %v631, %v625
    %v788 = vpack.c.b16 %v632, %v626
    %v789 = vpack.c.b16 %v633, %v627
    %v790 = vpack.c.b16 %v640, %v634
    %v791 = vpack.c.b16 %v641, %v635
    %v792 = vpack.c.b16 %v642, %v636
    %v793 = vpack.c.b16 %v643, %v637
    %v794 = vpack.c.b16 %v644, %v638
    %v795 = vpack.c.b16 %v645, %v639
    %v796 = vpack.c.b16 %v652, %v646
    %v797 = vpack.c.b16 %v653, %v647
    %v798 = vpack.c.b16 %v654, %v648
    %v799 = vpack.c.b16 %v655, %v649
    %v800 = vpack.c.b16 %v656, %v650
    %v801 = vpack.c.b16 %v657, %v651
    %v802 = vpack.c.b16 %v664, %v658
    %v803 = vpack.c.b16 %v665, %v659
    %v804 = vpack.c.b16 %v666, %v660
    %v805 = vpack.c.b16 %v667, %v661
    %v806 = vpack.c.b16 %v668, %v662
    %v807 = vpack.c.b16 %v669, %v663
    %v808 = vpack.c.b16 %v676, %v670
    %v809 = vpack.c.b16 %v677, %v671
    %v810 = vpack.c.b16 %v678, %v672
    %v811 = vpack.c.b16 %v679, %v673
    %v812 = vpack.c.b16 %v680, %v674
    %v813 = vpack.c.b16 %v681, %v675
    %v814 = vpack.c.b16 %v688, %v682
    %v815 = vpack.c.b16 %v689, %v683
    %v816 = vpack.c.b16 %v690, %v684
    %v817 = vpack.c.b16 %v691, %v685
    %v818 = vpack.c.b16 %v692, %v686
    %v819 = vpack.c.b16 %v693, %v687
    %v820 = vpack.c.b16 %v700, %v694
    %v821 = vpack.c.b16 %v701, %v695
    %v822 = vpack.c.b16 %v702, %v696
    %v823 = vpack.c.b16 %v703, %v697
    %v824 = vpack.c.b16 %v704, %v698
    %v825 = vpack.c.b16 %v705, %v699
    %v826 = vpack.c.b16 %v712, %v706
    %v827 = vpack.c.b16 %v713, %v707
    %v828 = vpack.c.b16 %v714, %v708
    %v829 = vpack.c.b16 %v715, %v709
    %v830 = vpack.c.b16 %v716, %v710
    %v831 = vpack.c.b16 %v717, %v711
    %v832 = vpack.c.b16 %v724, %v718
    %v833 = vpack.c.b16 %v725, %v719
    %v834 = vpack.c.b16 %v726, %v720
    %v835 = vpack.c.b16 %v727, %v721
    %v836 = vpack.c.b16 %v728, %v722
    %v837 = vpack.c.b16 %v729, %v723
    %v838 = vpack.c.b16 %v736, %v730
    %v839 = vpack.c.b16 %v737, %v731
    %v840 = vpack.c.b16 %v738, %v732
    %v841 = vpack.c.b16 %v739, %v733
    %v842 = vpack.c.b16 %v740, %v734
    %v843 = vpack.c.b16 %v741, %v735
    %v844 = vpack.c.b16 %v748, %v742
    %v845 = vpack.c.b16 %v749, %v743
    %v846 = vpack.c.b16 %v750, %v744
    %v847 = vpack.c.b16 %v751, %v745
    %v848 = vpack.c.b16 %v752, %v746
    %v849 = vpack.c.b16 %v753, %v747
    %946 = vmatpush.bf16.msra.mxu0 %v796
    %947 = vmatpush.bf16.msra.mxu0 %v790
    %948 = vmatpush.bf16.msra.mxu0 %v784
    %949 = vmatpush.bf16.msra.mxu0 %v778
    %950 = vmatpush.bf16.msra.mxu0 %v772
    %951 = vmatpush.bf16.msra.mxu0 %v766
    %952 = vmatpush.bf16.msra.mxu0 %v760
    %953 = vmatpush.bf16.msra.mxu0 %v754
    %954 = vmatmul.bf16.gmra.mxu0 %v354
    %v955 = vpop.f32.mrf.mxu0
    %v956 = vadd.f32 %v454, %v955
    %v957 = vpop.f32.mrf.mxu0
    %958 = vdwg.mxu0
    %959 = vmatpush.bf16.msra.mxu0 %v844
    %960 = vmatpush.bf16.msra.mxu0 %v838
    %961 = vmatpush.bf16.msra.mxu0 %v832
    %962 = vmatpush.bf16.msra.mxu0 %v826
    %963 = vmatpush.bf16.msra.mxu0 %v820
    %964 = vmatpush.bf16.msra.mxu0 %v814
    %965 = vmatpush.bf16.msra.mxu0 %v808
    %966 = vmatpush.bf16.msra.mxu0 %v802
    %967 = vmatmul.bf16.gmra.mxu0 %v355
    %v968 = vpop.f32.mrf.mxu0
    %v969 = vadd.f32 %v956, %v968
    %v970 = vpop.f32.mrf.mxu0
    %971 = vdwg.mxu0
    %972 = vmatpush.bf16.msra.mxu0 %v797
    %973 = vmatpush.bf16.msra.mxu0 %v791
    %974 = vmatpush.bf16.msra.mxu0 %v785
    %975 = vmatpush.bf16.msra.mxu0 %v779
    %976 = vmatpush.bf16.msra.mxu0 %v773
    %977 = vmatpush.bf16.msra.mxu0 %v767
    %978 = vmatpush.bf16.msra.mxu0 %v761
    %979 = vmatpush.bf16.msra.mxu0 %v755
    %980 = vmatmul.bf16.gmra.mxu0 %v354
    %v981 = vpop.f32.mrf.mxu0
    %v982 = vadd.f32 %v455, %v981
    %v983 = vpop.f32.mrf.mxu0
    %984 = vdwg.mxu0
    %985 = vmatpush.bf16.msra.mxu0 %v845
    %986 = vmatpush.bf16.msra.mxu0 %v839
    %987 = vmatpush.bf16.msra.mxu0 %v833
    %988 = vmatpush.bf16.msra.mxu0 %v827
    %989 = vmatpush.bf16.msra.mxu0 %v821
    %990 = vmatpush.bf16.msra.mxu0 %v815
    %991 = vmatpush.bf16.msra.mxu0 %v809
    %992 = vmatpush.bf16.msra.mxu0 %v803
    %993 = vmatmul.bf16.gmra.mxu0 %v355
    %v994 = vpop.f32.mrf.mxu0
    %v995 = vadd.f32 %v982, %v994
    %v996 = vpop.f32.mrf.mxu0
    %997 = vdwg.mxu0
    %998 = vmatpush.bf16.msra.mxu0 %v798
    %999 = vmatpush.bf16.msra.mxu0 %v792
    %1000 = vmatpush.bf16.msra.mxu0 %v786
    %1001 = vmatpush.bf16.msra.mxu0 %v780
    %1002 = vmatpush.bf16.msra.mxu0 %v774
    %1003 = vmatpush.bf16.msra.mxu0 %v768
    %1004 = vmatpush.bf16.msra.mxu0 %v762
    %1005 = vmatpush.bf16.msra.mxu0 %v756
    %1006 = vmatmul.bf16.gmra.mxu0 %v354
    %v1007 = vpop.f32.mrf.mxu0
    %v1008 = vadd.f32 %v456, %v1007
    %v1009 = vpop.f32.mrf.mxu0
    %1010 = vdwg.mxu0
    %1011 = vmatpush.bf16.msra.mxu0 %v846
    %1012 = vmatpush.bf16.msra.mxu0 %v840
    %1013 = vmatpush.bf16.msra.mxu0 %v834
    %1014 = vmatpush.bf16.msra.mxu0 %v828
    %1015 = vmatpush.bf16.msra.mxu0 %v822
    %1016 = vmatpush.bf16.msra.mxu0 %v816
    %1017 = vmatpush.bf16.msra.mxu0 %v810
    %1018 = vmatpush.bf16.msra.mxu0 %v804
    %1019 = vmatmul.bf16.gmra.mxu0 %v355
    %v1020 = vpop.f32.mrf.mxu0
    %v1021 = vadd.f32 %v1008, %v1020
    %v1022 = vpop.f32.mrf.mxu0
    %1023 = vdwg.mxu0
    %1024 = vmatpush.bf16.msra.mxu0 %v799
    %1025 = vmatpush.bf16.msra.mxu0 %v793
    %1026 = vmatpush.bf16.msra.mxu0 %v787
    %1027 = vmatpush.bf16.msra.mxu0 %v781
    %1028 = vmatpush.bf16.msra.mxu0 %v775
    %1029 = vmatpush.bf16.msra.mxu0 %v769
    %1030 = vmatpush.bf16.msra.mxu0 %v763
    %1031 = vmatpush.bf16.msra.mxu0 %v757
    %1032 = vmatmul.bf16.gmra.mxu0 %v354
    %v1033 = vpop.f32.mrf.mxu0
    %v1034 = vadd.f32 %v457, %v1033
    %v1035 = vpop.f32.mrf.mxu0
    %1036 = vdwg.mxu0
    %1037 = vmatpush.bf16.msra.mxu0 %v847
    %1038 = vmatpush.bf16.msra.mxu0 %v841
    %1039 = vmatpush.bf16.msra.mxu0 %v835
    %1040 = vmatpush.bf16.msra.mxu0 %v829
    %1041 = vmatpush.bf16.msra.mxu0 %v823
    %1042 = vmatpush.bf16.msra.mxu0 %v817
    %1043 = vmatpush.bf16.msra.mxu0 %v811
    %1044 = vmatpush.bf16.msra.mxu0 %v805
    %1045 = vmatmul.bf16.gmra.mxu0 %v355
    %v1046 = vpop.f32.mrf.mxu0
    %v1047 = vadd.f32 %v1034, %v1046
    %v1048 = vpop.f32.mrf.mxu0
    %1049 = vdwg.mxu0
    %1050 = vmatpush.bf16.msra.mxu0 %v800
    %1051 = vmatpush.bf16.msra.mxu0 %v794
    %1052 = vmatpush.bf16.msra.mxu0 %v788
    %1053 = vmatpush.bf16.msra.mxu0 %v782
    %1054 = vmatpush.bf16.msra.mxu0 %v776
    %1055 = vmatpush.bf16.msra.mxu0 %v770
    %1056 = vmatpush.bf16.msra.mxu0 %v764
    %1057 = vmatpush.bf16.msra.mxu0 %v758
    %1058 = vmatmul.bf16.gmra.mxu0 %v354
    %v1059 = vpop.f32.mrf.mxu0
    %v1060 = vadd.f32 %v458, %v1059
    %v1061 = vpop.f32.mrf.mxu0
    %1062 = vdwg.mxu0
    %1063 = vmatpush.bf16.msra.mxu0 %v848
    %1064 = vmatpush.bf16.msra.mxu0 %v842
    %1065 = vmatpush.bf16.msra.mxu0 %v836
    %1066 = vmatpush.bf16.msra.mxu0 %v830
    %1067 = vmatpush.bf16.msra.mxu0 %v824
    %1068 = vmatpush.bf16.msra.mxu0 %v818
    %1069 = vmatpush.bf16.msra.mxu0 %v812
    %1070 = vmatpush.bf16.msra.mxu0 %v806
    %1071 = vmatmul.bf16.gmra.mxu0 %v355
    %v1072 = vpop.f32.mrf.mxu0
    %v1073 = vadd.f32 %v1060, %v1072
    %v1074 = vpop.f32.mrf.mxu0
    %1075 = vdwg.mxu0
    %1076 = vmatpush.bf16.msra.mxu0 %v801
    %1077 = vmatpush.bf16.msra.mxu0 %v795
    %1078 = vmatpush.bf16.msra.mxu0 %v789
    %1079 = vmatpush.bf16.msra.mxu0 %v783
    %1080 = vmatpush.bf16.msra.mxu0 %v777
    %1081 = vmatpush.bf16.msra.mxu0 %v771
    %1082 = vmatpush.bf16.msra.mxu0 %v765
    %1083 = vmatpush.bf16.msra.mxu0 %v759
    %1084 = vmatmul.bf16.gmra.mxu0 %v354
    %v1085 = vpop.f32.mrf.mxu0
    %v1086 = vadd.f32 %v459, %v1085
    %v1087 = vpop.f32.mrf.mxu0
    %1088 = vdwg.mxu0
    %1089 = vmatpush.bf16.msra.mxu0 %v849
    %1090 = vmatpush.bf16.msra.mxu0 %v843
    %1091 = vmatpush.bf16.msra.mxu0 %v837
    %1092 = vmatpush.bf16.msra.mxu0 %v831
    %1093 = vmatpush.bf16.msra.mxu0 %v825
    %1094 = vmatpush.bf16.msra.mxu0 %v819
    %1095 = vmatpush.bf16.msra.mxu0 %v813
    %1096 = vmatpush.bf16.msra.mxu0 %v807
    %1097 = vmatmul.bf16.gmra.mxu0 %v355
    %v1098 = vpop.f32.mrf.mxu0
    %v1099 = vadd.f32 %v1086, %v1098
    %v1100 = vpop.f32.mrf.mxu0
    %1101 = vdwg.mxu0
    %v1102 = vtanh.pop %v969
    %v1103 = vtanh.pop %v995
    %v1104 = vtanh.pop %v1021
    %v1105 = vtanh.pop %v1047
    %v1106 = vtanh.pop %v1073
    %v1107 = vtanh.pop %v1099
    %v1108 = vld [vmem:[%s11] sm:$0xff]
    %v1109 = vld [vmem:[%s11 + $0x8] sm:$0xff]
    %v1110 = vld [vmem:[%s11 + $0x10] sm:$0xff]
    %v1111 = vld [vmem:[%s11 + $0x18] sm:$0xff]
    %v1112 = vld [vmem:[%s11 + $0x20] sm:$0xff]
    %v1113 = vld [vmem:[%s11 + $0x28] sm:$0xff]
    %v1114 = vld [vmem:[%s11 + $0x30] sm:$0xff]
    %v1115 = vld [vmem:[%s11 + $0x38] sm:$0xff]
    %v1116 = vld [vmem:[%s11 + $0x40] sm:$0xff]
    %v1117 = vld [vmem:[%s11 + $0x48] sm:$0xff]
    %v1118 = vld [vmem:[%s11 + $0x50] sm:$0xff]
    %v1119 = vld [vmem:[%s11 + $0x58] sm:$0xff]
    %v1120 = vld [vmem:[%s11 + $0x60] sm:$0xff]
    %v1121 = vld [vmem:[%s11 + $0x68] sm:$0xff]
    %v1122 = vld [vmem:[%s11 + $0x70] sm:$0xff]
    %v1123 = vld [vmem:[%s11 + $0x78] sm:$0xff]
    %v1124 = vld [vmem:[%s11 + $0x80] sm:$0xff]
    %v1125 = vld [vmem:[%s11 + $0x88] sm:$0xff]
    %v1126 = vld [vmem:[%s11 + $0x90] sm:$0xff]
    %v1127 = vld [vmem:[%s11 + $0x98] sm:$0xff]
    %v1128 = vld [vmem:[%s11 + $0xa0] sm:$0xff]
    %v1129 = vld [vmem:[%s11 + $0xa8] sm:$0xff]
    %v1130 = vld [vmem:[%s11 + $0xb0] sm:$0xff]
    %v1131 = vld [vmem:[%s11 + $0xb8] sm:$0xff]
    %v1132 = vld [vmem:[%s11 + $0xc0] sm:$0xff]
    %v1133 = vld [vmem:[%s11 + $0xc8] sm:$0xff]
    %v1134 = vld [vmem:[%s11 + $0xd0] sm:$0xff]
    %v1135 = vld [vmem:[%s11 + $0xd8] sm:$0xff]
    %v1136 = vld [vmem:[%s11 + $0xe0] sm:$0xff]
    %v1137 = vld [vmem:[%s11 + $0xe8] sm:$0xff]
    %v1138 = vld [vmem:[%s11 + $0xf0] sm:$0xff]
    %v1139 = vld [vmem:[%s11 + $0xf8] sm:$0xff]
    %v1140 = vld [vmem:[%s11 + $0x100] sm:$0xff]
    %v1141 = vld [vmem:[%s11 + $0x108] sm:$0xff]
    %v1142 = vld [vmem:[%s11 + $0x110] sm:$0xff]
    %v1143 = vld [vmem:[%s11 + $0x118] sm:$0xff]
    %v1144 = vld [vmem:[%s11 + $0x120] sm:$0xff]
    %v1145 = vld [vmem:[%s11 + $0x128] sm:$0xff]
    %v1146 = vld [vmem:[%s11 + $0x130] sm:$0xff]
    %v1147 = vld [vmem:[%s11 + $0x138] sm:$0xff]
    %v1148 = vld [vmem:[%s11 + $0x140] sm:$0xff]
    %v1149 = vld [vmem:[%s11 + $0x148] sm:$0xff]
    %v1150 = vld [vmem:[%s11 + $0x150] sm:$0xff]
    %v1151 = vld [vmem:[%s11 + $0x158] sm:$0xff]
    %v1152 = vld [vmem:[%s11 + $0x160] sm:$0xff]
    %v1153 = vld [vmem:[%s11 + $0x168] sm:$0xff]
    %v1154 = vld [vmem:[%s11 + $0x170] sm:$0xff]
    %v1155 = vld [vmem:[%s11 + $0x178] sm:$0xff]
    %v1156 = vld [vmem:[%s11 + $0x180] sm:$0xff]
    %v1157 = vld [vmem:[%s11 + $0x188] sm:$0xff]
    %v1158 = vld [vmem:[%s11 + $0x190] sm:$0xff]
    %v1159 = vld [vmem:[%s11 + $0x198] sm:$0xff]
    %v1160 = vld [vmem:[%s11 + $0x1a0] sm:$0xff]
    %v1161 = vld [vmem:[%s11 + $0x1a8] sm:$0xff]
    %v1162 = vld [vmem:[%s11 + $0x1b0] sm:$0xff]
    %v1163 = vld [vmem:[%s11 + $0x1b8] sm:$0xff]
    %v1164 = vld [vmem:[%s11 + $0x1c0] sm:$0xff]
    %v1165 = vld [vmem:[%s11 + $0x1c8] sm:$0xff]
    %v1166 = vld [vmem:[%s11 + $0x1d0] sm:$0xff]
    %v1167 = vld [vmem:[%s11 + $0x1d8] sm:$0xff]
    %v1168 = vld [vmem:[%s11 + $0x1e0] sm:$0xff]
    %v1169 = vld [vmem:[%s11 + $0x1e8] sm:$0xff]
    %v1170 = vld [vmem:[%s11 + $0x1f0] sm:$0xff]
    %v1171 = vld [vmem:[%s11 + $0x1f8] sm:$0xff]
    %v1172 = vld [vmem:[%s11 + $0x200] sm:$0xff]
    %v1173 = vld [vmem:[%s11 + $0x208] sm:$0xff]
    %v1174 = vld [vmem:[%s11 + $0x210] sm:$0xff]
    %v1175 = vld [vmem:[%s11 + $0x218] sm:$0xff]
    %v1176 = vld [vmem:[%s11 + $0x220] sm:$0xff]
    %v1177 = vld [vmem:[%s11 + $0x228] sm:$0xff]
    %v1178 = vld [vmem:[%s11 + $0x230] sm:$0xff]
    %v1179 = vld [vmem:[%s11 + $0x238] sm:$0xff]
    %v1180 = vld [vmem:[%s11 + $0x240] sm:$0xff]
    %v1181 = vld [vmem:[%s11 + $0x248] sm:$0xff]
    %v1182 = vld [vmem:[%s11 + $0x250] sm:$0xff]
    %v1183 = vld [vmem:[%s11 + $0x258] sm:$0xff]
    %v1184 = vld [vmem:[%s11 + $0x260] sm:$0xff]
    %v1185 = vld [vmem:[%s11 + $0x268] sm:$0xff]
    %v1186 = vld [vmem:[%s11 + $0x270] sm:$0xff]
    %v1187 = vld [vmem:[%s11 + $0x278] sm:$0xff]
    %v1188 = vld [vmem:[%s11 + $0x280] sm:$0xff]
    %v1189 = vld [vmem:[%s11 + $0x288] sm:$0xff]
    %v1190 = vld [vmem:[%s11 + $0x290] sm:$0xff]
    %v1191 = vld [vmem:[%s11 + $0x298] sm:$0xff]
    %v1192 = vld [vmem:[%s11 + $0x2a0] sm:$0xff]
    %v1193 = vld [vmem:[%s11 + $0x2a8] sm:$0xff]
    %v1194 = vld [vmem:[%s11 + $0x2b0] sm:$0xff]
    %v1195 = vld [vmem:[%s11 + $0x2b8] sm:$0xff]
    %v1196 = vld [vmem:[%s11 + $0x2c0] sm:$0xff]
    %v1197 = vld [vmem:[%s11 + $0x2c8] sm:$0xff]
    %v1198 = vld [vmem:[%s11 + $0x2d0] sm:$0xff]
    %v1199 = vld [vmem:[%s11 + $0x2d8] sm:$0xff]
    %v1200 = vld [vmem:[%s11 + $0x2e0] sm:$0xff]
    %v1201 = vld [vmem:[%s11 + $0x2e8] sm:$0xff]
    %v1202 = vld [vmem:[%s11 + $0x2f0] sm:$0xff]
    %v1203 = vld [vmem:[%s11 + $0x2f8] sm:$0xff]
    %v1204 = vld [vmem:[%s11 + $0x300] sm:$0xff]
    %v1205 = vld [vmem:[%s11 + $0x308] sm:$0xff]
    %v1206 = vld [vmem:[%s11 + $0x310] sm:$0xff]
    %v1207 = vld [vmem:[%s11 + $0x318] sm:$0xff]
    %v1208 = vld [vmem:[%s11 + $0x320] sm:$0xff]
    %v1209 = vld [vmem:[%s11 + $0x328] sm:$0xff]
    %v1210 = vld [vmem:[%s11 + $0x330] sm:$0xff]
    %v1211 = vld [vmem:[%s11 + $0x338] sm:$0xff]
    %v1212 = vld [vmem:[%s11 + $0x340] sm:$0xff]
    %v1213 = vld [vmem:[%s11 + $0x348] sm:$0xff]
    %v1214 = vld [vmem:[%s11 + $0x350] sm:$0xff]
    %v1215 = vld [vmem:[%s11 + $0x358] sm:$0xff]
    %v1216 = vld [vmem:[%s11 + $0x360] sm:$0xff]
    %v1217 = vld [vmem:[%s11 + $0x368] sm:$0xff]
    %v1218 = vld [vmem:[%s11 + $0x370] sm:$0xff]
    %v1219 = vld [vmem:[%s11 + $0x378] sm:$0xff]
    %v1220 = vld [vmem:[%s11 + $0x380] sm:$0xff]
    %v1221 = vld [vmem:[%s11 + $0x388] sm:$0xff]
    %v1222 = vld [vmem:[%s11 + $0x390] sm:$0xff]
    %v1223 = vld [vmem:[%s11 + $0x398] sm:$0xff]
    %v1224 = vld [vmem:[%s11 + $0x3a0] sm:$0xff]
    %v1225 = vld [vmem:[%s11 + $0x3a8] sm:$0xff]
    %v1226 = vld [vmem:[%s11 + $0x3b0] sm:$0xff]
    %v1227 = vld [vmem:[%s11 + $0x3b8] sm:$0xff]
    %v1228 = vld [vmem:[%s11 + $0x3c0] sm:$0xff]
    %v1229 = vld [vmem:[%s11 + $0x3c8] sm:$0xff]
    %v1230 = vld [vmem:[%s11 + $0x3d0] sm:$0xff]
    %v1231 = vld [vmem:[%s11 + $0x3d8] sm:$0xff]
    %v1232 = vld [vmem:[%s11 + $0x3e0] sm:$0xff]
    %v1233 = vld [vmem:[%s11 + $0x3e8] sm:$0xff]
    %v1234 = vld [vmem:[%s11 + $0x3f0] sm:$0xff]
    %v1235 = vld [vmem:[%s11 + $0x3f8] sm:$0xff]
    %v1236 = vld [vmem:[%s11 + $0x400] sm:$0xff]
    %v1237 = vld [vmem:[%s11 + $0x408] sm:$0xff]
    %v1238 = vld [vmem:[%s11 + $0x410] sm:$0xff]
    %v1239 = vld [vmem:[%s11 + $0x418] sm:$0xff]
    %v1240 = vld [vmem:[%s11 + $0x420] sm:$0xff]
    %v1241 = vld [vmem:[%s11 + $0x428] sm:$0xff]
    %v1242 = vld [vmem:[%s11 + $0x430] sm:$0xff]
    %v1243 = vld [vmem:[%s11 + $0x438] sm:$0xff]
    %v1244 = vld [vmem:[%s11 + $0x440] sm:$0xff]
    %v1245 = vld [vmem:[%s11 + $0x448] sm:$0xff]
    %v1246 = vld [vmem:[%s11 + $0x450] sm:$0xff]
    %v1247 = vld [vmem:[%s11 + $0x458] sm:$0xff]
    %v1248 = vld [vmem:[%s11 + $0x460] sm:$0xff]
    %v1249 = vld [vmem:[%s11 + $0x468] sm:$0xff]
    %v1250 = vld [vmem:[%s11 + $0x470] sm:$0xff]
    %v1251 = vld [vmem:[%s11 + $0x478] sm:$0xff]
    %v1252 = vld [vmem:[%s11 + $0x480] sm:$0xff]
    %v1253 = vld [vmem:[%s11 + $0x488] sm:$0xff]
    %v1254 = vld [vmem:[%s11 + $0x490] sm:$0xff]
    %v1255 = vld [vmem:[%s11 + $0x498] sm:$0xff]
    %v1256 = vld [vmem:[%s11 + $0x4a0] sm:$0xff]
    %v1257 = vld [vmem:[%s11 + $0x4a8] sm:$0xff]
    %v1258 = vld [vmem:[%s11 + $0x4b0] sm:$0xff]
    %v1259 = vld [vmem:[%s11 + $0x4b8] sm:$0xff]
    %v1260 = vld [vmem:[%s11 + $0x4c0] sm:$0xff]
    %v1261 = vld [vmem:[%s11 + $0x4c8] sm:$0xff]
    %v1262 = vld [vmem:[%s11 + $0x4d0] sm:$0xff]
    %v1263 = vld [vmem:[%s11 + $0x4d8] sm:$0xff]
    %v1264 = vld [vmem:[%s11 + $0x4e0] sm:$0xff]
    %v1265 = vld [vmem:[%s11 + $0x4e8] sm:$0xff]
    %v1266 = vld [vmem:[%s11 + $0x4f0] sm:$0xff]
    %v1267 = vld [vmem:[%s11 + $0x4f8] sm:$0xff]
    %v1268 = vld [vmem:[%s11 + $0x500] sm:$0xff]
    %v1269 = vld [vmem:[%s11 + $0x508] sm:$0xff]
    %v1270 = vld [vmem:[%s11 + $0x510] sm:$0xff]
    %v1271 = vld [vmem:[%s11 + $0x518] sm:$0xff]
    %v1272 = vld [vmem:[%s11 + $0x520] sm:$0xff]
    %v1273 = vld [vmem:[%s11 + $0x528] sm:$0xff]
    %v1274 = vld [vmem:[%s11 + $0x530] sm:$0xff]
    %v1275 = vld [vmem:[%s11 + $0x538] sm:$0xff]
    %v1276 = vld [vmem:[%s11 + $0x540] sm:$0xff]
    %v1277 = vld [vmem:[%s11 + $0x548] sm:$0xff]
    %v1278 = vld [vmem:[%s11 + $0x550] sm:$0xff]
    %v1279 = vld [vmem:[%s11 + $0x558] sm:$0xff]
    %v1280 = vld [vmem:[%s11 + $0x560] sm:$0xff]
    %v1281 = vld [vmem:[%s11 + $0x568] sm:$0xff]
    %v1282 = vld [vmem:[%s11 + $0x570] sm:$0xff]
    %v1283 = vld [vmem:[%s11 + $0x578] sm:$0xff]
    %v1284 = vld [vmem:[%s11 + $0x580] sm:$0xff]
    %v1285 = vld [vmem:[%s11 + $0x588] sm:$0xff]
    %v1286 = vld [vmem:[%s11 + $0x590] sm:$0xff]
    %v1287 = vld [vmem:[%s11 + $0x598] sm:$0xff]
    %v1288 = vld [vmem:[%s11 + $0x5a0] sm:$0xff]
    %v1289 = vld [vmem:[%s11 + $0x5a8] sm:$0xff]
    %v1290 = vld [vmem:[%s11 + $0x5b0] sm:$0xff]
    %v1291 = vld [vmem:[%s11 + $0x5b8] sm:$0xff]
    %v1292 = vld [vmem:[%s11 + $0x5c0] sm:$0xff]
    %v1293 = vld [vmem:[%s11 + $0x5c8] sm:$0xff]
    %v1294 = vld [vmem:[%s11 + $0x5d0] sm:$0xff]
    %v1295 = vld [vmem:[%s11 + $0x5d8] sm:$0xff]
    %v1296 = vld [vmem:[%s11 + $0x5e0] sm:$0xff]
    %v1297 = vld [vmem:[%s11 + $0x5e8] sm:$0xff]
    %v1298 = vld [vmem:[%s11 + $0x5f0] sm:$0xff]
    %v1299 = vld [vmem:[%s11 + $0x5f8] sm:$0xff]
    %1300 = vmatpush.msra.mxu0 %v1138
    %1301 = vmatpush.msra.mxu0 %v1136
    %1302 = vmatpush.msra.mxu0 %v1134
    %1303 = vmatpush.msra.mxu0 %v1132
    %1304 = vmatpush.msra.mxu0 %v1130
    %1305 = vmatpush.msra.mxu0 %v1128
    %1306 = vmatpush.msra.mxu0 %v1126
    %1307 = vmatpush.msra.mxu0 %v1124
    %1308 = vmatpush.msra.mxu0 %v1122
    %1309 = vmatpush.msra.mxu0 %v1120
    %1310 = vmatpush.msra.mxu0 %v1118
    %1311 = vmatpush.msra.mxu0 %v1116
    %1312 = vmatpush.msra.mxu0 %v1114
    %1313 = vmatpush.msra.mxu0 %v1112
    %1314 = vmatpush.msra.mxu0 %v1110
    %1315 = vmatpush.msra.mxu0 %v1108
    %1316 = vmatmul.f32.gmra.mxu0 %v1102
    %v1317 = vpop.f32.mrf.mxu0
    %v1318 = vadd.f32 0.0, %v1317
    %1319 = vdwg.mxu0
    %1320 = vmatpush.msra.mxu0 %v1170
    %1321 = vmatpush.msra.mxu0 %v1168
    %1322 = vmatpush.msra.mxu0 %v1166
    %1323 = vmatpush.msra.mxu0 %v1164
    %1324 = vmatpush.msra.mxu0 %v1162
    %1325 = vmatpush.msra.mxu0 %v1160
    %1326 = vmatpush.msra.mxu0 %v1158
    %1327 = vmatpush.msra.mxu0 %v1156
    %1328 = vmatpush.msra.mxu0 %v1154
    %1329 = vmatpush.msra.mxu0 %v1152
    %1330 = vmatpush.msra.mxu0 %v1150
    %1331 = vmatpush.msra.mxu0 %v1148
    %1332 = vmatpush.msra.mxu0 %v1146
    %1333 = vmatpush.msra.mxu0 %v1144
    %1334 = vmatpush.msra.mxu0 %v1142
    %1335 = vmatpush.msra.mxu0 %v1140
    %1336 = vmatmul.f32.gmra.mxu0 %v1103
    %v1337 = vpop.f32.mrf.mxu0
    %v1338 = vadd.f32 %v1318, %v1337
    %1339 = vdwg.mxu0
    %1340 = vmatpush.msra.mxu0 %v1202
    %1341 = vmatpush.msra.mxu0 %v1200
    %1342 = vmatpush.msra.mxu0 %v1198
    %1343 = vmatpush.msra.mxu0 %v1196
    %1344 = vmatpush.msra.mxu0 %v1194
    %1345 = vmatpush.msra.mxu0 %v1192
    %1346 = vmatpush.msra.mxu0 %v1190
    %1347 = vmatpush.msra.mxu0 %v1188
    %1348 = vmatpush.msra.mxu0 %v1186
    %1349 = vmatpush.msra.mxu0 %v1184
    %1350 = vmatpush.msra.mxu0 %v1182
    %1351 = vmatpush.msra.mxu0 %v1180
    %1352 = vmatpush.msra.mxu0 %v1178
    %1353 = vmatpush.msra.mxu0 %v1176
    %1354 = vmatpush.msra.mxu0 %v1174
    %1355 = vmatpush.msra.mxu0 %v1172
    %1356 = vmatmul.f32.gmra.mxu0 %v1104
    %v1357 = vpop.f32.mrf.mxu0
    %v1358 = vadd.f32 %v1338, %v1357
    %1359 = vdwg.mxu0
    %1360 = vmatpush.msra.mxu0 %v1234
    %1361 = vmatpush.msra.mxu0 %v1232
    %1362 = vmatpush.msra.mxu0 %v1230
    %1363 = vmatpush.msra.mxu0 %v1228
    %1364 = vmatpush.msra.mxu0 %v1226
    %1365 = vmatpush.msra.mxu0 %v1224
    %1366 = vmatpush.msra.mxu0 %v1222
    %1367 = vmatpush.msra.mxu0 %v1220
    %1368 = vmatpush.msra.mxu0 %v1218
    %1369 = vmatpush.msra.mxu0 %v1216
    %1370 = vmatpush.msra.mxu0 %v1214
    %1371 = vmatpush.msra.mxu0 %v1212
    %1372 = vmatpush.msra.mxu0 %v1210
    %1373 = vmatpush.msra.mxu0 %v1208
    %1374 = vmatpush.msra.mxu0 %v1206
    %1375 = vmatpush.msra.mxu0 %v1204
    %1376 = vmatmul.f32.gmra.mxu0 %v1105
    %v1377 = vpop.f32.mrf.mxu0
    %v1378 = vadd.f32 %v1358, %v1377
    %1379 = vdwg.mxu0
    %1380 = vmatpush.msra.mxu0 %v1266
    %1381 = vmatpush.msra.mxu0 %v1264
    %1382 = vmatpush.msra.mxu0 %v1262
    %1383 = vmatpush.msra.mxu0 %v1260
    %1384 = vmatpush.msra.mxu0 %v1258
    %1385 = vmatpush.msra.mxu0 %v1256
    %1386 = vmatpush.msra.mxu0 %v1254
    %1387 = vmatpush.msra.mxu0 %v1252
    %1388 = vmatpush.msra.mxu0 %v1250
    %1389 = vmatpush.msra.mxu0 %v1248
    %1390 = vmatpush.msra.mxu0 %v1246
    %1391 = vmatpush.msra.mxu0 %v1244
    %1392 = vmatpush.msra.mxu0 %v1242
    %1393 = vmatpush.msra.mxu0 %v1240
    %1394 = vmatpush.msra.mxu0 %v1238
    %1395 = vmatpush.msra.mxu0 %v1236
    %1396 = vmatmul.f32.gmra.mxu0 %v1106
    %v1397 = vpop.f32.mrf.mxu0
    %v1398 = vadd.f32 %v1378, %v1397
    %1399 = vdwg.mxu0
    %1400 = vmatpush.msra.mxu0 %v1298
    %1401 = vmatpush.msra.mxu0 %v1296
    %1402 = vmatpush.msra.mxu0 %v1294
    %1403 = vmatpush.msra.mxu0 %v1292
    %1404 = vmatpush.msra.mxu0 %v1290
    %1405 = vmatpush.msra.mxu0 %v1288
    %1406 = vmatpush.msra.mxu0 %v1286
    %1407 = vmatpush.msra.mxu0 %v1284
    %1408 = vmatpush.msra.mxu0 %v1282
    %1409 = vmatpush.msra.mxu0 %v1280
    %1410 = vmatpush.msra.mxu0 %v1278
    %1411 = vmatpush.msra.mxu0 %v1276
    %1412 = vmatpush.msra.mxu0 %v1274
    %1413 = vmatpush.msra.mxu0 %v1272
    %1414 = vmatpush.msra.mxu0 %v1270
    %1415 = vmatpush.msra.mxu0 %v1268
    %1416 = vmatmul.f32.gmra.mxu0 %v1107
    %v1417 = vpop.f32.mrf.mxu0
    %v1418 = vadd.f32 %v1398, %v1417
    %1419 = vdwg.mxu0
    %1420 = vmatpush.msra.mxu0 %v1139
    %1421 = vmatpush.msra.mxu0 %v1137
    %1422 = vmatpush.msra.mxu0 %v1135
    %1423 = vmatpush.msra.mxu0 %v1133
    %1424 = vmatpush.msra.mxu0 %v1131
    %1425 = vmatpush.msra.mxu0 %v1129
    %1426 = vmatpush.msra.mxu0 %v1127
    %1427 = vmatpush.msra.mxu0 %v1125
    %1428 = vmatpush.msra.mxu0 %v1123
    %1429 = vmatpush.msra.mxu0 %v1121
    %1430 = vmatpush.msra.mxu0 %v1119
    %1431 = vmatpush.msra.mxu0 %v1117
    %1432 = vmatpush.msra.mxu0 %v1115
    %1433 = vmatpush.msra.mxu0 %v1113
    %1434 = vmatpush.msra.mxu0 %v1111
    %1435 = vmatpush.msra.mxu0 %v1109
    %1436 = vmatmul.f32.gmra.mxu0 %v1102
    %v1437 = vpop.f32.mrf.mxu0
    %v1438 = vadd.f32 0.0, %v1437
    %1439 = vdwg.mxu0
    %1440 = vmatpush.msra.mxu0 %v1171
    %1441 = vmatpush.msra.mxu0 %v1169
    %1442 = vmatpush.msra.mxu0 %v1167
    %1443 = vmatpush.msra.mxu0 %v1165
    %1444 = vmatpush.msra.mxu0 %v1163
    %1445 = vmatpush.msra.mxu0 %v1161
    %1446 = vmatpush.msra.mxu0 %v1159
    %1447 = vmatpush.msra.mxu0 %v1157
    %1448 = vmatpush.msra.mxu0 %v1155
    %1449 = vmatpush.msra.mxu0 %v1153
    %1450 = vmatpush.msra.mxu0 %v1151
    %1451 = vmatpush.msra.mxu0 %v1149
    %1452 = vmatpush.msra.mxu0 %v1147
    %1453 = vmatpush.msra.mxu0 %v1145
    %1454 = vmatpush.msra.mxu0 %v1143
    %1455 = vmatpush.msra.mxu0 %v1141
    %1456 = vmatmul.f32.gmra.mxu0 %v1103
    %v1457 = vpop.f32.mrf.mxu0
    %v1458 = vadd.f32 %v1438, %v1457
    %1459 = vdwg.mxu0
    %1460 = vmatpush.msra.mxu0 %v1203
    %1461 = vmatpush.msra.mxu0 %v1201
    %1462 = vmatpush.msra.mxu0 %v1199
    %1463 = vmatpush.msra.mxu0 %v1197
    %1464 = vmatpush.msra.mxu0 %v1195
    %1465 = vmatpush.msra.mxu0 %v1193
    %1466 = vmatpush.msra.mxu0 %v1191
    %1467 = vmatpush.msra.mxu0 %v1189
    %1468 = vmatpush.msra.mxu0 %v1187
    %1469 = vmatpush.msra.mxu0 %v1185
    %1470 = vmatpush.msra.mxu0 %v1183
    %1471 = vmatpush.msra.mxu0 %v1181
    %1472 = vmatpush.msra.mxu0 %v1179
    %1473 = vmatpush.msra.mxu0 %v1177
    %1474 = vmatpush.msra.mxu0 %v1175
    %1475 = vmatpush.msra.mxu0 %v1173
    %1476 = vmatmul.f32.gmra.mxu0 %v1104
    %v1477 = vpop.f32.mrf.mxu0
    %v1478 = vadd.f32 %v1458, %v1477
    %1479 = vdwg.mxu0
    %1480 = vmatpush.msra.mxu0 %v1235
    %1481 = vmatpush.msra.mxu0 %v1233
    %1482 = vmatpush.msra.mxu0 %v1231
    %1483 = vmatpush.msra.mxu0 %v1229
    %1484 = vmatpush.msra.mxu0 %v1227
    %1485 = vmatpush.msra.mxu0 %v1225
    %1486 = vmatpush.msra.mxu0 %v1223
    %1487 = vmatpush.msra.mxu0 %v1221
    %1488 = vmatpush.msra.mxu0 %v1219
    %1489 = vmatpush.msra.mxu0 %v1217
    %1490 = vmatpush.msra.mxu0 %v1215
    %1491 = vmatpush.msra.mxu0 %v1213
    %1492 = vmatpush.msra.mxu0 %v1211
    %1493 = vmatpush.msra.mxu0 %v1209
    %1494 = vmatpush.msra.mxu0 %v1207
    %1495 = vmatpush.msra.mxu0 %v1205
    %1496 = vmatmul.f32.gmra.mxu0 %v1105
    %v1497 = vpop.f32.mrf.mxu0
    %v1498 = vadd.f32 %v1478, %v1497
    %1499 = vdwg.mxu0
    %1500 = vmatpush.msra.mxu0 %v1267
    %1501 = vmatpush.msra.mxu0 %v1265
    %1502 = vmatpush.msra.mxu0 %v1263
    %1503 = vmatpush.msra.mxu0 %v1261
    %1504 = vmatpush.msra.mxu0 %v1259
    %1505 = vmatpush.msra.mxu0 %v1257
    %1506 = vmatpush.msra.mxu0 %v1255
    %1507 = vmatpush.msra.mxu0 %v1253
    %1508 = vmatpush.msra.mxu0 %v1251
    %1509 = vmatpush.msra.mxu0 %v1249
    %1510 = vmatpush.msra.mxu0 %v1247
    %1511 = vmatpush.msra.mxu0 %v1245
    %1512 = vmatpush.msra.mxu0 %v1243
    %1513 = vmatpush.msra.mxu0 %v1241
    %1514 = vmatpush.msra.mxu0 %v1239
    %1515 = vmatpush.msra.mxu0 %v1237
    %1516 = vmatmul.f32.gmra.mxu0 %v1106
    %v1517 = vpop.f32.mrf.mxu0
    %v1518 = vadd.f32 %v1498, %v1517
    %1519 = vdwg.mxu0
    %1520 = vmatpush.msra.mxu0 %v1299
    %1521 = vmatpush.msra.mxu0 %v1297
    %1522 = vmatpush.msra.mxu0 %v1295
    %1523 = vmatpush.msra.mxu0 %v1293
    %1524 = vmatpush.msra.mxu0 %v1291
    %1525 = vmatpush.msra.mxu0 %v1289
    %1526 = vmatpush.msra.mxu0 %v1287
    %1527 = vmatpush.msra.mxu0 %v1285
    %1528 = vmatpush.msra.mxu0 %v1283
    %1529 = vmatpush.msra.mxu0 %v1281
    %1530 = vmatpush.msra.mxu0 %v1279
    %1531 = vmatpush.msra.mxu0 %v1277
    %1532 = vmatpush.msra.mxu0 %v1275
    %1533 = vmatpush.msra.mxu0 %v1273
    %1534 = vmatpush.msra.mxu0 %v1271
    %1535 = vmatpush.msra.mxu0 %v1269
    %1536 = vmatmul.f32.gmra.mxu0 %v1107
    %v1537 = vpop.f32.mrf.mxu0
    %v1538 = vadd.f32 %v1518, %v1537
    %1539 = vdwg.mxu0
    %v1542 = vrot.slane %v1538, 6
    %vm1543 = vcmask 1041408
    %v1544 = vsel %vm1543, %v1418, %v1542
    %v1546 = vsub.f32 %v200, %v1544
    %v1547 = vpack.c.bf16 %v1418, %v1418
    %v1548 = vpack.c.bf16 %v1538, %v1538
    %v1549 = vld [vmem:[#allocation17] sm:$0xff]
    %v1550 = vld [vmem:[#allocation17 + $0x8] sm:$0xff]
    %v1551 = vld [vmem:[#allocation17 + $0x10] sm:$0xff]
    %v1552 = vld [vmem:[#allocation17 + $0x18] sm:$0xff]
    %v1553 = vld [vmem:[#allocation17 + $0x20] sm:$0xff]
    %v1554 = vld [vmem:[#allocation17 + $0x28] sm:$0xff]
    %v1555 = vld [vmem:[#allocation17 + $0x30] sm:$0xff]
    %v1556 = vld [vmem:[#allocation17 + $0x38] sm:$0xff]
    %v1557 = vld [vmem:[#allocation17 + $0x40] sm:$0xff]
    %v1558 = vld [vmem:[#allocation17 + $0x48] sm:$0xff]
    %v1559 = vld [vmem:[#allocation17 + $0x50] sm:$0xff]
    %v1560 = vld [vmem:[#allocation17 + $0x58] sm:$0xff]
    %v1561 = vld [vmem:[#allocation17 + $0x60] sm:$0xff]
    %v1562 = vld [vmem:[#allocation17 + $0x68] sm:$0xff]
    %v1563 = vld [vmem:[#allocation17 + $0x70] sm:$0xff]
    %v1564 = vld [vmem:[#allocation17 + $0x78] sm:$0xff]
    %v1565 = vld [vmem:[#allocation17 + $0x80] sm:$0xff]
    %v1566 = vld [vmem:[#allocation17 + $0x88] sm:$0xff]
    %v1567 = vld [vmem:[#allocation17 + $0x90] sm:$0xff]
    %v1568 = vld [vmem:[#allocation17 + $0x98] sm:$0xff]
    %v1569 = vld [vmem:[#allocation17 + $0xa0] sm:$0xff]
    %v1570 = vld [vmem:[#allocation17 + $0xa8] sm:$0xff]
    %v1571 = vld [vmem:[#allocation17 + $0xb0] sm:$0xff]
    %v1572 = vld [vmem:[#allocation17 + $0xb8] sm:$0xff]
    %v1573 = vld [vmem:[#allocation17 + $0xc0] sm:$0xff]
    %v1574 = vld [vmem:[#allocation17 + $0xc8] sm:$0xff]
    %v1575 = vld [vmem:[#allocation17 + $0xd0] sm:$0xff]
    %v1576 = vld [vmem:[#allocation17 + $0xd8] sm:$0xff]
    %v1577 = vld [vmem:[#allocation17 + $0xe0] sm:$0xff]
    %v1578 = vld [vmem:[#allocation17 + $0xe8] sm:$0xff]
    %v1579 = vld [vmem:[#allocation17 + $0xf0] sm:$0xff]
    %v1580 = vld [vmem:[#allocation17 + $0xf8] sm:$0xff]
    %v1581 = vld [vmem:[#allocation17 + $0x100] sm:$0xff]
    %v1582 = vld [vmem:[#allocation17 + $0x108] sm:$0xff]
    %v1583 = vld [vmem:[#allocation17 + $0x110] sm:$0xff]
    %v1584 = vld [vmem:[#allocation17 + $0x118] sm:$0xff]
    %v1585 = vld [vmem:[#allocation17 + $0x120] sm:$0xff]
    %v1586 = vld [vmem:[#allocation17 + $0x128] sm:$0xff]
    %v1587 = vld [vmem:[#allocation17 + $0x130] sm:$0xff]
    %v1588 = vld [vmem:[#allocation17 + $0x138] sm:$0xff]
    %v1589 = vld [vmem:[#allocation17 + $0x140] sm:$0xff]
    %v1590 = vld [vmem:[#allocation17 + $0x148] sm:$0xff]
    %v1591 = vld [vmem:[#allocation17 + $0x150] sm:$0xff]
    %v1592 = vld [vmem:[#allocation17 + $0x158] sm:$0xff]
    %v1593 = vld [vmem:[#allocation17 + $0x160] sm:$0xff]
    %v1594 = vld [vmem:[#allocation17 + $0x168] sm:$0xff]
    %v1595 = vld [vmem:[#allocation17 + $0x170] sm:$0xff]
    %v1596 = vld [vmem:[#allocation17 + $0x178] sm:$0xff]
    %v1597 = vld [vmem:[#allocation17 + $0x180] sm:$0xff]
    %v1598 = vld [vmem:[#allocation17 + $0x188] sm:$0xff]
    %v1599 = vld [vmem:[#allocation17 + $0x190] sm:$0xff]
    %v1600 = vld [vmem:[#allocation17 + $0x198] sm:$0xff]
    %v1601 = vld [vmem:[#allocation17 + $0x1a0] sm:$0xff]
    %v1602 = vld [vmem:[#allocation17 + $0x1a8] sm:$0xff]
    %v1603 = vld [vmem:[#allocation17 + $0x1b0] sm:$0xff]
    %v1604 = vld [vmem:[#allocation17 + $0x1b8] sm:$0xff]
    %v1605 = vld [vmem:[#allocation17 + $0x1c0] sm:$0xff]
    %v1606 = vld [vmem:[#allocation17 + $0x1c8] sm:$0xff]
    %v1607 = vld [vmem:[#allocation17 + $0x1d0] sm:$0xff]
    %v1608 = vld [vmem:[#allocation17 + $0x1d8] sm:$0xff]
    %v1609 = vld [vmem:[#allocation17 + $0x1e0] sm:$0xff]
    %v1610 = vld [vmem:[#allocation17 + $0x1e8] sm:$0xff]
    %v1611 = vld [vmem:[#allocation17 + $0x1f0] sm:$0xff]
    %v1612 = vld [vmem:[#allocation17 + $0x1f8] sm:$0xff]
    %v1613 = vld [vmem:[#allocation17 + $0x200] sm:$0xff]
    %v1614 = vld [vmem:[#allocation17 + $0x208] sm:$0xff]
    %v1615 = vld [vmem:[#allocation17 + $0x210] sm:$0xff]
    %v1616 = vld [vmem:[#allocation17 + $0x218] sm:$0xff]
    %v1617 = vld [vmem:[#allocation17 + $0x220] sm:$0xff]
    %v1618 = vld [vmem:[#allocation17 + $0x228] sm:$0xff]
    %v1619 = vld [vmem:[#allocation17 + $0x230] sm:$0xff]
    %v1620 = vld [vmem:[#allocation17 + $0x238] sm:$0xff]
    %1622 = vst [vmem:[#allocation1] ss:$4 sm:$0xff] %v1546
    %v1623 = vld.sshfl [vmem:[#allocation1] sm:$0xff pattern:$0x73625140]
    %v1624 = vld.sshfl [vmem:[#allocation1 + $0x8] sm:$0xff pattern:$0x73625140]
    %v1627 = vpack.c.bf16 %v1623, %v1623
    %v1628 = vpack.c.bf16 %v1624, %v1624
    %v1629 = vld [vmem:[#allocation18] sm:$0xff]
    %v1630 = vld [vmem:[#allocation18 + $0x8] sm:$0xff]
    %v1631 = vld [vmem:[#allocation18 + $0x10] sm:$0xff]
    %v1632 = vld [vmem:[#allocation18 + $0x18] sm:$0xff]
    %v1633 = vld [vmem:[#allocation18 + $0x20] sm:$0xff]
    %v1634 = vld [vmem:[#allocation18 + $0x28] sm:$0xff]
    %v1635 = vld [vmem:[#allocation18 + $0x30] sm:$0xff]
    %v1636 = vld [vmem:[#allocation18 + $0x38] sm:$0xff]
    %v1637 = vld [vmem:[#allocation18 + $0x40] sm:$0xff]
    %v1638 = vld [vmem:[#allocation18 + $0x48] sm:$0xff]
    %v1639 = vld [vmem:[#allocation18 + $0x50] sm:$0xff]
    %v1640 = vld [vmem:[#allocation18 + $0x58] sm:$0xff]
    %v1641 = vld [vmem:[#allocation18 + $0x60] sm:$0xff]
    %v1642 = vld [vmem:[#allocation18 + $0x68] sm:$0xff]
    %v1643 = vld [vmem:[#allocation18 + $0x70] sm:$0xff]
    %v1644 = vld [vmem:[#allocation18 + $0x78] sm:$0xff]
    %v1645 = vld [vmem:[#allocation18 + $0x80] sm:$0xff]
    %v1646 = vld [vmem:[#allocation18 + $0x88] sm:$0xff]
    %v1647 = vld [vmem:[#allocation18 + $0x90] sm:$0xff]
    %v1648 = vld [vmem:[#allocation18 + $0x98] sm:$0xff]
    %v1649 = vld [vmem:[#allocation18 + $0xa0] sm:$0xff]
    %v1650 = vld [vmem:[#allocation18 + $0xa8] sm:$0xff]
    %v1651 = vld [vmem:[#allocation18 + $0xb0] sm:$0xff]
    %v1652 = vld [vmem:[#allocation18 + $0xb8] sm:$0xff]
    %v1653 = vld [vmem:[#allocation18 + $0xc0] sm:$0xff]
    %v1654 = vld [vmem:[#allocation18 + $0xc8] sm:$0xff]
    %v1655 = vld [vmem:[#allocation18 + $0xd0] sm:$0xff]
    %v1656 = vld [vmem:[#allocation18 + $0xd8] sm:$0xff]
    %v1657 = vld [vmem:[#allocation18 + $0xe0] sm:$0xff]
    %v1658 = vld [vmem:[#allocation18 + $0xe8] sm:$0xff]
    %v1659 = vld [vmem:[#allocation18 + $0xf0] sm:$0xff]
    %v1660 = vld [vmem:[#allocation18 + $0xf8] sm:$0xff]
    %v1661 = vld [vmem:[#allocation18 + $0x100] sm:$0xff]
    %v1662 = vld [vmem:[#allocation18 + $0x108] sm:$0xff]
    %v1663 = vld [vmem:[#allocation18 + $0x110] sm:$0xff]
    %v1664 = vld [vmem:[#allocation18 + $0x118] sm:$0xff]
    %v1665 = vld [vmem:[#allocation18 + $0x120] sm:$0xff]
    %v1666 = vld [vmem:[#allocation18 + $0x128] sm:$0xff]
    %v1667 = vld [vmem:[#allocation18 + $0x130] sm:$0xff]
    %v1668 = vld [vmem:[#allocation18 + $0x138] sm:$0xff]
    %v1669 = vld [vmem:[#allocation18 + $0x140] sm:$0xff]
    %v1670 = vld [vmem:[#allocation18 + $0x148] sm:$0xff]
    %v1671 = vld [vmem:[#allocation18 + $0x150] sm:$0xff]
    %v1672 = vld [vmem:[#allocation18 + $0x158] sm:$0xff]
    %v1673 = vld [vmem:[#allocation18 + $0x160] sm:$0xff]
    %v1674 = vld [vmem:[#allocation18 + $0x168] sm:$0xff]
    %v1675 = vld [vmem:[#allocation18 + $0x170] sm:$0xff]
    %v1676 = vld [vmem:[#allocation18 + $0x178] sm:$0xff]
    %v1677 = vld [vmem:[#allocation18 + $0x180] sm:$0xff]
    %v1678 = vld [vmem:[#allocation18 + $0x188] sm:$0xff]
    %v1679 = vld [vmem:[#allocation18 + $0x190] sm:$0xff]
    %v1680 = vld [vmem:[#allocation18 + $0x198] sm:$0xff]
    %v1681 = vld [vmem:[#allocation18 + $0x1a0] sm:$0xff]
    %v1682 = vld [vmem:[#allocation18 + $0x1a8] sm:$0xff]
    %v1683 = vld [vmem:[#allocation18 + $0x1b0] sm:$0xff]
    %v1684 = vld [vmem:[#allocation18 + $0x1b8] sm:$0xff]
    %v1685 = vld [vmem:[#allocation18 + $0x1c0] sm:$0xff]
    %v1686 = vld [vmem:[#allocation18 + $0x1c8] sm:$0xff]
    %v1687 = vld [vmem:[#allocation18 + $0x1d0] sm:$0xff]
    %v1688 = vld [vmem:[#allocation18 + $0x1d8] sm:$0xff]
    %v1689 = vld [vmem:[#allocation18 + $0x1e0] sm:$0xff]
    %v1690 = vld [vmem:[#allocation18 + $0x1e8] sm:$0xff]
    %v1691 = vld [vmem:[#allocation18 + $0x1f0] sm:$0xff]
    %v1692 = vld [vmem:[#allocation18 + $0x1f8] sm:$0xff]
    %v1693 = vld [vmem:[#allocation18 + $0x200] sm:$0xff]
    %v1694 = vld [vmem:[#allocation18 + $0x208] sm:$0xff]
    %v1695 = vld [vmem:[#allocation18 + $0x210] sm:$0xff]
    %v1696 = vld [vmem:[#allocation18 + $0x218] sm:$0xff]
    %v1697 = vld [vmem:[#allocation18 + $0x220] sm:$0xff]
    %v1698 = vld [vmem:[#allocation18 + $0x228] sm:$0xff]
    %v1699 = vld [vmem:[#allocation18 + $0x230] sm:$0xff]
    %v1700 = vld [vmem:[#allocation18 + $0x238] sm:$0xff]
    %v1773 = vunpack.c.l.b16 %v1629
    %v1774 = vunpack.c.h.b16 %v1629
    %v1775 = vunpack.c.l.b16 %v1630
    %v1776 = vunpack.c.h.b16 %v1630
    %v1777 = vunpack.c.l.b16 %v1631
    %v1778 = vunpack.c.h.b16 %v1631
    %v1779 = vunpack.c.l.b16 %v1632
    %v1780 = vunpack.c.h.b16 %v1632
    %v1781 = vunpack.c.l.b16 %v1633
    %v1782 = vunpack.c.h.b16 %v1633
    %v1783 = vunpack.c.l.b16 %v1634
    %v1784 = vunpack.c.h.b16 %v1634
    %v1785 = vunpack.c.l.b16 %v1635
    %v1786 = vunpack.c.h.b16 %v1635
    %v1787 = vunpack.c.l.b16 %v1636
    %v1788 = vunpack.c.h.b16 %v1636
    %v1789 = vunpack.c.l.b16 %v1637
    %v1790 = vunpack.c.h.b16 %v1637
    %v1791 = vunpack.c.l.b16 %v1638
    %v1792 = vunpack.c.h.b16 %v1638
    %v1793 = vunpack.c.l.b16 %v1639
    %v1794 = vunpack.c.h.b16 %v1639
    %v1795 = vunpack.c.l.b16 %v1640
    %v1796 = vunpack.c.h.b16 %v1640
    %v1797 = vunpack.c.l.b16 %v1641
    %v1798 = vunpack.c.h.b16 %v1641
    %v1799 = vunpack.c.l.b16 %v1642
    %v1800 = vunpack.c.h.b16 %v1642
    %v1801 = vunpack.c.l.b16 %v1643
    %v1802 = vunpack.c.h.b16 %v1643
    %v1803 = vunpack.c.l.b16 %v1644
    %v1804 = vunpack.c.h.b16 %v1644
    %v1805 = vunpack.c.l.b16 %v1645
    %v1806 = vunpack.c.h.b16 %v1645
    %v1807 = vunpack.c.l.b16 %v1646
    %v1808 = vunpack.c.h.b16 %v1646
    %v1809 = vunpack.c.l.b16 %v1647
    %v1810 = vunpack.c.h.b16 %v1647
    %v1811 = vunpack.c.l.b16 %v1648
    %v1812 = vunpack.c.h.b16 %v1648
    %v1813 = vunpack.c.l.b16 %v1649
    %v1814 = vunpack.c.h.b16 %v1649
    %v1815 = vunpack.c.l.b16 %v1650
    %v1816 = vunpack.c.h.b16 %v1650
    %v1817 = vunpack.c.l.b16 %v1651
    %v1818 = vunpack.c.h.b16 %v1651
    %v1819 = vunpack.c.l.b16 %v1652
    %v1820 = vunpack.c.h.b16 %v1652
    %v1821 = vunpack.c.l.b16 %v1653
    %v1822 = vunpack.c.h.b16 %v1653
    %v1823 = vunpack.c.l.b16 %v1654
    %v1824 = vunpack.c.h.b16 %v1654
    %v1825 = vunpack.c.l.b16 %v1655
    %v1826 = vunpack.c.h.b16 %v1655
    %v1827 = vunpack.c.l.b16 %v1656
    %v1828 = vunpack.c.h.b16 %v1656
    %v1829 = vunpack.c.l.b16 %v1657
    %v1830 = vunpack.c.h.b16 %v1657
    %v1831 = vunpack.c.l.b16 %v1658
    %v1832 = vunpack.c.h.b16 %v1658
    %v1833 = vunpack.c.l.b16 %v1659
    %v1834 = vunpack.c.h.b16 %v1659
    %v1835 = vunpack.c.l.b16 %v1660
    %v1836 = vunpack.c.h.b16 %v1660
    %v1837 = vunpack.c.l.b16 %v1661
    %v1838 = vunpack.c.h.b16 %v1661
    %v1839 = vunpack.c.l.b16 %v1662
    %v1840 = vunpack.c.h.b16 %v1662
    %v1841 = vunpack.c.l.b16 %v1663
    %v1842 = vunpack.c.h.b16 %v1663
    %v1843 = vunpack.c.l.b16 %v1664
    %v1844 = vunpack.c.h.b16 %v1664
    %v1845 = vunpack.c.l.b16 %v1665
    %v1846 = vunpack.c.h.b16 %v1665
    %v1847 = vunpack.c.l.b16 %v1666
    %v1848 = vunpack.c.h.b16 %v1666
    %v1849 = vunpack.c.l.b16 %v1667
    %v1850 = vunpack.c.h.b16 %v1667
    %v1851 = vunpack.c.l.b16 %v1668
    %v1852 = vunpack.c.h.b16 %v1668
    %v1853 = vunpack.c.l.b16 %v1669
    %v1854 = vunpack.c.h.b16 %v1669
    %v1855 = vunpack.c.l.b16 %v1670
    %v1856 = vunpack.c.h.b16 %v1670
    %v1857 = vunpack.c.l.b16 %v1671
    %v1858 = vunpack.c.h.b16 %v1671
    %v1859 = vunpack.c.l.b16 %v1672
    %v1860 = vunpack.c.h.b16 %v1672
    %v1861 = vunpack.c.l.b16 %v1673
    %v1862 = vunpack.c.h.b16 %v1673
    %v1863 = vunpack.c.l.b16 %v1674
    %v1864 = vunpack.c.h.b16 %v1674
    %v1865 = vunpack.c.l.b16 %v1675
    %v1866 = vunpack.c.h.b16 %v1675
    %v1867 = vunpack.c.l.b16 %v1676
    %v1868 = vunpack.c.h.b16 %v1676
    %v1869 = vunpack.c.l.b16 %v1677
    %v1870 = vunpack.c.h.b16 %v1677
    %v1871 = vunpack.c.l.b16 %v1678
    %v1872 = vunpack.c.h.b16 %v1678
    %v1873 = vunpack.c.l.b16 %v1679
    %v1874 = vunpack.c.h.b16 %v1679
    %v1875 = vunpack.c.l.b16 %v1680
    %v1876 = vunpack.c.h.b16 %v1680
    %v1877 = vunpack.c.l.b16 %v1681
    %v1878 = vunpack.c.h.b16 %v1681
    %v1879 = vunpack.c.l.b16 %v1682
    %v1880 = vunpack.c.h.b16 %v1682
    %v1881 = vunpack.c.l.b16 %v1683
    %v1882 = vunpack.c.h.b16 %v1683
    %v1883 = vunpack.c.l.b16 %v1684
    %v1884 = vunpack.c.h.b16 %v1684
    %v1885 = vunpack.c.l.b16 %v1685
    %v1886 = vunpack.c.h.b16 %v1685
    %v1887 = vunpack.c.l.b16 %v1686
    %v1888 = vunpack.c.h.b16 %v1686
    %v1889 = vunpack.c.l.b16 %v1687
    %v1890 = vunpack.c.h.b16 %v1687
    %v1891 = vunpack.c.l.b16 %v1688
    %v1892 = vunpack.c.h.b16 %v1688
    %v1893 = vunpack.c.l.b16 %v1689
    %v1894 = vunpack.c.h.b16 %v1689
    %v1895 = vunpack.c.l.b16 %v1690
    %v1896 = vunpack.c.h.b16 %v1690
    %v1897 = vunpack.c.l.b16 %v1691
    %v1898 = vunpack.c.h.b16 %v1691
    %v1899 = vunpack.c.l.b16 %v1692
    %v1900 = vunpack.c.h.b16 %v1692
    %v1901 = vunpack.c.l.b16 %v1693
    %v1902 = vunpack.c.h.b16 %v1693
    %v1903 = vunpack.c.l.b16 %v1694
    %v1904 = vunpack.c.h.b16 %v1694
    %v1905 = vunpack.c.l.b16 %v1695
    %v1906 = vunpack.c.h.b16 %v1695
    %v1907 = vunpack.c.l.b16 %v1696
    %v1908 = vunpack.c.h.b16 %v1696
    %v1909 = vunpack.c.l.b16 %v1697
    %v1910 = vunpack.c.h.b16 %v1697
    %v1911 = vunpack.c.l.b16 %v1698
    %v1912 = vunpack.c.h.b16 %v1698
    %v1913 = vunpack.c.l.b16 %v1699
    %v1914 = vunpack.c.h.b16 %v1699
    %v1915 = vunpack.c.l.b16 %v1700
    %v1916 = vunpack.c.h.b16 %v1700
    %v1917 = vpack.c.b16 %v1779, %v1773
    %v1918 = vpack.c.b16 %v1780, %v1774
    %v1919 = vpack.c.b16 %v1781, %v1775
    %v1920 = vpack.c.b16 %v1782, %v1776
    %v1921 = vpack.c.b16 %v1783, %v1777
    %v1922 = vpack.c.b16 %v1784, %v1778
    %v1923 = vpack.c.b16 %v1791, %v1785
    %v1924 = vpack.c.b16 %v1792, %v1786
    %v1925 = vpack.c.b16 %v1793, %v1787
    %v1926 = vpack.c.b16 %v1794, %v1788
    %v1927 = vpack.c.b16 %v1795, %v1789
    %v1928 = vpack.c.b16 %v1796, %v1790
    %v1929 = vpack.c.b16 %v1803, %v1797
    %v1930 = vpack.c.b16 %v1804, %v1798
    %v1931 = vpack.c.b16 %v1805, %v1799
    %v1932 = vpack.c.b16 %v1806, %v1800
    %v1933 = vpack.c.b16 %v1807, %v1801
    %v1934 = vpack.c.b16 %v1808, %v1802
    %v1935 = vpack.c.b16 %v1815, %v1809
    %v1936 = vpack.c.b16 %v1816, %v1810
    %v1937 = vpack.c.b16 %v1817, %v1811
    %v1938 = vpack.c.b16 %v1818, %v1812
    %v1939 = vpack.c.b16 %v1819, %v1813
    %v1940 = vpack.c.b16 %v1820, %v1814
    %v1941 = vpack.c.b16 %v1827, %v1821
    %v1942 = vpack.c.b16 %v1828, %v1822
    %v1943 = vpack.c.b16 %v1829, %v1823
    %v1944 = vpack.c.b16 %v1830, %v1824
    %v1945 = vpack.c.b16 %v1831, %v1825
    %v1946 = vpack.c.b16 %v1832, %v1826
    %v1947 = vpack.c.b16 %v1839, %v1833
    %v1948 = vpack.c.b16 %v1840, %v1834
    %v1949 = vpack.c.b16 %v1841, %v1835
    %v1950 = vpack.c.b16 %v1842, %v1836
    %v1951 = vpack.c.b16 %v1843, %v1837
    %v1952 = vpack.c.b16 %v1844, %v1838
    %v1953 = vpack.c.b16 %v1851, %v1845
    %v1954 = vpack.c.b16 %v1852, %v1846
    %v1955 = vpack.c.b16 %v1853, %v1847
    %v1956 = vpack.c.b16 %v1854, %v1848
    %v1957 = vpack.c.b16 %v1855, %v1849
    %v1958 = vpack.c.b16 %v1856, %v1850
    %v1959 = vpack.c.b16 %v1863, %v1857
    %v1960 = vpack.c.b16 %v1864, %v1858
    %v1961 = vpack.c.b16 %v1865, %v1859
    %v1962 = vpack.c.b16 %v1866, %v1860
    %v1963 = vpack.c.b16 %v1867, %v1861
    %v1964 = vpack.c.b16 %v1868, %v1862
    %v1965 = vpack.c.b16 %v1875, %v1869
    %v1966 = vpack.c.b16 %v1876, %v1870
    %v1967 = vpack.c.b16 %v1877, %v1871
    %v1968 = vpack.c.b16 %v1878, %v1872
    %v1969 = vpack.c.b16 %v1879, %v1873
    %v1970 = vpack.c.b16 %v1880, %v1874
    %v1971 = vpack.c.b16 %v1887, %v1881
    %v1972 = vpack.c.b16 %v1888, %v1882
    %v1973 = vpack.c.b16 %v1889, %v1883
    %v1974 = vpack.c.b16 %v1890, %v1884
    %v1975 = vpack.c.b16 %v1891, %v1885
    %v1976 = vpack.c.b16 %v1892, %v1886
    %v1977 = vpack.c.b16 %v1899, %v1893
    %v1978 = vpack.c.b16 %v1900, %v1894
    %v1979 = vpack.c.b16 %v1901, %v1895
    %v1980 = vpack.c.b16 %v1902, %v1896
    %v1981 = vpack.c.b16 %v1903, %v1897
    %v1982 = vpack.c.b16 %v1904, %v1898
    %v1983 = vpack.c.b16 %v1911, %v1905
    %v1984 = vpack.c.b16 %v1912, %v1906
    %v1985 = vpack.c.b16 %v1913, %v1907
    %v1986 = vpack.c.b16 %v1914, %v1908
    %v1987 = vpack.c.b16 %v1915, %v1909
    %v1988 = vpack.c.b16 %v1916, %v1910
    %v2062 = vsel %vm309, %v1628, 0
    %2064 = vmatpush.bf16.msra.mxu0 %v1959
    %2065 = vmatpush.bf16.msra.mxu0 %v1953
    %2066 = vmatpush.bf16.msra.mxu0 %v1947
    %2067 = vmatpush.bf16.msra.mxu0 %v1941
    %2068 = vmatpush.bf16.msra.mxu0 %v1935
    %2069 = vmatpush.bf16.msra.mxu0 %v1929
    %2070 = vmatpush.bf16.msra.mxu0 %v1923
    %2071 = vmatpush.bf16.msra.mxu0 %v1917
    %2072 = vmatmul.bf16.gmra.mxu0 %v1627
    %v2073 = vpop.f32.mrf.mxu0
    %v2074 = vadd.f32 0.0, %v2073
    %v2075 = vpop.f32.mrf.mxu0
    %2076 = vdwg.mxu0
    %2077 = vmatpush.bf16.msra.mxu0 0
    %2078 = vmatpush.bf16.msra.mxu0 0
    %2079 = vmatpush.bf16.msra.mxu0 0
    %2080 = vmatpush.bf16.msra.mxu0 0
    %2081 = vmatpush.bf16.msra.mxu0 %v1983
    %2082 = vmatpush.bf16.msra.mxu0 %v1977
    %2083 = vmatpush.bf16.msra.mxu0 %v1971
    %2084 = vmatpush.bf16.msra.mxu0 %v1965
    %2085 = vmatmul.bf16.gmra.mxu0 %v2062
    %v2086 = vpop.f32.mrf.mxu0
    %v2087 = vadd.f32 %v2074, %v2086
    %v2088 = vpop.f32.mrf.mxu0
    %2089 = vdwg.mxu0
    %2090 = vmatpush.bf16.msra.mxu0 %v1960
    %2091 = vmatpush.bf16.msra.mxu0 %v1954
    %2092 = vmatpush.bf16.msra.mxu0 %v1948
    %2093 = vmatpush.bf16.msra.mxu0 %v1942
    %2094 = vmatpush.bf16.msra.mxu0 %v1936
    %2095 = vmatpush.bf16.msra.mxu0 %v1930
    %2096 = vmatpush.bf16.msra.mxu0 %v1924
    %2097 = vmatpush.bf16.msra.mxu0 %v1918
    %2098 = vmatmul.bf16.gmra.mxu0 %v1627
    %v2099 = vpop.f32.mrf.mxu0
    %v2100 = vadd.f32 0.0, %v2099
    %v2101 = vpop.f32.mrf.mxu0
    %2102 = vdwg.mxu0
    %2103 = vmatpush.bf16.msra.mxu0 0
    %2104 = vmatpush.bf16.msra.mxu0 0
    %2105 = vmatpush.bf16.msra.mxu0 0
    %2106 = vmatpush.bf16.msra.mxu0 0
    %2107 = vmatpush.bf16.msra.mxu0 %v1984
    %2108 = vmatpush.bf16.msra.mxu0 %v1978
    %2109 = vmatpush.bf16.msra.mxu0 %v1972
    %2110 = vmatpush.bf16.msra.mxu0 %v1966
    %2111 = vmatmul.bf16.gmra.mxu0 %v2062
    %v2112 = vpop.f32.mrf.mxu0
    %v2113 = vadd.f32 %v2100, %v2112
    %v2114 = vpop.f32.mrf.mxu0
    %2115 = vdwg.mxu0
    %2116 = vmatpush.bf16.msra.mxu0 %v1961
    %2117 = vmatpush.bf16.msra.mxu0 %v1955
    %2118 = vmatpush.bf16.msra.mxu0 %v1949
    %2119 = vmatpush.bf16.msra.mxu0 %v1943
    %2120 = vmatpush.bf16.msra.mxu0 %v1937
    %2121 = vmatpush.bf16.msra.mxu0 %v1931
    %2122 = vmatpush.bf16.msra.mxu0 %v1925
    %2123 = vmatpush.bf16.msra.mxu0 %v1919
    %2124 = vmatmul.bf16.gmra.mxu0 %v1627
    %v2125 = vpop.f32.mrf.mxu0
    %v2126 = vadd.f32 0.0, %v2125
    %v2127 = vpop.f32.mrf.mxu0
    %2128 = vdwg.mxu0
    %2129 = vmatpush.bf16.msra.mxu0 0
    %2130 = vmatpush.bf16.msra.mxu0 0
    %2131 = vmatpush.bf16.msra.mxu0 0
    %2132 = vmatpush.bf16.msra.mxu0 0
    %2133 = vmatpush.bf16.msra.mxu0 %v1985
    %2134 = vmatpush.bf16.msra.mxu0 %v1979
    %2135 = vmatpush.bf16.msra.mxu0 %v1973
    %2136 = vmatpush.bf16.msra.mxu0 %v1967
    %2137 = vmatmul.bf16.gmra.mxu0 %v2062
    %v2138 = vpop.f32.mrf.mxu0
    %v2139 = vadd.f32 %v2126, %v2138
    %v2140 = vpop.f32.mrf.mxu0
    %2141 = vdwg.mxu0
    %2142 = vmatpush.bf16.msra.mxu0 %v1962
    %2143 = vmatpush.bf16.msra.mxu0 %v1956
    %2144 = vmatpush.bf16.msra.mxu0 %v1950
    %2145 = vmatpush.bf16.msra.mxu0 %v1944
    %2146 = vmatpush.bf16.msra.mxu0 %v1938
    %2147 = vmatpush.bf16.msra.mxu0 %v1932
    %2148 = vmatpush.bf16.msra.mxu0 %v1926
    %2149 = vmatpush.bf16.msra.mxu0 %v1920
    %2150 = vmatmul.bf16.gmra.mxu0 %v1627
    %v2151 = vpop.f32.mrf.mxu0
    %v2152 = vadd.f32 0.0, %v2151
    %v2153 = vpop.f32.mrf.mxu0
    %2154 = vdwg.mxu0
    %2155 = vmatpush.bf16.msra.mxu0 0
    %2156 = vmatpush.bf16.msra.mxu0 0
    %2157 = vmatpush.bf16.msra.mxu0 0
    %2158 = vmatpush.bf16.msra.mxu0 0
    %2159 = vmatpush.bf16.msra.mxu0 %v1986
    %2160 = vmatpush.bf16.msra.mxu0 %v1980
    %2161 = vmatpush.bf16.msra.mxu0 %v1974
    %2162 = vmatpush.bf16.msra.mxu0 %v1968
    %2163 = vmatmul.bf16.gmra.mxu0 %v2062
    %v2164 = vpop.f32.mrf.mxu0
    %v2165 = vadd.f32 %v2152, %v2164
    %v2166 = vpop.f32.mrf.mxu0
    %2167 = vdwg.mxu0
    %2168 = vmatpush.bf16.msra.mxu0 %v1963
    %2169 = vmatpush.bf16.msra.mxu0 %v1957
    %2170 = vmatpush.bf16.msra.mxu0 %v1951
    %2171 = vmatpush.bf16.msra.mxu0 %v1945
    %2172 = vmatpush.bf16.msra.mxu0 %v1939
    %2173 = vmatpush.bf16.msra.mxu0 %v1933
    %2174 = vmatpush.bf16.msra.mxu0 %v1927
    %2175 = vmatpush.bf16.msra.mxu0 %v1921
    %2176 = vmatmul.bf16.gmra.mxu0 %v1627
    %v2177 = vpop.f32.mrf.mxu0
    %v2178 = vadd.f32 0.0, %v2177
    %v2179 = vpop.f32.mrf.mxu0
    %2180 = vdwg.mxu0
    %2181 = vmatpush.bf16.msra.mxu0 0
    %2182 = vmatpush.bf16.msra.mxu0 0
    %2183 = vmatpush.bf16.msra.mxu0 0
    %2184 = vmatpush.bf16.msra.mxu0 0
    %2185 = vmatpush.bf16.msra.mxu0 %v1987
    %2186 = vmatpush.bf16.msra.mxu0 %v1981
    %2187 = vmatpush.bf16.msra.mxu0 %v1975
    %2188 = vmatpush.bf16.msra.mxu0 %v1969
    %2189 = vmatmul.bf16.gmra.mxu0 %v2062
    %v2190 = vpop.f32.mrf.mxu0
    %v2191 = vadd.f32 %v2178, %v2190
    %v2192 = vpop.f32.mrf.mxu0
    %2193 = vdwg.mxu0
    %2194 = vmatpush.bf16.msra.mxu0 %v1964
    %2195 = vmatpush.bf16.msra.mxu0 %v1958
    %2196 = vmatpush.bf16.msra.mxu0 %v1952
    %2197 = vmatpush.bf16.msra.mxu0 %v1946
    %2198 = vmatpush.bf16.msra.mxu0 %v1940
    %2199 = vmatpush.bf16.msra.mxu0 %v1934
    %2200 = vmatpush.bf16.msra.mxu0 %v1928
    %2201 = vmatpush.bf16.msra.mxu0 %v1922
    %2202 = vmatmul.bf16.gmra.mxu0 %v1627
    %v2203 = vpop.f32.mrf.mxu0
    %v2204 = vadd.f32 0.0, %v2203
    %v2205 = vpop.f32.mrf.mxu0
    %2206 = vdwg.mxu0
    %2207 = vmatpush.bf16.msra.mxu0 0
    %2208 = vmatpush.bf16.msra.mxu0 0
    %2209 = vmatpush.bf16.msra.mxu0 0
    %2210 = vmatpush.bf16.msra.mxu0 0
    %2211 = vmatpush.bf16.msra.mxu0 %v1988
    %2212 = vmatpush.bf16.msra.mxu0 %v1982
    %2213 = vmatpush.bf16.msra.mxu0 %v1976
    %2214 = vmatpush.bf16.msra.mxu0 %v1970
    %2215 = vmatmul.bf16.gmra.mxu0 %v2062
    %v2216 = vpop.f32.mrf.mxu0
    %v2217 = vadd.f32 %v2204, %v2216
    %v2218 = vpop.f32.mrf.mxu0
    %2219 = vdwg.mxu0
    %v2292 = vunpack.c.l.b16 %v1549
    %v2293 = vunpack.c.h.b16 %v1549
    %v2294 = vunpack.c.l.b16 %v1550
    %v2295 = vunpack.c.h.b16 %v1550
    %v2296 = vunpack.c.l.b16 %v1551
    %v2297 = vunpack.c.h.b16 %v1551
    %v2298 = vunpack.c.l.b16 %v1552
    %v2299 = vunpack.c.h.b16 %v1552
    %v2300 = vunpack.c.l.b16 %v1553
    %v2301 = vunpack.c.h.b16 %v1553
    %v2302 = vunpack.c.l.b16 %v1554
    %v2303 = vunpack.c.h.b16 %v1554
    %v2304 = vunpack.c.l.b16 %v1555
    %v2305 = vunpack.c.h.b16 %v1555
    %v2306 = vunpack.c.l.b16 %v1556
    %v2307 = vunpack.c.h.b16 %v1556
    %v2308 = vunpack.c.l.b16 %v1557
    %v2309 = vunpack.c.h.b16 %v1557
    %v2310 = vunpack.c.l.b16 %v1558
    %v2311 = vunpack.c.h.b16 %v1558
    %v2312 = vunpack.c.l.b16 %v1559
    %v2313 = vunpack.c.h.b16 %v1559
    %v2314 = vunpack.c.l.b16 %v1560
    %v2315 = vunpack.c.h.b16 %v1560
    %v2316 = vunpack.c.l.b16 %v1561
    %v2317 = vunpack.c.h.b16 %v1561
    %v2318 = vunpack.c.l.b16 %v1562
    %v2319 = vunpack.c.h.b16 %v1562
    %v2320 = vunpack.c.l.b16 %v1563
    %v2321 = vunpack.c.h.b16 %v1563
    %v2322 = vunpack.c.l.b16 %v1564
    %v2323 = vunpack.c.h.b16 %v1564
    %v2324 = vunpack.c.l.b16 %v1565
    %v2325 = vunpack.c.h.b16 %v1565
    %v2326 = vunpack.c.l.b16 %v1566
    %v2327 = vunpack.c.h.b16 %v1566
    %v2328 = vunpack.c.l.b16 %v1567
    %v2329 = vunpack.c.h.b16 %v1567
    %v2330 = vunpack.c.l.b16 %v1568
    %v2331 = vunpack.c.h.b16 %v1568
    %v2332 = vunpack.c.l.b16 %v1569
    %v2333 = vunpack.c.h.b16 %v1569
    %v2334 = vunpack.c.l.b16 %v1570
    %v2335 = vunpack.c.h.b16 %v1570
    %v2336 = vunpack.c.l.b16 %v1571
    %v2337 = vunpack.c.h.b16 %v1571
    %v2338 = vunpack.c.l.b16 %v1572
    %v2339 = vunpack.c.h.b16 %v1572
    %v2340 = vunpack.c.l.b16 %v1573
    %v2341 = vunpack.c.h.b16 %v1573
    %v2342 = vunpack.c.l.b16 %v1574
    %v2343 = vunpack.c.h.b16 %v1574
    %v2344 = vunpack.c.l.b16 %v1575
    %v2345 = vunpack.c.h.b16 %v1575
    %v2346 = vunpack.c.l.b16 %v1576
    %v2347 = vunpack.c.h.b16 %v1576
    %v2348 = vunpack.c.l.b16 %v1577
    %v2349 = vunpack.c.h.b16 %v1577
    %v2350 = vunpack.c.l.b16 %v1578
    %v2351 = vunpack.c.h.b16 %v1578
    %v2352 = vunpack.c.l.b16 %v1579
    %v2353 = vunpack.c.h.b16 %v1579
    %v2354 = vunpack.c.l.b16 %v1580
    %v2355 = vunpack.c.h.b16 %v1580
    %v2356 = vunpack.c.l.b16 %v1581
    %v2357 = vunpack.c.h.b16 %v1581
    %v2358 = vunpack.c.l.b16 %v1582
    %v2359 = vunpack.c.h.b16 %v1582
    %v2360 = vunpack.c.l.b16 %v1583
    %v2361 = vunpack.c.h.b16 %v1583
    %v2362 = vunpack.c.l.b16 %v1584
    %v2363 = vunpack.c.h.b16 %v1584
    %v2364 = vunpack.c.l.b16 %v1585
    %v2365 = vunpack.c.h.b16 %v1585
    %v2366 = vunpack.c.l.b16 %v1586
    %v2367 = vunpack.c.h.b16 %v1586
    %v2368 = vunpack.c.l.b16 %v1587
    %v2369 = vunpack.c.h.b16 %v1587
    %v2370 = vunpack.c.l.b16 %v1588
    %v2371 = vunpack.c.h.b16 %v1588
    %v2372 = vunpack.c.l.b16 %v1589
    %v2373 = vunpack.c.h.b16 %v1589
    %v2374 = vunpack.c.l.b16 %v1590
    %v2375 = vunpack.c.h.b16 %v1590
    %v2376 = vunpack.c.l.b16 %v1591
    %v2377 = vunpack.c.h.b16 %v1591
    %v2378 = vunpack.c.l.b16 %v1592
    %v2379 = vunpack.c.h.b16 %v1592
    %v2380 = vunpack.c.l.b16 %v1593
    %v2381 = vunpack.c.h.b16 %v1593
    %v2382 = vunpack.c.l.b16 %v1594
    %v2383 = vunpack.c.h.b16 %v1594
    %v2384 = vunpack.c.l.b16 %v1595
    %v2385 = vunpack.c.h.b16 %v1595
    %v2386 = vunpack.c.l.b16 %v1596
    %v2387 = vunpack.c.h.b16 %v1596
    %v2388 = vunpack.c.l.b16 %v1597
    %v2389 = vunpack.c.h.b16 %v1597
    %v2390 = vunpack.c.l.b16 %v1598
    %v2391 = vunpack.c.h.b16 %v1598
    %v2392 = vunpack.c.l.b16 %v1599
    %v2393 = vunpack.c.h.b16 %v1599
    %v2394 = vunpack.c.l.b16 %v1600
    %v2395 = vunpack.c.h.b16 %v1600
    %v2396 = vunpack.c.l.b16 %v1601
    %v2397 = vunpack.c.h.b16 %v1601
    %v2398 = vunpack.c.l.b16 %v1602
    %v2399 = vunpack.c.h.b16 %v1602
    %v2400 = vunpack.c.l.b16 %v1603
    %v2401 = vunpack.c.h.b16 %v1603
    %v2402 = vunpack.c.l.b16 %v1604
    %v2403 = vunpack.c.h.b16 %v1604
    %v2404 = vunpack.c.l.b16 %v1605
    %v2405 = vunpack.c.h.b16 %v1605
    %v2406 = vunpack.c.l.b16 %v1606
    %v2407 = vunpack.c.h.b16 %v1606
    %v2408 = vunpack.c.l.b16 %v1607
    %v2409 = vunpack.c.h.b16 %v1607
    %v2410 = vunpack.c.l.b16 %v1608
    %v2411 = vunpack.c.h.b16 %v1608
    %v2412 = vunpack.c.l.b16 %v1609
    %v2413 = vunpack.c.h.b16 %v1609
    %v2414 = vunpack.c.l.b16 %v1610
    %v2415 = vunpack.c.h.b16 %v1610
    %v2416 = vunpack.c.l.b16 %v1611
    %v2417 = vunpack.c.h.b16 %v1611
    %v2418 = vunpack.c.l.b16 %v1612
    %v2419 = vunpack.c.h.b16 %v1612
    %v2420 = vunpack.c.l.b16 %v1613
    %v2421 = vunpack.c.h.b16 %v1613
    %v2422 = vunpack.c.l.b16 %v1614
    %v2423 = vunpack.c.h.b16 %v1614
    %v2424 = vunpack.c.l.b16 %v1615
    %v2425 = vunpack.c.h.b16 %v1615
    %v2426 = vunpack.c.l.b16 %v1616
    %v2427 = vunpack.c.h.b16 %v1616
    %v2428 = vunpack.c.l.b16 %v1617
    %v2429 = vunpack.c.h.b16 %v1617
    %v2430 = vunpack.c.l.b16 %v1618
    %v2431 = vunpack.c.h.b16 %v1618
    %v2432 = vunpack.c.l.b16 %v1619
    %v2433 = vunpack.c.h.b16 %v1619
    %v2434 = vunpack.c.l.b16 %v1620
    %v2435 = vunpack.c.h.b16 %v1620
    %v2436 = vpack.c.b16 %v2298, %v2292
    %v2437 = vpack.c.b16 %v2299, %v2293
    %v2438 = vpack.c.b16 %v2300, %v2294
    %v2439 = vpack.c.b16 %v2301, %v2295
    %v2440 = vpack.c.b16 %v2302, %v2296
    %v2441 = vpack.c.b16 %v2303, %v2297
    %v2442 = vpack.c.b16 %v2310, %v2304
    %v2443 = vpack.c.b16 %v2311, %v2305
    %v2444 = vpack.c.b16 %v2312, %v2306
    %v2445 = vpack.c.b16 %v2313, %v2307
    %v2446 = vpack.c.b16 %v2314, %v2308
    %v2447 = vpack.c.b16 %v2315, %v2309
    %v2448 = vpack.c.b16 %v2322, %v2316
    %v2449 = vpack.c.b16 %v2323, %v2317
    %v2450 = vpack.c.b16 %v2324, %v2318
    %v2451 = vpack.c.b16 %v2325, %v2319
    %v2452 = vpack.c.b16 %v2326, %v2320
    %v2453 = vpack.c.b16 %v2327, %v2321
    %v2454 = vpack.c.b16 %v2334, %v2328
    %v2455 = vpack.c.b16 %v2335, %v2329
    %v2456 = vpack.c.b16 %v2336, %v2330
    %v2457 = vpack.c.b16 %v2337, %v2331
    %v2458 = vpack.c.b16 %v2338, %v2332
    %v2459 = vpack.c.b16 %v2339, %v2333
    %v2460 = vpack.c.b16 %v2346, %v2340
    %v2461 = vpack.c.b16 %v2347, %v2341
    %v2462 = vpack.c.b16 %v2348, %v2342
    %v2463 = vpack.c.b16 %v2349, %v2343
    %v2464 = vpack.c.b16 %v2350, %v2344
    %v2465 = vpack.c.b16 %v2351, %v2345
    %v2466 = vpack.c.b16 %v2358, %v2352
    %v2467 = vpack.c.b16 %v2359, %v2353
    %v2468 = vpack.c.b16 %v2360, %v2354
    %v2469 = vpack.c.b16 %v2361, %v2355
    %v2470 = vpack.c.b16 %v2362, %v2356
    %v2471 = vpack.c.b16 %v2363, %v2357
    %v2472 = vpack.c.b16 %v2370, %v2364
    %v2473 = vpack.c.b16 %v2371, %v2365
    %v2474 = vpack.c.b16 %v2372, %v2366
    %v2475 = vpack.c.b16 %v2373, %v2367
    %v2476 = vpack.c.b16 %v2374, %v2368
    %v2477 = vpack.c.b16 %v2375, %v2369
    %v2478 = vpack.c.b16 %v2382, %v2376
    %v2479 = vpack.c.b16 %v2383, %v2377
    %v2480 = vpack.c.b16 %v2384, %v2378
    %v2481 = vpack.c.b16 %v2385, %v2379
    %v2482 = vpack.c.b16 %v2386, %v2380
    %v2483 = vpack.c.b16 %v2387, %v2381
    %v2484 = vpack.c.b16 %v2394, %v2388
    %v2485 = vpack.c.b16 %v2395, %v2389
    %v2486 = vpack.c.b16 %v2396, %v2390
    %v2487 = vpack.c.b16 %v2397, %v2391
    %v2488 = vpack.c.b16 %v2398, %v2392
    %v2489 = vpack.c.b16 %v2399, %v2393
    %v2490 = vpack.c.b16 %v2406, %v2400
    %v2491 = vpack.c.b16 %v2407, %v2401
    %v2492 = vpack.c.b16 %v2408, %v2402
    %v2493 = vpack.c.b16 %v2409, %v2403
    %v2494 = vpack.c.b16 %v2410, %v2404
    %v2495 = vpack.c.b16 %v2411, %v2405
    %v2496 = vpack.c.b16 %v2418, %v2412
    %v2497 = vpack.c.b16 %v2419, %v2413
    %v2498 = vpack.c.b16 %v2420, %v2414
    %v2499 = vpack.c.b16 %v2421, %v2415
    %v2500 = vpack.c.b16 %v2422, %v2416
    %v2501 = vpack.c.b16 %v2423, %v2417
    %v2502 = vpack.c.b16 %v2430, %v2424
    %v2503 = vpack.c.b16 %v2431, %v2425
    %v2504 = vpack.c.b16 %v2432, %v2426
    %v2505 = vpack.c.b16 %v2433, %v2427
    %v2506 = vpack.c.b16 %v2434, %v2428
    %v2507 = vpack.c.b16 %v2435, %v2429
    %v2581 = vsel %vm309, %v1548, 0
    %2583 = vmatpush.bf16.msra.mxu0 %v2478
    %2584 = vmatpush.bf16.msra.mxu0 %v2472
    %2585 = vmatpush.bf16.msra.mxu0 %v2466
    %2586 = vmatpush.bf16.msra.mxu0 %v2460
    %2587 = vmatpush.bf16.msra.mxu0 %v2454
    %2588 = vmatpush.bf16.msra.mxu0 %v2448
    %2589 = vmatpush.bf16.msra.mxu0 %v2442
    %2590 = vmatpush.bf16.msra.mxu0 %v2436
    %2591 = vmatmul.bf16.gmra.mxu0 %v1547
    %v2592 = vpop.f32.mrf.mxu0
    %v2593 = vadd.f32 %v2087, %v2592
    %v2594 = vpop.f32.mrf.mxu0
    %2595 = vdwg.mxu0
    %2596 = vmatpush.bf16.msra.mxu0 0
    %2597 = vmatpush.bf16.msra.mxu0 0
    %2598 = vmatpush.bf16.msra.mxu0 0
    %2599 = vmatpush.bf16.msra.mxu0 0
    %2600 = vmatpush.bf16.msra.mxu0 %v2502
    %2601 = vmatpush.bf16.msra.mxu0 %v2496
    %2602 = vmatpush.bf16.msra.mxu0 %v2490
    %2603 = vmatpush.bf16.msra.mxu0 %v2484
    %2604 = vmatmul.bf16.gmra.mxu0 %v2581
    %v2605 = vpop.f32.mrf.mxu0
    %v2606 = vadd.f32 %v2593, %v2605
    %v2607 = vpop.f32.mrf.mxu0
    %2608 = vdwg.mxu0
    %2609 = vmatpush.bf16.msra.mxu0 %v2479
    %2610 = vmatpush.bf16.msra.mxu0 %v2473
    %2611 = vmatpush.bf16.msra.mxu0 %v2467
    %2612 = vmatpush.bf16.msra.mxu0 %v2461
    %2613 = vmatpush.bf16.msra.mxu0 %v2455
    %2614 = vmatpush.bf16.msra.mxu0 %v2449
    %2615 = vmatpush.bf16.msra.mxu0 %v2443
    %2616 = vmatpush.bf16.msra.mxu0 %v2437
    %2617 = vmatmul.bf16.gmra.mxu0 %v1547
    %v2618 = vpop.f32.mrf.mxu0
    %v2619 = vadd.f32 %v2113, %v2618
    %v2620 = vpop.f32.mrf.mxu0
    %2621 = vdwg.mxu0
    %2622 = vmatpush.bf16.msra.mxu0 0
    %2623 = vmatpush.bf16.msra.mxu0 0
    %2624 = vmatpush.bf16.msra.mxu0 0
    %2625 = vmatpush.bf16.msra.mxu0 0
    %2626 = vmatpush.bf16.msra.mxu0 %v2503
    %2627 = vmatpush.bf16.msra.mxu0 %v2497
    %2628 = vmatpush.bf16.msra.mxu0 %v2491
    %2629 = vmatpush.bf16.msra.mxu0 %v2485
    %2630 = vmatmul.bf16.gmra.mxu0 %v2581
    %v2631 = vpop.f32.mrf.mxu0
    %v2632 = vadd.f32 %v2619, %v2631
    %v2633 = vpop.f32.mrf.mxu0
    %2634 = vdwg.mxu0
    %2635 = vmatpush.bf16.msra.mxu0 %v2480
    %2636 = vmatpush.bf16.msra.mxu0 %v2474
    %2637 = vmatpush.bf16.msra.mxu0 %v2468
    %2638 = vmatpush.bf16.msra.mxu0 %v2462
    %2639 = vmatpush.bf16.msra.mxu0 %v2456
    %2640 = vmatpush.bf16.msra.mxu0 %v2450
    %2641 = vmatpush.bf16.msra.mxu0 %v2444
    %2642 = vmatpush.bf16.msra.mxu0 %v2438
    %2643 = vmatmul.bf16.gmra.mxu0 %v1547
    %v2644 = vpop.f32.mrf.mxu0
    %v2645 = vadd.f32 %v2139, %v2644
    %v2646 = vpop.f32.mrf.mxu0
    %2647 = vdwg.mxu0
    %2648 = vmatpush.bf16.msra.mxu0 0
    %2649 = vmatpush.bf16.msra.mxu0 0
    %2650 = vmatpush.bf16.msra.mxu0 0
    %2651 = vmatpush.bf16.msra.mxu0 0
    %2652 = vmatpush.bf16.msra.mxu0 %v2504
    %2653 = vmatpush.bf16.msra.mxu0 %v2498
    %2654 = vmatpush.bf16.msra.mxu0 %v2492
    %2655 = vmatpush.bf16.msra.mxu0 %v2486
    %2656 = vmatmul.bf16.gmra.mxu0 %v2581
    %v2657 = vpop.f32.mrf.mxu0
    %v2658 = vadd.f32 %v2645, %v2657
    %v2659 = vpop.f32.mrf.mxu0
    %2660 = vdwg.mxu0
    %2661 = vmatpush.bf16.msra.mxu0 %v2481
    %2662 = vmatpush.bf16.msra.mxu0 %v2475
    %2663 = vmatpush.bf16.msra.mxu0 %v2469
    %2664 = vmatpush.bf16.msra.mxu0 %v2463
    %2665 = vmatpush.bf16.msra.mxu0 %v2457
    %2666 = vmatpush.bf16.msra.mxu0 %v2451
    %2667 = vmatpush.bf16.msra.mxu0 %v2445
    %2668 = vmatpush.bf16.msra.mxu0 %v2439
    %2669 = vmatmul.bf16.gmra.mxu0 %v1547
    %v2670 = vpop.f32.mrf.mxu0
    %v2671 = vadd.f32 %v2165, %v2670
    %v2672 = vpop.f32.mrf.mxu0
    %2673 = vdwg.mxu0
    %2674 = vmatpush.bf16.msra.mxu0 0
    %2675 = vmatpush.bf16.msra.mxu0 0
    %2676 = vmatpush.bf16.msra.mxu0 0
    %2677 = vmatpush.bf16.msra.mxu0 0
    %2678 = vmatpush.bf16.msra.mxu0 %v2505
    %2679 = vmatpush.bf16.msra.mxu0 %v2499
    %2680 = vmatpush.bf16.msra.mxu0 %v2493
    %2681 = vmatpush.bf16.msra.mxu0 %v2487
    %2682 = vmatmul.bf16.gmra.mxu0 %v2581
    %v2683 = vpop.f32.mrf.mxu0
    %v2684 = vadd.f32 %v2671, %v2683
    %v2685 = vpop.f32.mrf.mxu0
    %2686 = vdwg.mxu0
    %2687 = vmatpush.bf16.msra.mxu0 %v2482
    %2688 = vmatpush.bf16.msra.mxu0 %v2476
    %2689 = vmatpush.bf16.msra.mxu0 %v2470
    %2690 = vmatpush.bf16.msra.mxu0 %v2464
    %2691 = vmatpush.bf16.msra.mxu0 %v2458
    %2692 = vmatpush.bf16.msra.mxu0 %v2452
    %2693 = vmatpush.bf16.msra.mxu0 %v2446
    %2694 = vmatpush.bf16.msra.mxu0 %v2440
    %2695 = vmatmul.bf16.gmra.mxu0 %v1547
    %v2696 = vpop.f32.mrf.mxu0
    %v2697 = vadd.f32 %v2191, %v2696
    %v2698 = vpop.f32.mrf.mxu0
    %2699 = vdwg.mxu0
    %2700 = vmatpush.bf16.msra.mxu0 0
    %2701 = vmatpush.bf16.msra.mxu0 0
    %2702 = vmatpush.bf16.msra.mxu0 0
    %2703 = vmatpush.bf16.msra.mxu0 0
    %2704 = vmatpush.bf16.msra.mxu0 %v2506
    %2705 = vmatpush.bf16.msra.mxu0 %v2500
    %2706 = vmatpush.bf16.msra.mxu0 %v2494
    %2707 = vmatpush.bf16.msra.mxu0 %v2488
    %2708 = vmatmul.bf16.gmra.mxu0 %v2581
    %v2709 = vpop.f32.mrf.mxu0
    %v2710 = vadd.f32 %v2697, %v2709
    %v2711 = vpop.f32.mrf.mxu0
    %2712 = vdwg.mxu0
    %2713 = vmatpush.bf16.msra.mxu0 %v2483
    %2714 = vmatpush.bf16.msra.mxu0 %v2477
    %2715 = vmatpush.bf16.msra.mxu0 %v2471
    %2716 = vmatpush.bf16.msra.mxu0 %v2465
    %2717 = vmatpush.bf16.msra.mxu0 %v2459
    %2718 = vmatpush.bf16.msra.mxu0 %v2453
    %2719 = vmatpush.bf16.msra.mxu0 %v2447
    %2720 = vmatpush.bf16.msra.mxu0 %v2441
    %2721 = vmatmul.bf16.gmra.mxu0 %v1547
    %v2722 = vpop.f32.mrf.mxu0
    %v2723 = vadd.f32 %v2217, %v2722
    %v2724 = vpop.f32.mrf.mxu0
    %2725 = vdwg.mxu0
    %2726 = vmatpush.bf16.msra.mxu0 0
    %2727 = vmatpush.bf16.msra.mxu0 0
    %2728 = vmatpush.bf16.msra.mxu0 0
    %2729 = vmatpush.bf16.msra.mxu0 0
    %2730 = vmatpush.bf16.msra.mxu0 %v2507
    %2731 = vmatpush.bf16.msra.mxu0 %v2501
    %2732 = vmatpush.bf16.msra.mxu0 %v2495
    %2733 = vmatpush.bf16.msra.mxu0 %v2489
    %2734 = vmatmul.bf16.gmra.mxu0 %v2581
    %v2735 = vpop.f32.mrf.mxu0
    %v2736 = vadd.f32 %v2723, %v2735
    %v2737 = vpop.f32.mrf.mxu0
    %2738 = vdwg.mxu0
    %v2739 = vld [vmem:[#allocation20] sm:$0x3f]
    %v2741 = vperm.slane %v2739, 0
    %v2742 = vperm.slane %v2739, 1
    %v2743 = vperm.slane %v2739, 2
    %v2744 = vperm.slane %v2739, 3
    %v2745 = vperm.slane %v2739, 4
    %v2746 = vperm.slane %v2739, 5
    %v2753 = vadd.f32 %v2606, %v2741
    %v2754 = vadd.f32 %v2632, %v2742
    %v2755 = vadd.f32 %v2658, %v2743
    %v2756 = vadd.f32 %v2684, %v2744
    %v2757 = vadd.f32 %v2710, %v2745
    %v2758 = vadd.f32 %v2736, %v2746
    %v2759 = vld [vmem:[#allocation8] sm:$0x3]
    %2760 = vst [vmem:[#allocation2 + $0x2] sm:$0x3] %v2759
    %v2767 = vrot.slane %v2754, 6
    %v2768 = vrot.slane %v2755, 4
    %v2769 = vrot.slane %v2756, 2
    %v2770 = vrot.slane %v2758, 6
    %v2771 = vsel %vm1543, %v2753, %v2767
    %vm2772 = vcmask 1045508
    %v2773 = vsel %vm2772, %v2768, %v2769
    %vm2774 = vcmask 1043456
    %v2775 = vsel %vm2774, %v2771, %v2773
    %v2776 = vsel %vm1543, %v2757, %v2770
    %2779 = vst [vmem:[#allocation2 + $0x4] sm:$0xff] %v2775
    %2780 = vst [vmem:[#allocation2 + $0xc] sm:$0xf] %v2776
    %v2781 = vld [vmem:[#allocation2] sm:$0xff]
    %v2782 = vld [vmem:[#allocation2 + $0x8] sm:$0xff]
    %2785 = vst [vmem:[#allocation1] ss:$4 sm:$0xff] %v2781
    %s2786 = scalar_lea.vmem [#allocation1], 32
    %2787 = vst [vmem:[%s2786] ss:$4 sm:$0xff] %v2782
    %v2788 = vld.sshfl [vmem:[#allocation1] sm:$0xff pattern:$0x73625140]
    %v2789 = vld.sshfl [vmem:[#allocation1 + $0x8] sm:$0xff pattern:$0x73625140]
    %v2790 = vld.sshfl [vmem:[#allocation1 + $0x10] sm:$0xff pattern:$0x73625140]
    %v2791 = vld.sshfl [vmem:[#allocation1 + $0x18] sm:$0xff pattern:$0x73625140]
    %v2792 = vld.sshfl [vmem:[#allocation1 + $0x20] sm:$0xff pattern:$0x73625140]
    %v2793 = vld.sshfl [vmem:[#allocation1 + $0x28] sm:$0xff pattern:$0x73625140]
    %v2794 = vld.sshfl [vmem:[#allocation1 + $0x30] sm:$0xff pattern:$0x73625140]
    %v2795 = vld.sshfl [vmem:[#allocation1 + $0x38] sm:$0xff pattern:$0x73625140]
    %v2804 = vpack.c.bf16 %v2788, %v2788
    %v2805 = vpack.c.bf16 %v2789, %v2789
    %v2806 = vpack.c.bf16 %v2790, %v2790
    %v2807 = vpack.c.bf16 %v2791, %v2791
    %v2808 = vpack.c.bf16 %v2792, %v2792
    %v2809 = vpack.c.bf16 %v2793, %v2793
    %v2810 = vpack.c.bf16 %v2794, %v2794
    %v2811 = vpack.c.bf16 %v2795, %v2795
    %v2812 = vld [vmem:[#allocation14] sm:$0xff]
    %v2813 = vld [vmem:[#allocation14 + $0x8] sm:$0xff]
    %v2814 = vld [vmem:[#allocation14 + $0x10] sm:$0xff]
    %v2815 = vld [vmem:[#allocation14 + $0x18] sm:$0xff]
    %v2816 = vld [vmem:[#allocation14 + $0x20] sm:$0xff]
    %v2817 = vld [vmem:[#allocation14 + $0x28] sm:$0xff]
    %v2818 = vld [vmem:[#allocation14 + $0x30] sm:$0xff]
    %v2819 = vld [vmem:[#allocation14 + $0x38] sm:$0xff]
    %v2820 = vld [vmem:[#allocation14 + $0x40] sm:$0xff]
    %v2821 = vld [vmem:[#allocation14 + $0x48] sm:$0xff]
    %v2822 = vld [vmem:[#allocation14 + $0x50] sm:$0xff]
    %v2823 = vld [vmem:[#allocation14 + $0x58] sm:$0xff]
    %v2824 = vld [vmem:[#allocation14 + $0x60] sm:$0xff]
    %v2825 = vld [vmem:[#allocation14 + $0x68] sm:$0xff]
    %v2826 = vld [vmem:[#allocation14 + $0x70] sm:$0xff]
    %v2827 = vld [vmem:[#allocation14 + $0x78] sm:$0xff]
    %v2828 = vld [vmem:[#allocation14 + $0x80] sm:$0xff]
    %v2829 = vld [vmem:[#allocation14 + $0x88] sm:$0xff]
    %v2830 = vld [vmem:[#allocation14 + $0x90] sm:$0xff]
    %v2831 = vld [vmem:[#allocation14 + $0x98] sm:$0xff]
    %v2832 = vld [vmem:[#allocation14 + $0xa0] sm:$0xff]
    %v2833 = vld [vmem:[#allocation14 + $0xa8] sm:$0xff]
    %v2834 = vld [vmem:[#allocation14 + $0xb0] sm:$0xff]
    %v2835 = vld [vmem:[#allocation14 + $0xb8] sm:$0xff]
    %v2836 = vld [vmem:[#allocation14 + $0xc0] sm:$0xff]
    %v2837 = vld [vmem:[#allocation14 + $0xc8] sm:$0xff]
    %v2838 = vld [vmem:[#allocation14 + $0xd0] sm:$0xff]
    %v2839 = vld [vmem:[#allocation14 + $0xd8] sm:$0xff]
    %v2840 = vld [vmem:[#allocation14 + $0xe0] sm:$0xff]
    %v2841 = vld [vmem:[#allocation14 + $0xe8] sm:$0xff]
    %v2842 = vld [vmem:[#allocation14 + $0xf0] sm:$0xff]
    %v2843 = vld [vmem:[#allocation14 + $0xf8] sm:$0xff]
    %v2844 = vld [vmem:[#allocation14 + $0x100] sm:$0xff]
    %v2845 = vld [vmem:[#allocation14 + $0x108] sm:$0xff]
    %v2846 = vld [vmem:[#allocation14 + $0x110] sm:$0xff]
    %v2847 = vld [vmem:[#allocation14 + $0x118] sm:$0xff]
    %v2848 = vld [vmem:[#allocation14 + $0x120] sm:$0xff]
    %v2849 = vld [vmem:[#allocation14 + $0x128] sm:$0xff]
    %v2850 = vld [vmem:[#allocation14 + $0x130] sm:$0xff]
    %v2851 = vld [vmem:[#allocation14 + $0x138] sm:$0xff]
    %v2852 = vld [vmem:[#allocation14 + $0x140] sm:$0xff]
    %v2853 = vld [vmem:[#allocation14 + $0x148] sm:$0xff]
    %v2854 = vld [vmem:[#allocation14 + $0x150] sm:$0xff]
    %v2855 = vld [vmem:[#allocation14 + $0x158] sm:$0xff]
    %v2856 = vld [vmem:[#allocation14 + $0x160] sm:$0xff]
    %v2857 = vld [vmem:[#allocation14 + $0x168] sm:$0xff]
    %v2858 = vld [vmem:[#allocation14 + $0x170] sm:$0xff]
    %v2859 = vld [vmem:[#allocation14 + $0x178] sm:$0xff]
    %v2860 = vld [vmem:[#allocation14 + $0x180] sm:$0xff]
    %v2861 = vld [vmem:[#allocation14 + $0x188] sm:$0xff]
    %v2862 = vld [vmem:[#allocation14 + $0x190] sm:$0xff]
    %v2863 = vld [vmem:[#allocation14 + $0x198] sm:$0xff]
    %v2864 = vld [vmem:[#allocation14 + $0x1a0] sm:$0xff]
    %v2865 = vld [vmem:[#allocation14 + $0x1a8] sm:$0xff]
    %v2866 = vld [vmem:[#allocation14 + $0x1b0] sm:$0xff]
    %v2867 = vld [vmem:[#allocation14 + $0x1b8] sm:$0xff]
    %v2868 = vld [vmem:[#allocation14 + $0x1c0] sm:$0xff]
    %v2869 = vld [vmem:[#allocation14 + $0x1c8] sm:$0xff]
    %v2870 = vld [vmem:[#allocation14 + $0x1d0] sm:$0xff]
    %v2871 = vld [vmem:[#allocation14 + $0x1d8] sm:$0xff]
    %v2872 = vld [vmem:[#allocation14 + $0x1e0] sm:$0xff]
    %v2873 = vld [vmem:[#allocation14 + $0x1e8] sm:$0xff]
    %v2874 = vld [vmem:[#allocation14 + $0x1f0] sm:$0xff]
    %v2875 = vld [vmem:[#allocation14 + $0x1f8] sm:$0xff]
    %v2876 = vld [vmem:[#allocation14 + $0x200] sm:$0xff]
    %v2877 = vld [vmem:[#allocation14 + $0x208] sm:$0xff]
    %v2878 = vld [vmem:[#allocation14 + $0x210] sm:$0xff]
    %v2879 = vld [vmem:[#allocation14 + $0x218] sm:$0xff]
    %v2880 = vld [vmem:[#allocation14 + $0x220] sm:$0xff]
    %v2881 = vld [vmem:[#allocation14 + $0x228] sm:$0xff]
    %v2882 = vld [vmem:[#allocation14 + $0x230] sm:$0xff]
    %v2883 = vld [vmem:[#allocation14 + $0x238] sm:$0xff]
    %v2884 = vld [vmem:[#allocation14 + $0x240] sm:$0xff]
    %v2885 = vld [vmem:[#allocation14 + $0x248] sm:$0xff]
    %v2886 = vld [vmem:[#allocation14 + $0x250] sm:$0xff]
    %v2887 = vld [vmem:[#allocation14 + $0x258] sm:$0xff]
    %v2888 = vld [vmem:[#allocation14 + $0x260] sm:$0xff]
    %v2889 = vld [vmem:[#allocation14 + $0x268] sm:$0xff]
    %v2890 = vld [vmem:[#allocation14 + $0x270] sm:$0xff]
    %v2891 = vld [vmem:[#allocation14 + $0x278] sm:$0xff]
    %v2892 = vld [vmem:[#allocation14 + $0x280] sm:$0xff]
    %v2893 = vld [vmem:[#allocation14 + $0x288] sm:$0xff]
    %v2894 = vld [vmem:[#allocation14 + $0x290] sm:$0xff]
    %v2895 = vld [vmem:[#allocation14 + $0x298] sm:$0xff]
    %v2896 = vld [vmem:[#allocation14 + $0x2a0] sm:$0xff]
    %v2897 = vld [vmem:[#allocation14 + $0x2a8] sm:$0xff]
    %v2898 = vld [vmem:[#allocation14 + $0x2b0] sm:$0xff]
    %v2899 = vld [vmem:[#allocation14 + $0x2b8] sm:$0xff]
    %v2900 = vld [vmem:[#allocation14 + $0x2c0] sm:$0xff]
    %v2901 = vld [vmem:[#allocation14 + $0x2c8] sm:$0xff]
    %v2902 = vld [vmem:[#allocation14 + $0x2d0] sm:$0xff]
    %v2903 = vld [vmem:[#allocation14 + $0x2d8] sm:$0xff]
    %v2904 = vld [vmem:[#allocation14 + $0x2e0] sm:$0xff]
    %v2905 = vld [vmem:[#allocation14 + $0x2e8] sm:$0xff]
    %v2906 = vld [vmem:[#allocation14 + $0x2f0] sm:$0xff]
    %v2907 = vld [vmem:[#allocation14 + $0x2f8] sm:$0xff]
    %v2908 = vld [vmem:[#allocation14 + $0x300] sm:$0xff]
    %v2909 = vld [vmem:[#allocation14 + $0x308] sm:$0xff]
    %v2910 = vld [vmem:[#allocation14 + $0x310] sm:$0xff]
    %v2911 = vld [vmem:[#allocation14 + $0x318] sm:$0xff]
    %v2912 = vld [vmem:[#allocation14 + $0x320] sm:$0xff]
    %v2913 = vld [vmem:[#allocation14 + $0x328] sm:$0xff]
    %v2914 = vld [vmem:[#allocation14 + $0x330] sm:$0xff]
    %v2915 = vld [vmem:[#allocation14 + $0x338] sm:$0xff]
    %v2916 = vld [vmem:[#allocation14 + $0x340] sm:$0xff]
    %v2917 = vld [vmem:[#allocation14 + $0x348] sm:$0xff]
    %v2918 = vld [vmem:[#allocation14 + $0x350] sm:$0xff]
    %v2919 = vld [vmem:[#allocation14 + $0x358] sm:$0xff]
    %v2920 = vld [vmem:[#allocation14 + $0x360] sm:$0xff]
    %v2921 = vld [vmem:[#allocation14 + $0x368] sm:$0xff]
    %v2922 = vld [vmem:[#allocation14 + $0x370] sm:$0xff]
    %v2923 = vld [vmem:[#allocation14 + $0x378] sm:$0xff]
    %v2924 = vld [vmem:[#allocation14 + $0x380] sm:$0xff]
    %v2925 = vld [vmem:[#allocation14 + $0x388] sm:$0xff]
    %v2926 = vld [vmem:[#allocation14 + $0x390] sm:$0xff]
    %v2927 = vld [vmem:[#allocation14 + $0x398] sm:$0xff]
    %v2928 = vld [vmem:[#allocation14 + $0x3a0] sm:$0xff]
    %v2929 = vld [vmem:[#allocation14 + $0x3a8] sm:$0xff]
    %v2930 = vld [vmem:[#allocation14 + $0x3b0] sm:$0xff]
    %v2931 = vld [vmem:[#allocation14 + $0x3b8] sm:$0xff]
    %v2932 = vld [vmem:[#allocation14 + $0x3c0] sm:$0xff]
    %v2933 = vld [vmem:[#allocation14 + $0x3c8] sm:$0xff]
    %v2934 = vld [vmem:[#allocation14 + $0x3d0] sm:$0xff]
    %v2935 = vld [vmem:[#allocation14 + $0x3d8] sm:$0xff]
    %v2936 = vld [vmem:[#allocation14 + $0x3e0] sm:$0xff]
    %v2937 = vld [vmem:[#allocation14 + $0x3e8] sm:$0xff]
    %v2938 = vld [vmem:[#allocation14 + $0x3f0] sm:$0xff]
    %v2939 = vld [vmem:[#allocation14 + $0x3f8] sm:$0xff]
    %v2940 = vld [vmem:[#allocation14 + $0x400] sm:$0xff]
    %v2941 = vld [vmem:[#allocation14 + $0x408] sm:$0xff]
    %v2942 = vld [vmem:[#allocation14 + $0x410] sm:$0xff]
    %v2943 = vld [vmem:[#allocation14 + $0x418] sm:$0xff]
    %v2944 = vld [vmem:[#allocation14 + $0x420] sm:$0xff]
    %v2945 = vld [vmem:[#allocation14 + $0x428] sm:$0xff]
    %v2946 = vld [vmem:[#allocation14 + $0x430] sm:$0xff]
    %v2947 = vld [vmem:[#allocation14 + $0x438] sm:$0xff]
    %v2948 = vld [vmem:[#allocation14 + $0x440] sm:$0xff]
    %v2949 = vld [vmem:[#allocation14 + $0x448] sm:$0xff]
    %v2950 = vld [vmem:[#allocation14 + $0x450] sm:$0xff]
    %v2951 = vld [vmem:[#allocation14 + $0x458] sm:$0xff]
    %v2952 = vld [vmem:[#allocation14 + $0x460] sm:$0xff]
    %v2953 = vld [vmem:[#allocation14 + $0x468] sm:$0xff]
    %v2954 = vld [vmem:[#allocation14 + $0x470] sm:$0xff]
    %v2955 = vld [vmem:[#allocation14 + $0x478] sm:$0xff]
    %v2956 = vld [vmem:[#allocation14 + $0x480] sm:$0xff]
    %v2957 = vld [vmem:[#allocation14 + $0x488] sm:$0xff]
    %v2958 = vld [vmem:[#allocation14 + $0x490] sm:$0xff]
    %v2959 = vld [vmem:[#allocation14 + $0x498] sm:$0xff]
    %v2960 = vld [vmem:[#allocation14 + $0x4a0] sm:$0xff]
    %v2961 = vld [vmem:[#allocation14 + $0x4a8] sm:$0xff]
    %v2962 = vld [vmem:[#allocation14 + $0x4b0] sm:$0xff]
    %v2963 = vld [vmem:[#allocation14 + $0x4b8] sm:$0xff]
    %v2964 = vld [vmem:[#allocation14 + $0x4c0] sm:$0xff]
    %v2965 = vld [vmem:[#allocation14 + $0x4c8] sm:$0xff]
    %v2966 = vld [vmem:[#allocation14 + $0x4d0] sm:$0xff]
    %v2967 = vld [vmem:[#allocation14 + $0x4d8] sm:$0xff]
    %v2968 = vld [vmem:[#allocation14 + $0x4e0] sm:$0xff]
    %v2969 = vld [vmem:[#allocation14 + $0x4e8] sm:$0xff]
    %v2970 = vld [vmem:[#allocation14 + $0x4f0] sm:$0xff]
    %v2971 = vld [vmem:[#allocation14 + $0x4f8] sm:$0xff]
    %v2972 = vld [vmem:[#allocation14 + $0x500] sm:$0xff]
    %v2973 = vld [vmem:[#allocation14 + $0x508] sm:$0xff]
    %v2974 = vld [vmem:[#allocation14 + $0x510] sm:$0xff]
    %v2975 = vld [vmem:[#allocation14 + $0x518] sm:$0xff]
    %v2976 = vld [vmem:[#allocation14 + $0x520] sm:$0xff]
    %v2977 = vld [vmem:[#allocation14 + $0x528] sm:$0xff]
    %v2978 = vld [vmem:[#allocation14 + $0x530] sm:$0xff]
    %v2979 = vld [vmem:[#allocation14 + $0x538] sm:$0xff]
    %v2980 = vld [vmem:[#allocation14 + $0x540] sm:$0xff]
    %v2981 = vld [vmem:[#allocation14 + $0x548] sm:$0xff]
    %v2982 = vld [vmem:[#allocation14 + $0x550] sm:$0xff]
    %v2983 = vld [vmem:[#allocation14 + $0x558] sm:$0xff]
    %v2984 = vld [vmem:[#allocation14 + $0x560] sm:$0xff]
    %v2985 = vld [vmem:[#allocation14 + $0x568] sm:$0xff]
    %v2986 = vld [vmem:[#allocation14 + $0x570] sm:$0xff]
    %v2987 = vld [vmem:[#allocation14 + $0x578] sm:$0xff]
    %v2988 = vld [vmem:[#allocation14 + $0x580] sm:$0xff]
    %v2989 = vld [vmem:[#allocation14 + $0x588] sm:$0xff]
    %v2990 = vld [vmem:[#allocation14 + $0x590] sm:$0xff]
    %v2991 = vld [vmem:[#allocation14 + $0x598] sm:$0xff]
    %v2992 = vld [vmem:[#allocation14 + $0x5a0] sm:$0xff]
    %v2993 = vld [vmem:[#allocation14 + $0x5a8] sm:$0xff]
    %v2994 = vld [vmem:[#allocation14 + $0x5b0] sm:$0xff]
    %v2995 = vld [vmem:[#allocation14 + $0x5b8] sm:$0xff]
    %v2996 = vld [vmem:[#allocation14 + $0x5c0] sm:$0xff]
    %v2997 = vld [vmem:[#allocation14 + $0x5c8] sm:$0xff]
    %v2998 = vld [vmem:[#allocation14 + $0x5d0] sm:$0xff]
    %v2999 = vld [vmem:[#allocation14 + $0x5d8] sm:$0xff]
    %v3000 = vld [vmem:[#allocation14 + $0x5e0] sm:$0xff]
    %v3001 = vld [vmem:[#allocation14 + $0x5e8] sm:$0xff]
    %v3002 = vld [vmem:[#allocation14 + $0x5f0] sm:$0xff]
    %v3003 = vld [vmem:[#allocation14 + $0x5f8] sm:$0xff]
    %v3004 = vld [vmem:[#allocation14 + $0x600] sm:$0xff]
    %v3005 = vld [vmem:[#allocation14 + $0x608] sm:$0xff]
    %v3006 = vld [vmem:[#allocation14 + $0x610] sm:$0xff]
    %v3007 = vld [vmem:[#allocation14 + $0x618] sm:$0xff]
    %v3008 = vld [vmem:[#allocation14 + $0x620] sm:$0xff]
    %v3009 = vld [vmem:[#allocation14 + $0x628] sm:$0xff]
    %v3010 = vld [vmem:[#allocation14 + $0x630] sm:$0xff]
    %v3011 = vld [vmem:[#allocation14 + $0x638] sm:$0xff]
    %v3012 = vld [vmem:[#allocation14 + $0x640] sm:$0xff]
    %v3013 = vld [vmem:[#allocation14 + $0x648] sm:$0xff]
    %v3014 = vld [vmem:[#allocation14 + $0x650] sm:$0xff]
    %v3015 = vld [vmem:[#allocation14 + $0x658] sm:$0xff]
    %v3016 = vld [vmem:[#allocation14 + $0x660] sm:$0xff]
    %v3017 = vld [vmem:[#allocation14 + $0x668] sm:$0xff]
    %v3018 = vld [vmem:[#allocation14 + $0x670] sm:$0xff]
    %v3019 = vld [vmem:[#allocation14 + $0x678] sm:$0xff]
    %v3020 = vld [vmem:[#allocation14 + $0x680] sm:$0xff]
    %v3021 = vld [vmem:[#allocation14 + $0x688] sm:$0xff]
    %v3022 = vld [vmem:[#allocation14 + $0x690] sm:$0xff]
    %v3023 = vld [vmem:[#allocation14 + $0x698] sm:$0xff]
    %v3024 = vld [vmem:[#allocation14 + $0x6a0] sm:$0xff]
    %v3025 = vld [vmem:[#allocation14 + $0x6a8] sm:$0xff]
    %v3026 = vld [vmem:[#allocation14 + $0x6b0] sm:$0xff]
    %v3027 = vld [vmem:[#allocation14 + $0x6b8] sm:$0xff]
    %v3028 = vld [vmem:[#allocation14 + $0x6c0] sm:$0xff]
    %v3029 = vld [vmem:[#allocation14 + $0x6c8] sm:$0xff]
    %v3030 = vld [vmem:[#allocation14 + $0x6d0] sm:$0xff]
    %v3031 = vld [vmem:[#allocation14 + $0x6d8] sm:$0xff]
    %v3032 = vld [vmem:[#allocation14 + $0x6e0] sm:$0xff]
    %v3033 = vld [vmem:[#allocation14 + $0x6e8] sm:$0xff]
    %v3034 = vld [vmem:[#allocation14 + $0x6f0] sm:$0xff]
    %v3035 = vld [vmem:[#allocation14 + $0x6f8] sm:$0xff]
    %v3036 = vld [vmem:[#allocation14 + $0x700] sm:$0xff]
    %v3037 = vld [vmem:[#allocation14 + $0x708] sm:$0xff]
    %v3038 = vld [vmem:[#allocation14 + $0x710] sm:$0xff]
    %v3039 = vld [vmem:[#allocation14 + $0x718] sm:$0xff]
    %v3040 = vld [vmem:[#allocation14 + $0x720] sm:$0xff]
    %v3041 = vld [vmem:[#allocation14 + $0x728] sm:$0xff]
    %v3042 = vld [vmem:[#allocation14 + $0x730] sm:$0xff]
    %v3043 = vld [vmem:[#allocation14 + $0x738] sm:$0xff]
    %v3044 = vld [vmem:[#allocation14 + $0x740] sm:$0xff]
    %v3045 = vld [vmem:[#allocation14 + $0x748] sm:$0xff]
    %v3046 = vld [vmem:[#allocation14 + $0x750] sm:$0xff]
    %v3047 = vld [vmem:[#allocation14 + $0x758] sm:$0xff]
    %v3048 = vld [vmem:[#allocation14 + $0x760] sm:$0xff]
    %v3049 = vld [vmem:[#allocation14 + $0x768] sm:$0xff]
    %v3050 = vld [vmem:[#allocation14 + $0x770] sm:$0xff]
    %v3051 = vld [vmem:[#allocation14 + $0x778] sm:$0xff]
    %v3052 = vld [vmem:[#allocation14 + $0x780] sm:$0xff]
    %v3053 = vld [vmem:[#allocation14 + $0x788] sm:$0xff]
    %v3054 = vld [vmem:[#allocation14 + $0x790] sm:$0xff]
    %v3055 = vld [vmem:[#allocation14 + $0x798] sm:$0xff]
    %v3056 = vld [vmem:[#allocation14 + $0x7a0] sm:$0xff]
    %v3057 = vld [vmem:[#allocation14 + $0x7a8] sm:$0xff]
    %v3058 = vld [vmem:[#allocation14 + $0x7b0] sm:$0xff]
    %v3059 = vld [vmem:[#allocation14 + $0x7b8] sm:$0xff]
    %v3060 = vld [vmem:[#allocation14 + $0x7c0] sm:$0xff]
    %v3061 = vld [vmem:[#allocation14 + $0x7c8] sm:$0xff]
    %v3062 = vld [vmem:[#allocation14 + $0x7d0] sm:$0xff]
    %v3063 = vld [vmem:[#allocation14 + $0x7d8] sm:$0xff]
    %v3064 = vld [vmem:[#allocation14 + $0x7e0] sm:$0xff]
    %v3065 = vld [vmem:[#allocation14 + $0x7e8] sm:$0xff]
    %v3066 = vld [vmem:[#allocation14 + $0x7f0] sm:$0xff]
    %v3067 = vld [vmem:[#allocation14 + $0x7f8] sm:$0xff]
    %v3068 = vld [vmem:[#allocation14 + $0x800] sm:$0xff]
    %v3069 = vld [vmem:[#allocation14 + $0x808] sm:$0xff]
    %v3070 = vld [vmem:[#allocation14 + $0x810] sm:$0xff]
    %v3071 = vld [vmem:[#allocation14 + $0x818] sm:$0xff]
    %v3072 = vld [vmem:[#allocation14 + $0x820] sm:$0xff]
    %v3073 = vld [vmem:[#allocation14 + $0x828] sm:$0xff]
    %v3074 = vld [vmem:[#allocation14 + $0x830] sm:$0xff]
    %v3075 = vld [vmem:[#allocation14 + $0x838] sm:$0xff]
    %v3076 = vld [vmem:[#allocation14 + $0x840] sm:$0xff]
    %v3077 = vld [vmem:[#allocation14 + $0x848] sm:$0xff]
    %v3078 = vld [vmem:[#allocation14 + $0x850] sm:$0xff]
    %v3079 = vld [vmem:[#allocation14 + $0x858] sm:$0xff]
    %v3080 = vld [vmem:[#allocation14 + $0x860] sm:$0xff]
    %v3081 = vld [vmem:[#allocation14 + $0x868] sm:$0xff]
    %v3082 = vld [vmem:[#allocation14 + $0x870] sm:$0xff]
    %v3083 = vld [vmem:[#allocation14 + $0x878] sm:$0xff]
    %v3084 = vld [vmem:[#allocation14 + $0x880] sm:$0xff]
    %v3085 = vld [vmem:[#allocation14 + $0x888] sm:$0xff]
    %v3086 = vld [vmem:[#allocation14 + $0x890] sm:$0xff]
    %v3087 = vld [vmem:[#allocation14 + $0x898] sm:$0xff]
    %v3088 = vld [vmem:[#allocation14 + $0x8a0] sm:$0xff]
    %v3089 = vld [vmem:[#allocation14 + $0x8a8] sm:$0xff]
    %v3090 = vld [vmem:[#allocation14 + $0x8b0] sm:$0xff]
    %v3091 = vld [vmem:[#allocation14 + $0x8b8] sm:$0xff]
    %v3092 = vld [vmem:[#allocation14 + $0x8c0] sm:$0xff]
    %v3093 = vld [vmem:[#allocation14 + $0x8c8] sm:$0xff]
    %v3094 = vld [vmem:[#allocation14 + $0x8d0] sm:$0xff]
    %v3095 = vld [vmem:[#allocation14 + $0x8d8] sm:$0xff]
    %v3096 = vld [vmem:[#allocation14 + $0x8e0] sm:$0xff]
    %v3097 = vld [vmem:[#allocation14 + $0x8e8] sm:$0xff]
    %v3098 = vld [vmem:[#allocation14 + $0x8f0] sm:$0xff]
    %v3099 = vld [vmem:[#allocation14 + $0x8f8] sm:$0xff]
    %v3100 = vld [vmem:[#allocation14 + $0x900] sm:$0xff]
    %v3101 = vld [vmem:[#allocation14 + $0x908] sm:$0xff]
    %v3102 = vld [vmem:[#allocation14 + $0x910] sm:$0xff]
    %v3103 = vld [vmem:[#allocation14 + $0x918] sm:$0xff]
    %v3104 = vld [vmem:[#allocation14 + $0x920] sm:$0xff]
    %v3105 = vld [vmem:[#allocation14 + $0x928] sm:$0xff]
    %v3106 = vld [vmem:[#allocation14 + $0x930] sm:$0xff]
    %v3107 = vld [vmem:[#allocation14 + $0x938] sm:$0xff]
    %v3108 = vld [vmem:[#allocation14 + $0x940] sm:$0xff]
    %v3109 = vld [vmem:[#allocation14 + $0x948] sm:$0xff]
    %v3110 = vld [vmem:[#allocation14 + $0x950] sm:$0xff]
    %v3111 = vld [vmem:[#allocation14 + $0x958] sm:$0xff]
    %v3112 = vld [vmem:[#allocation14 + $0x960] sm:$0xff]
    %v3113 = vld [vmem:[#allocation14 + $0x968] sm:$0xff]
    %v3114 = vld [vmem:[#allocation14 + $0x970] sm:$0xff]
    %v3115 = vld [vmem:[#allocation14 + $0x978] sm:$0xff]
    %v3116 = vld [vmem:[#allocation14 + $0x980] sm:$0xff]
    %v3117 = vld [vmem:[#allocation14 + $0x988] sm:$0xff]
    %v3118 = vld [vmem:[#allocation14 + $0x990] sm:$0xff]
    %v3119 = vld [vmem:[#allocation14 + $0x998] sm:$0xff]
    %v3120 = vld [vmem:[#allocation14 + $0x9a0] sm:$0xff]
    %v3121 = vld [vmem:[#allocation14 + $0x9a8] sm:$0xff]
    %v3122 = vld [vmem:[#allocation14 + $0x9b0] sm:$0xff]
    %v3123 = vld [vmem:[#allocation14 + $0x9b8] sm:$0xff]
    %v3124 = vld [vmem:[#allocation14 + $0x9c0] sm:$0xff]
    %v3125 = vld [vmem:[#allocation14 + $0x9c8] sm:$0xff]
    %v3126 = vld [vmem:[#allocation14 + $0x9d0] sm:$0xff]
    %v3127 = vld [vmem:[#allocation14 + $0x9d8] sm:$0xff]
    %v3128 = vld [vmem:[#allocation14 + $0x9e0] sm:$0xff]
    %v3129 = vld [vmem:[#allocation14 + $0x9e8] sm:$0xff]
    %v3130 = vld [vmem:[#allocation14 + $0x9f0] sm:$0xff]
    %v3131 = vld [vmem:[#allocation14 + $0x9f8] sm:$0xff]
    %v3132 = vld [vmem:[#allocation14 + $0xa00] sm:$0xff]
    %v3133 = vld [vmem:[#allocation14 + $0xa08] sm:$0xff]
    %v3134 = vld [vmem:[#allocation14 + $0xa10] sm:$0xff]
    %v3135 = vld [vmem:[#allocation14 + $0xa18] sm:$0xff]
    %v3136 = vld [vmem:[#allocation14 + $0xa20] sm:$0xff]
    %v3137 = vld [vmem:[#allocation14 + $0xa28] sm:$0xff]
    %v3138 = vld [vmem:[#allocation14 + $0xa30] sm:$0xff]
    %v3139 = vld [vmem:[#allocation14 + $0xa38] sm:$0xff]
    %v3140 = vld [vmem:[#allocation14 + $0xa40] sm:$0xff]
    %v3141 = vld [vmem:[#allocation14 + $0xa48] sm:$0xff]
    %v3142 = vld [vmem:[#allocation14 + $0xa50] sm:$0xff]
    %v3143 = vld [vmem:[#allocation14 + $0xa58] sm:$0xff]
    %v3144 = vld [vmem:[#allocation14 + $0xa60] sm:$0xff]
    %v3145 = vld [vmem:[#allocation14 + $0xa68] sm:$0xff]
    %v3146 = vld [vmem:[#allocation14 + $0xa70] sm:$0xff]
    %v3147 = vld [vmem:[#allocation14 + $0xa78] sm:$0xff]
    %v3148 = vld [vmem:[#allocation14 + $0xa80] sm:$0xff]
    %v3149 = vld [vmem:[#allocation14 + $0xa88] sm:$0xff]
    %v3150 = vld [vmem:[#allocation14 + $0xa90] sm:$0xff]
    %v3151 = vld [vmem:[#allocation14 + $0xa98] sm:$0xff]
    %v3152 = vld [vmem:[#allocation14 + $0xaa0] sm:$0xff]
    %v3153 = vld [vmem:[#allocation14 + $0xaa8] sm:$0xff]
    %v3154 = vld [vmem:[#allocation14 + $0xab0] sm:$0xff]
    %v3155 = vld [vmem:[#allocation14 + $0xab8] sm:$0xff]
    %v3156 = vld [vmem:[#allocation14 + $0xac0] sm:$0xff]
    %v3157 = vld [vmem:[#allocation14 + $0xac8] sm:$0xff]
    %v3158 = vld [vmem:[#allocation14 + $0xad0] sm:$0xff]
    %v3159 = vld [vmem:[#allocation14 + $0xad8] sm:$0xff]
    %v3160 = vld [vmem:[#allocation14 + $0xae0] sm:$0xff]
    %v3161 = vld [vmem:[#allocation14 + $0xae8] sm:$0xff]
    %v3162 = vld [vmem:[#allocation14 + $0xaf0] sm:$0xff]
    %v3163 = vld [vmem:[#allocation14 + $0xaf8] sm:$0xff]
    %v3164 = vld [vmem:[#allocation14 + $0xb00] sm:$0xff]
    %v3165 = vld [vmem:[#allocation14 + $0xb08] sm:$0xff]
    %v3166 = vld [vmem:[#allocation14 + $0xb10] sm:$0xff]
    %v3167 = vld [vmem:[#allocation14 + $0xb18] sm:$0xff]
    %v3168 = vld [vmem:[#allocation14 + $0xb20] sm:$0xff]
    %v3169 = vld [vmem:[#allocation14 + $0xb28] sm:$0xff]
    %v3170 = vld [vmem:[#allocation14 + $0xb30] sm:$0xff]
    %v3171 = vld [vmem:[#allocation14 + $0xb38] sm:$0xff]
    %v3172 = vld [vmem:[#allocation14 + $0xb40] sm:$0xff]
    %v3173 = vld [vmem:[#allocation14 + $0xb48] sm:$0xff]
    %v3174 = vld [vmem:[#allocation14 + $0xb50] sm:$0xff]
    %v3175 = vld [vmem:[#allocation14 + $0xb58] sm:$0xff]
    %v3176 = vld [vmem:[#allocation14 + $0xb60] sm:$0xff]
    %v3177 = vld [vmem:[#allocation14 + $0xb68] sm:$0xff]
    %v3178 = vld [vmem:[#allocation14 + $0xb70] sm:$0xff]
    %v3179 = vld [vmem:[#allocation14 + $0xb78] sm:$0xff]
    %v3180 = vld [vmem:[#allocation14 + $0xb80] sm:$0xff]
    %v3181 = vld [vmem:[#allocation14 + $0xb88] sm:$0xff]
    %v3182 = vld [vmem:[#allocation14 + $0xb90] sm:$0xff]
    %v3183 = vld [vmem:[#allocation14 + $0xb98] sm:$0xff]
    %v3184 = vld [vmem:[#allocation14 + $0xba0] sm:$0xff]
    %v3185 = vld [vmem:[#allocation14 + $0xba8] sm:$0xff]
    %v3186 = vld [vmem:[#allocation14 + $0xbb0] sm:$0xff]
    %v3187 = vld [vmem:[#allocation14 + $0xbb8] sm:$0xff]
    %v3188 = vld [vmem:[#allocation14 + $0xbc0] sm:$0xff]
    %v3189 = vld [vmem:[#allocation14 + $0xbc8] sm:$0xff]
    %v3190 = vld [vmem:[#allocation14 + $0xbd0] sm:$0xff]
    %v3191 = vld [vmem:[#allocation14 + $0xbd8] sm:$0xff]
    %v3192 = vld [vmem:[#allocation14 + $0xbe0] sm:$0xff]
    %v3193 = vld [vmem:[#allocation14 + $0xbe8] sm:$0xff]
    %v3194 = vld [vmem:[#allocation14 + $0xbf0] sm:$0xff]
    %v3195 = vld [vmem:[#allocation14 + $0xbf8] sm:$0xff]
    %v3196 = vld [vmem:[#allocation15] sm:$0x3f]
    %v3198 = vperm.slane %v3196, 0
    %v3199 = vperm.slane %v3196, 1
    %v3200 = vperm.slane %v3196, 2
    %v3201 = vperm.slane %v3196, 3
    %v3202 = vperm.slane %v3196, 4
    %v3203 = vperm.slane %v3196, 5
    %v3594 = vunpack.c.l.b16 %v2812
    %v3595 = vunpack.c.h.b16 %v2812
    %v3596 = vunpack.c.l.b16 %v2813
    %v3597 = vunpack.c.h.b16 %v2813
    %v3598 = vunpack.c.l.b16 %v2814
    %v3599 = vunpack.c.h.b16 %v2814
    %v3600 = vunpack.c.l.b16 %v2815
    %v3601 = vunpack.c.h.b16 %v2815
    %v3602 = vunpack.c.l.b16 %v2816
    %v3603 = vunpack.c.h.b16 %v2816
    %v3604 = vunpack.c.l.b16 %v2817
    %v3605 = vunpack.c.h.b16 %v2817
    %v3606 = vunpack.c.l.b16 %v2818
    %v3607 = vunpack.c.h.b16 %v2818
    %v3608 = vunpack.c.l.b16 %v2819
    %v3609 = vunpack.c.h.b16 %v2819
    %v3610 = vunpack.c.l.b16 %v2820
    %v3611 = vunpack.c.h.b16 %v2820
    %v3612 = vunpack.c.l.b16 %v2821
    %v3613 = vunpack.c.h.b16 %v2821
    %v3614 = vunpack.c.l.b16 %v2822
    %v3615 = vunpack.c.h.b16 %v2822
    %v3616 = vunpack.c.l.b16 %v2823
    %v3617 = vunpack.c.h.b16 %v2823
    %v3618 = vunpack.c.l.b16 %v2824
    %v3619 = vunpack.c.h.b16 %v2824
    %v3620 = vunpack.c.l.b16 %v2825
    %v3621 = vunpack.c.h.b16 %v2825
    %v3622 = vunpack.c.l.b16 %v2826
    %v3623 = vunpack.c.h.b16 %v2826
    %v3624 = vunpack.c.l.b16 %v2827
    %v3625 = vunpack.c.h.b16 %v2827
    %v3626 = vunpack.c.l.b16 %v2828
    %v3627 = vunpack.c.h.b16 %v2828
    %v3628 = vunpack.c.l.b16 %v2829
    %v3629 = vunpack.c.h.b16 %v2829
    %v3630 = vunpack.c.l.b16 %v2830
    %v3631 = vunpack.c.h.b16 %v2830
    %v3632 = vunpack.c.l.b16 %v2831
    %v3633 = vunpack.c.h.b16 %v2831
    %v3634 = vunpack.c.l.b16 %v2832
    %v3635 = vunpack.c.h.b16 %v2832
    %v3636 = vunpack.c.l.b16 %v2833
    %v3637 = vunpack.c.h.b16 %v2833
    %v3638 = vunpack.c.l.b16 %v2834
    %v3639 = vunpack.c.h.b16 %v2834
    %v3640 = vunpack.c.l.b16 %v2835
    %v3641 = vunpack.c.h.b16 %v2835
    %v3642 = vunpack.c.l.b16 %v2836
    %v3643 = vunpack.c.h.b16 %v2836
    %v3644 = vunpack.c.l.b16 %v2837
    %v3645 = vunpack.c.h.b16 %v2837
    %v3646 = vunpack.c.l.b16 %v2838
    %v3647 = vunpack.c.h.b16 %v2838
    %v3648 = vunpack.c.l.b16 %v2839
    %v3649 = vunpack.c.h.b16 %v2839
    %v3650 = vunpack.c.l.b16 %v2840
    %v3651 = vunpack.c.h.b16 %v2840
    %v3652 = vunpack.c.l.b16 %v2841
    %v3653 = vunpack.c.h.b16 %v2841
    %v3654 = vunpack.c.l.b16 %v2842
    %v3655 = vunpack.c.h.b16 %v2842
    %v3656 = vunpack.c.l.b16 %v2843
    %v3657 = vunpack.c.h.b16 %v2843
    %v3658 = vunpack.c.l.b16 %v2844
    %v3659 = vunpack.c.h.b16 %v2844
    %v3660 = vunpack.c.l.b16 %v2845
    %v3661 = vunpack.c.h.b16 %v2845
    %v3662 = vunpack.c.l.b16 %v2846
    %v3663 = vunpack.c.h.b16 %v2846
    %v3664 = vunpack.c.l.b16 %v2847
    %v3665 = vunpack.c.h.b16 %v2847
    %v3666 = vunpack.c.l.b16 %v2848
    %v3667 = vunpack.c.h.b16 %v2848
    %v3668 = vunpack.c.l.b16 %v2849
    %v3669 = vunpack.c.h.b16 %v2849
    %v3670 = vunpack.c.l.b16 %v2850
    %v3671 = vunpack.c.h.b16 %v2850
    %v3672 = vunpack.c.l.b16 %v2851
    %v3673 = vunpack.c.h.b16 %v2851
    %v3674 = vunpack.c.l.b16 %v2852
    %v3675 = vunpack.c.h.b16 %v2852
    %v3676 = vunpack.c.l.b16 %v2853
    %v3677 = vunpack.c.h.b16 %v2853
    %v3678 = vunpack.c.l.b16 %v2854
    %v3679 = vunpack.c.h.b16 %v2854
    %v3680 = vunpack.c.l.b16 %v2855
    %v3681 = vunpack.c.h.b16 %v2855
    %v3682 = vunpack.c.l.b16 %v2856
    %v3683 = vunpack.c.h.b16 %v2856
    %v3684 = vunpack.c.l.b16 %v2857
    %v3685 = vunpack.c.h.b16 %v2857
    %v3686 = vunpack.c.l.b16 %v2858
    %v3687 = vunpack.c.h.b16 %v2858
    %v3688 = vunpack.c.l.b16 %v2859
    %v3689 = vunpack.c.h.b16 %v2859
    %v3690 = vunpack.c.l.b16 %v2860
    %v3691 = vunpack.c.h.b16 %v2860
    %v3692 = vunpack.c.l.b16 %v2861
    %v3693 = vunpack.c.h.b16 %v2861
    %v3694 = vunpack.c.l.b16 %v2862
    %v3695 = vunpack.c.h.b16 %v2862
    %v3696 = vunpack.c.l.b16 %v2863
    %v3697 = vunpack.c.h.b16 %v2863
    %v3698 = vunpack.c.l.b16 %v2864
    %v3699 = vunpack.c.h.b16 %v2864
    %v3700 = vunpack.c.l.b16 %v2865
    %v3701 = vunpack.c.h.b16 %v2865
    %v3702 = vunpack.c.l.b16 %v2866
    %v3703 = vunpack.c.h.b16 %v2866
    %v3704 = vunpack.c.l.b16 %v2867
    %v3705 = vunpack.c.h.b16 %v2867
    %v3706 = vunpack.c.l.b16 %v2868
    %v3707 = vunpack.c.h.b16 %v2868
    %v3708 = vunpack.c.l.b16 %v2869
    %v3709 = vunpack.c.h.b16 %v2869
    %v3710 = vunpack.c.l.b16 %v2870
    %v3711 = vunpack.c.h.b16 %v2870
    %v3712 = vunpack.c.l.b16 %v2871
    %v3713 = vunpack.c.h.b16 %v2871
    %v3714 = vunpack.c.l.b16 %v2872
    %v3715 = vunpack.c.h.b16 %v2872
    %v3716 = vunpack.c.l.b16 %v2873
    %v3717 = vunpack.c.h.b16 %v2873
    %v3718 = vunpack.c.l.b16 %v2874
    %v3719 = vunpack.c.h.b16 %v2874
    %v3720 = vunpack.c.l.b16 %v2875
    %v3721 = vunpack.c.h.b16 %v2875
    %v3722 = vunpack.c.l.b16 %v2876
    %v3723 = vunpack.c.h.b16 %v2876
    %v3724 = vunpack.c.l.b16 %v2877
    %v3725 = vunpack.c.h.b16 %v2877
    %v3726 = vunpack.c.l.b16 %v2878
    %v3727 = vunpack.c.h.b16 %v2878
    %v3728 = vunpack.c.l.b16 %v2879
    %v3729 = vunpack.c.h.b16 %v2879
    %v3730 = vunpack.c.l.b16 %v2880
    %v3731 = vunpack.c.h.b16 %v2880
    %v3732 = vunpack.c.l.b16 %v2881
    %v3733 = vunpack.c.h.b16 %v2881
    %v3734 = vunpack.c.l.b16 %v2882
    %v3735 = vunpack.c.h.b16 %v2882
    %v3736 = vunpack.c.l.b16 %v2883
    %v3737 = vunpack.c.h.b16 %v2883
    %v3738 = vunpack.c.l.b16 %v2884
    %v3739 = vunpack.c.h.b16 %v2884
    %v3740 = vunpack.c.l.b16 %v2885
    %v3741 = vunpack.c.h.b16 %v2885
    %v3742 = vunpack.c.l.b16 %v2886
    %v3743 = vunpack.c.h.b16 %v2886
    %v3744 = vunpack.c.l.b16 %v2887
    %v3745 = vunpack.c.h.b16 %v2887
    %v3746 = vunpack.c.l.b16 %v2888
    %v3747 = vunpack.c.h.b16 %v2888
    %v3748 = vunpack.c.l.b16 %v2889
    %v3749 = vunpack.c.h.b16 %v2889
    %v3750 = vunpack.c.l.b16 %v2890
    %v3751 = vunpack.c.h.b16 %v2890
    %v3752 = vunpack.c.l.b16 %v2891
    %v3753 = vunpack.c.h.b16 %v2891
    %v3754 = vunpack.c.l.b16 %v2892
    %v3755 = vunpack.c.h.b16 %v2892
    %v3756 = vunpack.c.l.b16 %v2893
    %v3757 = vunpack.c.h.b16 %v2893
    %v3758 = vunpack.c.l.b16 %v2894
    %v3759 = vunpack.c.h.b16 %v2894
    %v3760 = vunpack.c.l.b16 %v2895
    %v3761 = vunpack.c.h.b16 %v2895
    %v3762 = vunpack.c.l.b16 %v2896
    %v3763 = vunpack.c.h.b16 %v2896
    %v3764 = vunpack.c.l.b16 %v2897
    %v3765 = vunpack.c.h.b16 %v2897
    %v3766 = vunpack.c.l.b16 %v2898
    %v3767 = vunpack.c.h.b16 %v2898
    %v3768 = vunpack.c.l.b16 %v2899
    %v3769 = vunpack.c.h.b16 %v2899
    %v3770 = vunpack.c.l.b16 %v2900
    %v3771 = vunpack.c.h.b16 %v2900
    %v3772 = vunpack.c.l.b16 %v2901
    %v3773 = vunpack.c.h.b16 %v2901
    %v3774 = vunpack.c.l.b16 %v2902
    %v3775 = vunpack.c.h.b16 %v2902
    %v3776 = vunpack.c.l.b16 %v2903
    %v3777 = vunpack.c.h.b16 %v2903
    %v3778 = vunpack.c.l.b16 %v2904
    %v3779 = vunpack.c.h.b16 %v2904
    %v3780 = vunpack.c.l.b16 %v2905
    %v3781 = vunpack.c.h.b16 %v2905
    %v3782 = vunpack.c.l.b16 %v2906
    %v3783 = vunpack.c.h.b16 %v2906
    %v3784 = vunpack.c.l.b16 %v2907
    %v3785 = vunpack.c.h.b16 %v2907
    %v3786 = vunpack.c.l.b16 %v2908
    %v3787 = vunpack.c.h.b16 %v2908
    %v3788 = vunpack.c.l.b16 %v2909
    %v3789 = vunpack.c.h.b16 %v2909
    %v3790 = vunpack.c.l.b16 %v2910
    %v3791 = vunpack.c.h.b16 %v2910
    %v3792 = vunpack.c.l.b16 %v2911
    %v3793 = vunpack.c.h.b16 %v2911
    %v3794 = vunpack.c.l.b16 %v2912
    %v3795 = vunpack.c.h.b16 %v2912
    %v3796 = vunpack.c.l.b16 %v2913
    %v3797 = vunpack.c.h.b16 %v2913
    %v3798 = vunpack.c.l.b16 %v2914
    %v3799 = vunpack.c.h.b16 %v2914
    %v3800 = vunpack.c.l.b16 %v2915
    %v3801 = vunpack.c.h.b16 %v2915
    %v3802 = vunpack.c.l.b16 %v2916
    %v3803 = vunpack.c.h.b16 %v2916
    %v3804 = vunpack.c.l.b16 %v2917
    %v3805 = vunpack.c.h.b16 %v2917
    %v3806 = vunpack.c.l.b16 %v2918
    %v3807 = vunpack.c.h.b16 %v2918
    %v3808 = vunpack.c.l.b16 %v2919
    %v3809 = vunpack.c.h.b16 %v2919
    %v3810 = vunpack.c.l.b16 %v2920
    %v3811 = vunpack.c.h.b16 %v2920
    %v3812 = vunpack.c.l.b16 %v2921
    %v3813 = vunpack.c.h.b16 %v2921
    %v3814 = vunpack.c.l.b16 %v2922
    %v3815 = vunpack.c.h.b16 %v2922
    %v3816 = vunpack.c.l.b16 %v2923
    %v3817 = vunpack.c.h.b16 %v2923
    %v3818 = vunpack.c.l.b16 %v2924
    %v3819 = vunpack.c.h.b16 %v2924
    %v3820 = vunpack.c.l.b16 %v2925
    %v3821 = vunpack.c.h.b16 %v2925
    %v3822 = vunpack.c.l.b16 %v2926
    %v3823 = vunpack.c.h.b16 %v2926
    %v3824 = vunpack.c.l.b16 %v2927
    %v3825 = vunpack.c.h.b16 %v2927
    %v3826 = vunpack.c.l.b16 %v2928
    %v3827 = vunpack.c.h.b16 %v2928
    %v3828 = vunpack.c.l.b16 %v2929
    %v3829 = vunpack.c.h.b16 %v2929
    %v3830 = vunpack.c.l.b16 %v2930
    %v3831 = vunpack.c.h.b16 %v2930
    %v3832 = vunpack.c.l.b16 %v2931
    %v3833 = vunpack.c.h.b16 %v2931
    %v3834 = vunpack.c.l.b16 %v2932
    %v3835 = vunpack.c.h.b16 %v2932
    %v3836 = vunpack.c.l.b16 %v2933
    %v3837 = vunpack.c.h.b16 %v2933
    %v3838 = vunpack.c.l.b16 %v2934
    %v3839 = vunpack.c.h.b16 %v2934
    %v3840 = vunpack.c.l.b16 %v2935
    %v3841 = vunpack.c.h.b16 %v2935
    %v3842 = vunpack.c.l.b16 %v2936
    %v3843 = vunpack.c.h.b16 %v2936
    %v3844 = vunpack.c.l.b16 %v2937
    %v3845 = vunpack.c.h.b16 %v2937
    %v3846 = vunpack.c.l.b16 %v2938
    %v3847 = vunpack.c.h.b16 %v2938
    %v3848 = vunpack.c.l.b16 %v2939
    %v3849 = vunpack.c.h.b16 %v2939
    %v3850 = vunpack.c.l.b16 %v2940
    %v3851 = vunpack.c.h.b16 %v2940
    %v3852 = vunpack.c.l.b16 %v2941
    %v3853 = vunpack.c.h.b16 %v2941
    %v3854 = vunpack.c.l.b16 %v2942
    %v3855 = vunpack.c.h.b16 %v2942
    %v3856 = vunpack.c.l.b16 %v2943
    %v3857 = vunpack.c.h.b16 %v2943
    %v3858 = vunpack.c.l.b16 %v2944
    %v3859 = vunpack.c.h.b16 %v2944
    %v3860 = vunpack.c.l.b16 %v2945
    %v3861 = vunpack.c.h.b16 %v2945
    %v3862 = vunpack.c.l.b16 %v2946
    %v3863 = vunpack.c.h.b16 %v2946
    %v3864 = vunpack.c.l.b16 %v2947
    %v3865 = vunpack.c.h.b16 %v2947
    %v3866 = vunpack.c.l.b16 %v2948
    %v3867 = vunpack.c.h.b16 %v2948
    %v3868 = vunpack.c.l.b16 %v2949
    %v3869 = vunpack.c.h.b16 %v2949
    %v3870 = vunpack.c.l.b16 %v2950
    %v3871 = vunpack.c.h.b16 %v2950
    %v3872 = vunpack.c.l.b16 %v2951
    %v3873 = vunpack.c.h.b16 %v2951
    %v3874 = vunpack.c.l.b16 %v2952
    %v3875 = vunpack.c.h.b16 %v2952
    %v3876 = vunpack.c.l.b16 %v2953
    %v3877 = vunpack.c.h.b16 %v2953
    %v3878 = vunpack.c.l.b16 %v2954
    %v3879 = vunpack.c.h.b16 %v2954
    %v3880 = vunpack.c.l.b16 %v2955
    %v3881 = vunpack.c.h.b16 %v2955
    %v3882 = vunpack.c.l.b16 %v2956
    %v3883 = vunpack.c.h.b16 %v2956
    %v3884 = vunpack.c.l.b16 %v2957
    %v3885 = vunpack.c.h.b16 %v2957
    %v3886 = vunpack.c.l.b16 %v2958
    %v3887 = vunpack.c.h.b16 %v2958
    %v3888 = vunpack.c.l.b16 %v2959
    %v3889 = vunpack.c.h.b16 %v2959
    %v3890 = vunpack.c.l.b16 %v2960
    %v3891 = vunpack.c.h.b16 %v2960
    %v3892 = vunpack.c.l.b16 %v2961
    %v3893 = vunpack.c.h.b16 %v2961
    %v3894 = vunpack.c.l.b16 %v2962
    %v3895 = vunpack.c.h.b16 %v2962
    %v3896 = vunpack.c.l.b16 %v2963
    %v3897 = vunpack.c.h.b16 %v2963
    %v3898 = vunpack.c.l.b16 %v2964
    %v3899 = vunpack.c.h.b16 %v2964
    %v3900 = vunpack.c.l.b16 %v2965
    %v3901 = vunpack.c.h.b16 %v2965
    %v3902 = vunpack.c.l.b16 %v2966
    %v3903 = vunpack.c.h.b16 %v2966
    %v3904 = vunpack.c.l.b16 %v2967
    %v3905 = vunpack.c.h.b16 %v2967
    %v3906 = vunpack.c.l.b16 %v2968
    %v3907 = vunpack.c.h.b16 %v2968
    %v3908 = vunpack.c.l.b16 %v2969
    %v3909 = vunpack.c.h.b16 %v2969
    %v3910 = vunpack.c.l.b16 %v2970
    %v3911 = vunpack.c.h.b16 %v2970
    %v3912 = vunpack.c.l.b16 %v2971
    %v3913 = vunpack.c.h.b16 %v2971
    %v3914 = vunpack.c.l.b16 %v2972
    %v3915 = vunpack.c.h.b16 %v2972
    %v3916 = vunpack.c.l.b16 %v2973
    %v3917 = vunpack.c.h.b16 %v2973
    %v3918 = vunpack.c.l.b16 %v2974
    %v3919 = vunpack.c.h.b16 %v2974
    %v3920 = vunpack.c.l.b16 %v2975
    %v3921 = vunpack.c.h.b16 %v2975
    %v3922 = vunpack.c.l.b16 %v2976
    %v3923 = vunpack.c.h.b16 %v2976
    %v3924 = vunpack.c.l.b16 %v2977
    %v3925 = vunpack.c.h.b16 %v2977
    %v3926 = vunpack.c.l.b16 %v2978
    %v3927 = vunpack.c.h.b16 %v2978
    %v3928 = vunpack.c.l.b16 %v2979
    %v3929 = vunpack.c.h.b16 %v2979
    %v3930 = vunpack.c.l.b16 %v2980
    %v3931 = vunpack.c.h.b16 %v2980
    %v3932 = vunpack.c.l.b16 %v2981
    %v3933 = vunpack.c.h.b16 %v2981
    %v3934 = vunpack.c.l.b16 %v2982
    %v3935 = vunpack.c.h.b16 %v2982
    %v3936 = vunpack.c.l.b16 %v2983
    %v3937 = vunpack.c.h.b16 %v2983
    %v3938 = vunpack.c.l.b16 %v2984
    %v3939 = vunpack.c.h.b16 %v2984
    %v3940 = vunpack.c.l.b16 %v2985
    %v3941 = vunpack.c.h.b16 %v2985
    %v3942 = vunpack.c.l.b16 %v2986
    %v3943 = vunpack.c.h.b16 %v2986
    %v3944 = vunpack.c.l.b16 %v2987
    %v3945 = vunpack.c.h.b16 %v2987
    %v3946 = vunpack.c.l.b16 %v2988
    %v3947 = vunpack.c.h.b16 %v2988
    %v3948 = vunpack.c.l.b16 %v2989
    %v3949 = vunpack.c.h.b16 %v2989
    %v3950 = vunpack.c.l.b16 %v2990
    %v3951 = vunpack.c.h.b16 %v2990
    %v3952 = vunpack.c.l.b16 %v2991
    %v3953 = vunpack.c.h.b16 %v2991
    %v3954 = vunpack.c.l.b16 %v2992
    %v3955 = vunpack.c.h.b16 %v2992
    %v3956 = vunpack.c.l.b16 %v2993
    %v3957 = vunpack.c.h.b16 %v2993
    %v3958 = vunpack.c.l.b16 %v2994
    %v3959 = vunpack.c.h.b16 %v2994
    %v3960 = vunpack.c.l.b16 %v2995
    %v3961 = vunpack.c.h.b16 %v2995
    %v3962 = vunpack.c.l.b16 %v2996
    %v3963 = vunpack.c.h.b16 %v2996
    %v3964 = vunpack.c.l.b16 %v2997
    %v3965 = vunpack.c.h.b16 %v2997
    %v3966 = vunpack.c.l.b16 %v2998
    %v3967 = vunpack.c.h.b16 %v2998
    %v3968 = vunpack.c.l.b16 %v2999
    %v3969 = vunpack.c.h.b16 %v2999
    %v3970 = vunpack.c.l.b16 %v3000
    %v3971 = vunpack.c.h.b16 %v3000
    %v3972 = vunpack.c.l.b16 %v3001
    %v3973 = vunpack.c.h.b16 %v3001
    %v3974 = vunpack.c.l.b16 %v3002
    %v3975 = vunpack.c.h.b16 %v3002
    %v3976 = vunpack.c.l.b16 %v3003
    %v3977 = vunpack.c.h.b16 %v3003
    %v3978 = vunpack.c.l.b16 %v3004
    %v3979 = vunpack.c.h.b16 %v3004
    %v3980 = vunpack.c.l.b16 %v3005
    %v3981 = vunpack.c.h.b16 %v3005
    %v3982 = vunpack.c.l.b16 %v3006
    %v3983 = vunpack.c.h.b16 %v3006
    %v3984 = vunpack.c.l.b16 %v3007
    %v3985 = vunpack.c.h.b16 %v3007
    %v3986 = vunpack.c.l.b16 %v3008
    %v3987 = vunpack.c.h.b16 %v3008
    %v3988 = vunpack.c.l.b16 %v3009
    %v3989 = vunpack.c.h.b16 %v3009
    %v3990 = vunpack.c.l.b16 %v3010
    %v3991 = vunpack.c.h.b16 %v3010
    %v3992 = vunpack.c.l.b16 %v3011
    %v3993 = vunpack.c.h.b16 %v3011
    %v3994 = vunpack.c.l.b16 %v3012
    %v3995 = vunpack.c.h.b16 %v3012
    %v3996 = vunpack.c.l.b16 %v3013
    %v3997 = vunpack.c.h.b16 %v3013
    %v3998 = vunpack.c.l.b16 %v3014
    %v3999 = vunpack.c.h.b16 %v3014
    %v4000 = vunpack.c.l.b16 %v3015
    %v4001 = vunpack.c.h.b16 %v3015
    %v4002 = vunpack.c.l.b16 %v3016
    %v4003 = vunpack.c.h.b16 %v3016
    %v4004 = vunpack.c.l.b16 %v3017
    %v4005 = vunpack.c.h.b16 %v3017
    %v4006 = vunpack.c.l.b16 %v3018
    %v4007 = vunpack.c.h.b16 %v3018
    %v4008 = vunpack.c.l.b16 %v3019
    %v4009 = vunpack.c.h.b16 %v3019
    %v4010 = vunpack.c.l.b16 %v3020
    %v4011 = vunpack.c.h.b16 %v3020
    %v4012 = vunpack.c.l.b16 %v3021
    %v4013 = vunpack.c.h.b16 %v3021
    %v4014 = vunpack.c.l.b16 %v3022
    %v4015 = vunpack.c.h.b16 %v3022
    %v4016 = vunpack.c.l.b16 %v3023
    %v4017 = vunpack.c.h.b16 %v3023
    %v4018 = vunpack.c.l.b16 %v3024
    %v4019 = vunpack.c.h.b16 %v3024
    %v4020 = vunpack.c.l.b16 %v3025
    %v4021 = vunpack.c.h.b16 %v3025
    %v4022 = vunpack.c.l.b16 %v3026
    %v4023 = vunpack.c.h.b16 %v3026
    %v4024 = vunpack.c.l.b16 %v3027
    %v4025 = vunpack.c.h.b16 %v3027
    %v4026 = vunpack.c.l.b16 %v3028
    %v4027 = vunpack.c.h.b16 %v3028
    %v4028 = vunpack.c.l.b16 %v3029
    %v4029 = vunpack.c.h.b16 %v3029
    %v4030 = vunpack.c.l.b16 %v3030
    %v4031 = vunpack.c.h.b16 %v3030
    %v4032 = vunpack.c.l.b16 %v3031
    %v4033 = vunpack.c.h.b16 %v3031
    %v4034 = vunpack.c.l.b16 %v3032
    %v4035 = vunpack.c.h.b16 %v3032
    %v4036 = vunpack.c.l.b16 %v3033
    %v4037 = vunpack.c.h.b16 %v3033
    %v4038 = vunpack.c.l.b16 %v3034
    %v4039 = vunpack.c.h.b16 %v3034
    %v4040 = vunpack.c.l.b16 %v3035
    %v4041 = vunpack.c.h.b16 %v3035
    %v4042 = vunpack.c.l.b16 %v3036
    %v4043 = vunpack.c.h.b16 %v3036
    %v4044 = vunpack.c.l.b16 %v3037
    %v4045 = vunpack.c.h.b16 %v3037
    %v4046 = vunpack.c.l.b16 %v3038
    %v4047 = vunpack.c.h.b16 %v3038
    %v4048 = vunpack.c.l.b16 %v3039
    %v4049 = vunpack.c.h.b16 %v3039
    %v4050 = vunpack.c.l.b16 %v3040
    %v4051 = vunpack.c.h.b16 %v3040
    %v4052 = vunpack.c.l.b16 %v3041
    %v4053 = vunpack.c.h.b16 %v3041
    %v4054 = vunpack.c.l.b16 %v3042
    %v4055 = vunpack.c.h.b16 %v3042
    %v4056 = vunpack.c.l.b16 %v3043
    %v4057 = vunpack.c.h.b16 %v3043
    %v4058 = vunpack.c.l.b16 %v3044
    %v4059 = vunpack.c.h.b16 %v3044
    %v4060 = vunpack.c.l.b16 %v3045
    %v4061 = vunpack.c.h.b16 %v3045
    %v4062 = vunpack.c.l.b16 %v3046
    %v4063 = vunpack.c.h.b16 %v3046
    %v4064 = vunpack.c.l.b16 %v3047
    %v4065 = vunpack.c.h.b16 %v3047
    %v4066 = vunpack.c.l.b16 %v3048
    %v4067 = vunpack.c.h.b16 %v3048
    %v4068 = vunpack.c.l.b16 %v3049
    %v4069 = vunpack.c.h.b16 %v3049
    %v4070 = vunpack.c.l.b16 %v3050
    %v4071 = vunpack.c.h.b16 %v3050
    %v4072 = vunpack.c.l.b16 %v3051
    %v4073 = vunpack.c.h.b16 %v3051
    %v4074 = vunpack.c.l.b16 %v3052
    %v4075 = vunpack.c.h.b16 %v3052
    %v4076 = vunpack.c.l.b16 %v3053
    %v4077 = vunpack.c.h.b16 %v3053
    %v4078 = vunpack.c.l.b16 %v3054
    %v4079 = vunpack.c.h.b16 %v3054
    %v4080 = vunpack.c.l.b16 %v3055
    %v4081 = vunpack.c.h.b16 %v3055
    %v4082 = vunpack.c.l.b16 %v3056
    %v4083 = vunpack.c.h.b16 %v3056
    %v4084 = vunpack.c.l.b16 %v3057
    %v4085 = vunpack.c.h.b16 %v3057
    %v4086 = vunpack.c.l.b16 %v3058
    %v4087 = vunpack.c.h.b16 %v3058
    %v4088 = vunpack.c.l.b16 %v3059
    %v4089 = vunpack.c.h.b16 %v3059
    %v4090 = vunpack.c.l.b16 %v3060
    %v4091 = vunpack.c.h.b16 %v3060
    %v4092 = vunpack.c.l.b16 %v3061
    %v4093 = vunpack.c.h.b16 %v3061
    %v4094 = vunpack.c.l.b16 %v3062
    %v4095 = vunpack.c.h.b16 %v3062
    %v4096 = vunpack.c.l.b16 %v3063
    %v4097 = vunpack.c.h.b16 %v3063
    %v4098 = vunpack.c.l.b16 %v3064
    %v4099 = vunpack.c.h.b16 %v3064
    %v4100 = vunpack.c.l.b16 %v3065
    %v4101 = vunpack.c.h.b16 %v3065
    %v4102 = vunpack.c.l.b16 %v3066
    %v4103 = vunpack.c.h.b16 %v3066
    %v4104 = vunpack.c.l.b16 %v3067
    %v4105 = vunpack.c.h.b16 %v3067
    %v4106 = vunpack.c.l.b16 %v3068
    %v4107 = vunpack.c.h.b16 %v3068
    %v4108 = vunpack.c.l.b16 %v3069
    %v4109 = vunpack.c.h.b16 %v3069
    %v4110 = vunpack.c.l.b16 %v3070
    %v4111 = vunpack.c.h.b16 %v3070
    %v4112 = vunpack.c.l.b16 %v3071
    %v4113 = vunpack.c.h.b16 %v3071
    %v4114 = vunpack.c.l.b16 %v3072
    %v4115 = vunpack.c.h.b16 %v3072
    %v4116 = vunpack.c.l.b16 %v3073
    %v4117 = vunpack.c.h.b16 %v3073
    %v4118 = vunpack.c.l.b16 %v3074
    %v4119 = vunpack.c.h.b16 %v3074
    %v4120 = vunpack.c.l.b16 %v3075
    %v4121 = vunpack.c.h.b16 %v3075
    %v4122 = vunpack.c.l.b16 %v3076
    %v4123 = vunpack.c.h.b16 %v3076
    %v4124 = vunpack.c.l.b16 %v3077
    %v4125 = vunpack.c.h.b16 %v3077
    %v4126 = vunpack.c.l.b16 %v3078
    %v4127 = vunpack.c.h.b16 %v3078
    %v4128 = vunpack.c.l.b16 %v3079
    %v4129 = vunpack.c.h.b16 %v3079
    %v4130 = vunpack.c.l.b16 %v3080
    %v4131 = vunpack.c.h.b16 %v3080
    %v4132 = vunpack.c.l.b16 %v3081
    %v4133 = vunpack.c.h.b16 %v3081
    %v4134 = vunpack.c.l.b16 %v3082
    %v4135 = vunpack.c.h.b16 %v3082
    %v4136 = vunpack.c.l.b16 %v3083
    %v4137 = vunpack.c.h.b16 %v3083
    %v4138 = vunpack.c.l.b16 %v3084
    %v4139 = vunpack.c.h.b16 %v3084
    %v4140 = vunpack.c.l.b16 %v3085
    %v4141 = vunpack.c.h.b16 %v3085
    %v4142 = vunpack.c.l.b16 %v3086
    %v4143 = vunpack.c.h.b16 %v3086
    %v4144 = vunpack.c.l.b16 %v3087
    %v4145 = vunpack.c.h.b16 %v3087
    %v4146 = vunpack.c.l.b16 %v3088
    %v4147 = vunpack.c.h.b16 %v3088
    %v4148 = vunpack.c.l.b16 %v3089
    %v4149 = vunpack.c.h.b16 %v3089
    %v4150 = vunpack.c.l.b16 %v3090
    %v4151 = vunpack.c.h.b16 %v3090
    %v4152 = vunpack.c.l.b16 %v3091
    %v4153 = vunpack.c.h.b16 %v3091
    %v4154 = vunpack.c.l.b16 %v3092
    %v4155 = vunpack.c.h.b16 %v3092
    %v4156 = vunpack.c.l.b16 %v3093
    %v4157 = vunpack.c.h.b16 %v3093
    %v4158 = vunpack.c.l.b16 %v3094
    %v4159 = vunpack.c.h.b16 %v3094
    %v4160 = vunpack.c.l.b16 %v3095
    %v4161 = vunpack.c.h.b16 %v3095
    %v4162 = vunpack.c.l.b16 %v3096
    %v4163 = vunpack.c.h.b16 %v3096
    %v4164 = vunpack.c.l.b16 %v3097
    %v4165 = vunpack.c.h.b16 %v3097
    %v4166 = vunpack.c.l.b16 %v3098
    %v4167 = vunpack.c.h.b16 %v3098
    %v4168 = vunpack.c.l.b16 %v3099
    %v4169 = vunpack.c.h.b16 %v3099
    %v4170 = vunpack.c.l.b16 %v3100
    %v4171 = vunpack.c.h.b16 %v3100
    %v4172 = vunpack.c.l.b16 %v3101
    %v4173 = vunpack.c.h.b16 %v3101
    %v4174 = vunpack.c.l.b16 %v3102
    %v4175 = vunpack.c.h.b16 %v3102
    %v4176 = vunpack.c.l.b16 %v3103
    %v4177 = vunpack.c.h.b16 %v3103
    %v4178 = vunpack.c.l.b16 %v3104
    %v4179 = vunpack.c.h.b16 %v3104
    %v4180 = vunpack.c.l.b16 %v3105
    %v4181 = vunpack.c.h.b16 %v3105
    %v4182 = vunpack.c.l.b16 %v3106
    %v4183 = vunpack.c.h.b16 %v3106
    %v4184 = vunpack.c.l.b16 %v3107
    %v4185 = vunpack.c.h.b16 %v3107
    %v4186 = vunpack.c.l.b16 %v3108
    %v4187 = vunpack.c.h.b16 %v3108
    %v4188 = vunpack.c.l.b16 %v3109
    %v4189 = vunpack.c.h.b16 %v3109
    %v4190 = vunpack.c.l.b16 %v3110
    %v4191 = vunpack.c.h.b16 %v3110
    %v4192 = vunpack.c.l.b16 %v3111
    %v4193 = vunpack.c.h.b16 %v3111
    %v4194 = vunpack.c.l.b16 %v3112
    %v4195 = vunpack.c.h.b16 %v3112
    %v4196 = vunpack.c.l.b16 %v3113
    %v4197 = vunpack.c.h.b16 %v3113
    %v4198 = vunpack.c.l.b16 %v3114
    %v4199 = vunpack.c.h.b16 %v3114
    %v4200 = vunpack.c.l.b16 %v3115
    %v4201 = vunpack.c.h.b16 %v3115
    %v4202 = vunpack.c.l.b16 %v3116
    %v4203 = vunpack.c.h.b16 %v3116
    %v4204 = vunpack.c.l.b16 %v3117
    %v4205 = vunpack.c.h.b16 %v3117
    %v4206 = vunpack.c.l.b16 %v3118
    %v4207 = vunpack.c.h.b16 %v3118
    %v4208 = vunpack.c.l.b16 %v3119
    %v4209 = vunpack.c.h.b16 %v3119
    %v4210 = vunpack.c.l.b16 %v3120
    %v4211 = vunpack.c.h.b16 %v3120
    %v4212 = vunpack.c.l.b16 %v3121
    %v4213 = vunpack.c.h.b16 %v3121
    %v4214 = vunpack.c.l.b16 %v3122
    %v4215 = vunpack.c.h.b16 %v3122
    %v4216 = vunpack.c.l.b16 %v3123
    %v4217 = vunpack.c.h.b16 %v3123
    %v4218 = vunpack.c.l.b16 %v3124
    %v4219 = vunpack.c.h.b16 %v3124
    %v4220 = vunpack.c.l.b16 %v3125
    %v4221 = vunpack.c.h.b16 %v3125
    %v4222 = vunpack.c.l.b16 %v3126
    %v4223 = vunpack.c.h.b16 %v3126
    %v4224 = vunpack.c.l.b16 %v3127
    %v4225 = vunpack.c.h.b16 %v3127
    %v4226 = vunpack.c.l.b16 %v3128
    %v4227 = vunpack.c.h.b16 %v3128
    %v4228 = vunpack.c.l.b16 %v3129
    %v4229 = vunpack.c.h.b16 %v3129
    %v4230 = vunpack.c.l.b16 %v3130
    %v4231 = vunpack.c.h.b16 %v3130
    %v4232 = vunpack.c.l.b16 %v3131
    %v4233 = vunpack.c.h.b16 %v3131
    %v4234 = vunpack.c.l.b16 %v3132
    %v4235 = vunpack.c.h.b16 %v3132
    %v4236 = vunpack.c.l.b16 %v3133
    %v4237 = vunpack.c.h.b16 %v3133
    %v4238 = vunpack.c.l.b16 %v3134
    %v4239 = vunpack.c.h.b16 %v3134
    %v4240 = vunpack.c.l.b16 %v3135
    %v4241 = vunpack.c.h.b16 %v3135
    %v4242 = vunpack.c.l.b16 %v3136
    %v4243 = vunpack.c.h.b16 %v3136
    %v4244 = vunpack.c.l.b16 %v3137
    %v4245 = vunpack.c.h.b16 %v3137
    %v4246 = vunpack.c.l.b16 %v3138
    %v4247 = vunpack.c.h.b16 %v3138
    %v4248 = vunpack.c.l.b16 %v3139
    %v4249 = vunpack.c.h.b16 %v3139
    %v4250 = vunpack.c.l.b16 %v3140
    %v4251 = vunpack.c.h.b16 %v3140
    %v4252 = vunpack.c.l.b16 %v3141
    %v4253 = vunpack.c.h.b16 %v3141
    %v4254 = vunpack.c.l.b16 %v3142
    %v4255 = vunpack.c.h.b16 %v3142
    %v4256 = vunpack.c.l.b16 %v3143
    %v4257 = vunpack.c.h.b16 %v3143
    %v4258 = vunpack.c.l.b16 %v3144
    %v4259 = vunpack.c.h.b16 %v3144
    %v4260 = vunpack.c.l.b16 %v3145
    %v4261 = vunpack.c.h.b16 %v3145
    %v4262 = vunpack.c.l.b16 %v3146
    %v4263 = vunpack.c.h.b16 %v3146
    %v4264 = vunpack.c.l.b16 %v3147
    %v4265 = vunpack.c.h.b16 %v3147
    %v4266 = vunpack.c.l.b16 %v3148
    %v4267 = vunpack.c.h.b16 %v3148
    %v4268 = vunpack.c.l.b16 %v3149
    %v4269 = vunpack.c.h.b16 %v3149
    %v4270 = vunpack.c.l.b16 %v3150
    %v4271 = vunpack.c.h.b16 %v3150
    %v4272 = vunpack.c.l.b16 %v3151
    %v4273 = vunpack.c.h.b16 %v3151
    %v4274 = vunpack.c.l.b16 %v3152
    %v4275 = vunpack.c.h.b16 %v3152
    %v4276 = vunpack.c.l.b16 %v3153
    %v4277 = vunpack.c.h.b16 %v3153
    %v4278 = vunpack.c.l.b16 %v3154
    %v4279 = vunpack.c.h.b16 %v3154
    %v4280 = vunpack.c.l.b16 %v3155
    %v4281 = vunpack.c.h.b16 %v3155
    %v4282 = vunpack.c.l.b16 %v3156
    %v4283 = vunpack.c.h.b16 %v3156
    %v4284 = vunpack.c.l.b16 %v3157
    %v4285 = vunpack.c.h.b16 %v3157
    %v4286 = vunpack.c.l.b16 %v3158
    %v4287 = vunpack.c.h.b16 %v3158
    %v4288 = vunpack.c.l.b16 %v3159
    %v4289 = vunpack.c.h.b16 %v3159
    %v4290 = vunpack.c.l.b16 %v3160
    %v4291 = vunpack.c.h.b16 %v3160
    %v4292 = vunpack.c.l.b16 %v3161
    %v4293 = vunpack.c.h.b16 %v3161
    %v4294 = vunpack.c.l.b16 %v3162
    %v4295 = vunpack.c.h.b16 %v3162
    %v4296 = vunpack.c.l.b16 %v3163
    %v4297 = vunpack.c.h.b16 %v3163
    %v4298 = vunpack.c.l.b16 %v3164
    %v4299 = vunpack.c.h.b16 %v3164
    %v4300 = vunpack.c.l.b16 %v3165
    %v4301 = vunpack.c.h.b16 %v3165
    %v4302 = vunpack.c.l.b16 %v3166
    %v4303 = vunpack.c.h.b16 %v3166
    %v4304 = vunpack.c.l.b16 %v3167
    %v4305 = vunpack.c.h.b16 %v3167
    %v4306 = vunpack.c.l.b16 %v3168
    %v4307 = vunpack.c.h.b16 %v3168
    %v4308 = vunpack.c.l.b16 %v3169
    %v4309 = vunpack.c.h.b16 %v3169
    %v4310 = vunpack.c.l.b16 %v3170
    %v4311 = vunpack.c.h.b16 %v3170
    %v4312 = vunpack.c.l.b16 %v3171
    %v4313 = vunpack.c.h.b16 %v3171
    %v4314 = vunpack.c.l.b16 %v3172
    %v4315 = vunpack.c.h.b16 %v3172
    %v4316 = vunpack.c.l.b16 %v3173
    %v4317 = vunpack.c.h.b16 %v3173
    %v4318 = vunpack.c.l.b16 %v3174
    %v4319 = vunpack.c.h.b16 %v3174
    %v4320 = vunpack.c.l.b16 %v3175
    %v4321 = vunpack.c.h.b16 %v3175
    %v4322 = vunpack.c.l.b16 %v3176
    %v4323 = vunpack.c.h.b16 %v3176
    %v4324 = vunpack.c.l.b16 %v3177
    %v4325 = vunpack.c.h.b16 %v3177
    %v4326 = vunpack.c.l.b16 %v3178
    %v4327 = vunpack.c.h.b16 %v3178
    %v4328 = vunpack.c.l.b16 %v3179
    %v4329 = vunpack.c.h.b16 %v3179
    %v4330 = vunpack.c.l.b16 %v3180
    %v4331 = vunpack.c.h.b16 %v3180
    %v4332 = vunpack.c.l.b16 %v3181
    %v4333 = vunpack.c.h.b16 %v3181
    %v4334 = vunpack.c.l.b16 %v3182
    %v4335 = vunpack.c.h.b16 %v3182
    %v4336 = vunpack.c.l.b16 %v3183
    %v4337 = vunpack.c.h.b16 %v3183
    %v4338 = vunpack.c.l.b16 %v3184
    %v4339 = vunpack.c.h.b16 %v3184
    %v4340 = vunpack.c.l.b16 %v3185
    %v4341 = vunpack.c.h.b16 %v3185
    %v4342 = vunpack.c.l.b16 %v3186
    %v4343 = vunpack.c.h.b16 %v3186
    %v4344 = vunpack.c.l.b16 %v3187
    %v4345 = vunpack.c.h.b16 %v3187
    %v4346 = vunpack.c.l.b16 %v3188
    %v4347 = vunpack.c.h.b16 %v3188
    %v4348 = vunpack.c.l.b16 %v3189
    %v4349 = vunpack.c.h.b16 %v3189
    %v4350 = vunpack.c.l.b16 %v3190
    %v4351 = vunpack.c.h.b16 %v3190
    %v4352 = vunpack.c.l.b16 %v3191
    %v4353 = vunpack.c.h.b16 %v3191
    %v4354 = vunpack.c.l.b16 %v3192
    %v4355 = vunpack.c.h.b16 %v3192
    %v4356 = vunpack.c.l.b16 %v3193
    %v4357 = vunpack.c.h.b16 %v3193
    %v4358 = vunpack.c.l.b16 %v3194
    %v4359 = vunpack.c.h.b16 %v3194
    %v4360 = vunpack.c.l.b16 %v3195
    %v4361 = vunpack.c.h.b16 %v3195
    %v4362 = vpack.c.b16 %v3600, %v3594
    %v4363 = vpack.c.b16 %v3601, %v3595
    %v4364 = vpack.c.b16 %v3602, %v3596
    %v4365 = vpack.c.b16 %v3603, %v3597
    %v4366 = vpack.c.b16 %v3604, %v3598
    %v4367 = vpack.c.b16 %v3605, %v3599
    %v4368 = vpack.c.b16 %v3612, %v3606
    %v4369 = vpack.c.b16 %v3613, %v3607
    %v4370 = vpack.c.b16 %v3614, %v3608
    %v4371 = vpack.c.b16 %v3615, %v3609
    %v4372 = vpack.c.b16 %v3616, %v3610
    %v4373 = vpack.c.b16 %v3617, %v3611
    %v4374 = vpack.c.b16 %v3624, %v3618
    %v4375 = vpack.c.b16 %v3625, %v3619
    %v4376 = vpack.c.b16 %v3626, %v3620
    %v4377 = vpack.c.b16 %v3627, %v3621
    %v4378 = vpack.c.b16 %v3628, %v3622
    %v4379 = vpack.c.b16 %v3629, %v3623
    %v4380 = vpack.c.b16 %v3636, %v3630
    %v4381 = vpack.c.b16 %v3637, %v3631
    %v4382 = vpack.c.b16 %v3638, %v3632
    %v4383 = vpack.c.b16 %v3639, %v3633
    %v4384 = vpack.c.b16 %v3640, %v3634
    %v4385 = vpack.c.b16 %v3641, %v3635
    %v4386 = vpack.c.b16 %v3648, %v3642
    %v4387 = vpack.c.b16 %v3649, %v3643
    %v4388 = vpack.c.b16 %v3650, %v3644
    %v4389 = vpack.c.b16 %v3651, %v3645
    %v4390 = vpack.c.b16 %v3652, %v3646
    %v4391 = vpack.c.b16 %v3653, %v3647
    %v4392 = vpack.c.b16 %v3660, %v3654
    %v4393 = vpack.c.b16 %v3661, %v3655
    %v4394 = vpack.c.b16 %v3662, %v3656
    %v4395 = vpack.c.b16 %v3663, %v3657
    %v4396 = vpack.c.b16 %v3664, %v3658
    %v4397 = vpack.c.b16 %v3665, %v3659
    %v4398 = vpack.c.b16 %v3672, %v3666
    %v4399 = vpack.c.b16 %v3673, %v3667
    %v4400 = vpack.c.b16 %v3674, %v3668
    %v4401 = vpack.c.b16 %v3675, %v3669
    %v4402 = vpack.c.b16 %v3676, %v3670
    %v4403 = vpack.c.b16 %v3677, %v3671
    %v4404 = vpack.c.b16 %v3684, %v3678
    %v4405 = vpack.c.b16 %v3685, %v3679
    %v4406 = vpack.c.b16 %v3686, %v3680
    %v4407 = vpack.c.b16 %v3687, %v3681
    %v4408 = vpack.c.b16 %v3688, %v3682
    %v4409 = vpack.c.b16 %v3689, %v3683
    %v4410 = vpack.c.b16 %v3696, %v3690
    %v4411 = vpack.c.b16 %v3697, %v3691
    %v4412 = vpack.c.b16 %v3698, %v3692
    %v4413 = vpack.c.b16 %v3699, %v3693
    %v4414 = vpack.c.b16 %v3700, %v3694
    %v4415 = vpack.c.b16 %v3701, %v3695
    %v4416 = vpack.c.b16 %v3708, %v3702
    %v4417 = vpack.c.b16 %v3709, %v3703
    %v4418 = vpack.c.b16 %v3710, %v3704
    %v4419 = vpack.c.b16 %v3711, %v3705
    %v4420 = vpack.c.b16 %v3712, %v3706
    %v4421 = vpack.c.b16 %v3713, %v3707
    %v4422 = vpack.c.b16 %v3720, %v3714
    %v4423 = vpack.c.b16 %v3721, %v3715
    %v4424 = vpack.c.b16 %v3722, %v3716
    %v4425 = vpack.c.b16 %v3723, %v3717
    %v4426 = vpack.c.b16 %v3724, %v3718
    %v4427 = vpack.c.b16 %v3725, %v3719
    %v4428 = vpack.c.b16 %v3732, %v3726
    %v4429 = vpack.c.b16 %v3733, %v3727
    %v4430 = vpack.c.b16 %v3734, %v3728
    %v4431 = vpack.c.b16 %v3735, %v3729
    %v4432 = vpack.c.b16 %v3736, %v3730
    %v4433 = vpack.c.b16 %v3737, %v3731
    %v4434 = vpack.c.b16 %v3744, %v3738
    %v4435 = vpack.c.b16 %v3745, %v3739
    %v4436 = vpack.c.b16 %v3746, %v3740
    %v4437 = vpack.c.b16 %v3747, %v3741
    %v4438 = vpack.c.b16 %v3748, %v3742
    %v4439 = vpack.c.b16 %v3749, %v3743
    %v4440 = vpack.c.b16 %v3756, %v3750
    %v4441 = vpack.c.b16 %v3757, %v3751
    %v4442 = vpack.c.b16 %v3758, %v3752
    %v4443 = vpack.c.b16 %v3759, %v3753
    %v4444 = vpack.c.b16 %v3760, %v3754
    %v4445 = vpack.c.b16 %v3761, %v3755
    %v4446 = vpack.c.b16 %v3768, %v3762
    %v4447 = vpack.c.b16 %v3769, %v3763
    %v4448 = vpack.c.b16 %v3770, %v3764
    %v4449 = vpack.c.b16 %v3771, %v3765
    %v4450 = vpack.c.b16 %v3772, %v3766
    %v4451 = vpack.c.b16 %v3773, %v3767
    %v4452 = vpack.c.b16 %v3780, %v3774
    %v4453 = vpack.c.b16 %v3781, %v3775
    %v4454 = vpack.c.b16 %v3782, %v3776
    %v4455 = vpack.c.b16 %v3783, %v3777
    %v4456 = vpack.c.b16 %v3784, %v3778
    %v4457 = vpack.c.b16 %v3785, %v3779
    %v4458 = vpack.c.b16 %v3792, %v3786
    %v4459 = vpack.c.b16 %v3793, %v3787
    %v4460 = vpack.c.b16 %v3794, %v3788
    %v4461 = vpack.c.b16 %v3795, %v3789
    %v4462 = vpack.c.b16 %v3796, %v3790
    %v4463 = vpack.c.b16 %v3797, %v3791
    %v4464 = vpack.c.b16 %v3804, %v3798
    %v4465 = vpack.c.b16 %v3805, %v3799
    %v4466 = vpack.c.b16 %v3806, %v3800
    %v4467 = vpack.c.b16 %v3807, %v3801
    %v4468 = vpack.c.b16 %v3808, %v3802
    %v4469 = vpack.c.b16 %v3809, %v3803
    %v4470 = vpack.c.b16 %v3816, %v3810
    %v4471 = vpack.c.b16 %v3817, %v3811
    %v4472 = vpack.c.b16 %v3818, %v3812
    %v4473 = vpack.c.b16 %v3819, %v3813
    %v4474 = vpack.c.b16 %v3820, %v3814
    %v4475 = vpack.c.b16 %v3821, %v3815
    %v4476 = vpack.c.b16 %v3828, %v3822
    %v4477 = vpack.c.b16 %v3829, %v3823
    %v4478 = vpack.c.b16 %v3830, %v3824
    %v4479 = vpack.c.b16 %v3831, %v3825
    %v4480 = vpack.c.b16 %v3832, %v3826
    %v4481 = vpack.c.b16 %v3833, %v3827
    %v4482 = vpack.c.b16 %v3840, %v3834
    %v4483 = vpack.c.b16 %v3841, %v3835
    %v4484 = vpack.c.b16 %v3842, %v3836
    %v4485 = vpack.c.b16 %v3843, %v3837
    %v4486 = vpack.c.b16 %v3844, %v3838
    %v4487 = vpack.c.b16 %v3845, %v3839
    %v4488 = vpack.c.b16 %v3852, %v3846
    %v4489 = vpack.c.b16 %v3853, %v3847
    %v4490 = vpack.c.b16 %v3854, %v3848
    %v4491 = vpack.c.b16 %v3855, %v3849
    %v4492 = vpack.c.b16 %v3856, %v3850
    %v4493 = vpack.c.b16 %v3857, %v3851
    %v4494 = vpack.c.b16 %v3864, %v3858
    %v4495 = vpack.c.b16 %v3865, %v3859
    %v4496 = vpack.c.b16 %v3866, %v3860
    %v4497 = vpack.c.b16 %v3867, %v3861
    %v4498 = vpack.c.b16 %v3868, %v3862
    %v4499 = vpack.c.b16 %v3869, %v3863
    %v4500 = vpack.c.b16 %v3876, %v3870
    %v4501 = vpack.c.b16 %v3877, %v3871
    %v4502 = vpack.c.b16 %v3878, %v3872
    %v4503 = vpack.c.b16 %v3879, %v3873
    %v4504 = vpack.c.b16 %v3880, %v3874
    %v4505 = vpack.c.b16 %v3881, %v3875
    %v4506 = vpack.c.b16 %v3888, %v3882
    %v4507 = vpack.c.b16 %v3889, %v3883
    %v4508 = vpack.c.b16 %v3890, %v3884
    %v4509 = vpack.c.b16 %v3891, %v3885
    %v4510 = vpack.c.b16 %v3892, %v3886
    %v4511 = vpack.c.b16 %v3893, %v3887
    %v4512 = vpack.c.b16 %v3900, %v3894
    %v4513 = vpack.c.b16 %v3901, %v3895
    %v4514 = vpack.c.b16 %v3902, %v3896
    %v4515 = vpack.c.b16 %v3903, %v3897
    %v4516 = vpack.c.b16 %v3904, %v3898
    %v4517 = vpack.c.b16 %v3905, %v3899
    %v4518 = vpack.c.b16 %v3912, %v3906
    %v4519 = vpack.c.b16 %v3913, %v3907
    %v4520 = vpack.c.b16 %v3914, %v3908
    %v4521 = vpack.c.b16 %v3915, %v3909
    %v4522 = vpack.c.b16 %v3916, %v3910
    %v4523 = vpack.c.b16 %v3917, %v3911
    %v4524 = vpack.c.b16 %v3924, %v3918
    %v4525 = vpack.c.b16 %v3925, %v3919
    %v4526 = vpack.c.b16 %v3926, %v3920
    %v4527 = vpack.c.b16 %v3927, %v3921
    %v4528 = vpack.c.b16 %v3928, %v3922
    %v4529 = vpack.c.b16 %v3929, %v3923
    %v4530 = vpack.c.b16 %v3936, %v3930
    %v4531 = vpack.c.b16 %v3937, %v3931
    %v4532 = vpack.c.b16 %v3938, %v3932
    %v4533 = vpack.c.b16 %v3939, %v3933
    %v4534 = vpack.c.b16 %v3940, %v3934
    %v4535 = vpack.c.b16 %v3941, %v3935
    %v4536 = vpack.c.b16 %v3948, %v3942
    %v4537 = vpack.c.b16 %v3949, %v3943
    %v4538 = vpack.c.b16 %v3950, %v3944
    %v4539 = vpack.c.b16 %v3951, %v3945
    %v4540 = vpack.c.b16 %v3952, %v3946
    %v4541 = vpack.c.b16 %v3953, %v3947
    %v4542 = vpack.c.b16 %v3960, %v3954
    %v4543 = vpack.c.b16 %v3961, %v3955
    %v4544 = vpack.c.b16 %v3962, %v3956
    %v4545 = vpack.c.b16 %v3963, %v3957
    %v4546 = vpack.c.b16 %v3964, %v3958
    %v4547 = vpack.c.b16 %v3965, %v3959
    %v4548 = vpack.c.b16 %v3972, %v3966
    %v4549 = vpack.c.b16 %v3973, %v3967
    %v4550 = vpack.c.b16 %v3974, %v3968
    %v4551 = vpack.c.b16 %v3975, %v3969
    %v4552 = vpack.c.b16 %v3976, %v3970
    %v4553 = vpack.c.b16 %v3977, %v3971
    %v4554 = vpack.c.b16 %v3984, %v3978
    %v4555 = vpack.c.b16 %v3985, %v3979
    %v4556 = vpack.c.b16 %v3986, %v3980
    %v4557 = vpack.c.b16 %v3987, %v3981
    %v4558 = vpack.c.b16 %v3988, %v3982
    %v4559 = vpack.c.b16 %v3989, %v3983
    %v4560 = vpack.c.b16 %v3996, %v3990
    %v4561 = vpack.c.b16 %v3997, %v3991
    %v4562 = vpack.c.b16 %v3998, %v3992
    %v4563 = vpack.c.b16 %v3999, %v3993
    %v4564 = vpack.c.b16 %v4000, %v3994
    %v4565 = vpack.c.b16 %v4001, %v3995
    %v4566 = vpack.c.b16 %v4008, %v4002
    %v4567 = vpack.c.b16 %v4009, %v4003
    %v4568 = vpack.c.b16 %v4010, %v4004
    %v4569 = vpack.c.b16 %v4011, %v4005
    %v4570 = vpack.c.b16 %v4012, %v4006
    %v4571 = vpack.c.b16 %v4013, %v4007
    %v4572 = vpack.c.b16 %v4020, %v4014
    %v4573 = vpack.c.b16 %v4021, %v4015
    %v4574 = vpack.c.b16 %v4022, %v4016
    %v4575 = vpack.c.b16 %v4023, %v4017
    %v4576 = vpack.c.b16 %v4024, %v4018
    %v4577 = vpack.c.b16 %v4025, %v4019
    %v4578 = vpack.c.b16 %v4032, %v4026
    %v4579 = vpack.c.b16 %v4033, %v4027
    %v4580 = vpack.c.b16 %v4034, %v4028
    %v4581 = vpack.c.b16 %v4035, %v4029
    %v4582 = vpack.c.b16 %v4036, %v4030
    %v4583 = vpack.c.b16 %v4037, %v4031
    %v4584 = vpack.c.b16 %v4044, %v4038
    %v4585 = vpack.c.b16 %v4045, %v4039
    %v4586 = vpack.c.b16 %v4046, %v4040
    %v4587 = vpack.c.b16 %v4047, %v4041
    %v4588 = vpack.c.b16 %v4048, %v4042
    %v4589 = vpack.c.b16 %v4049, %v4043
    %v4590 = vpack.c.b16 %v4056, %v4050
    %v4591 = vpack.c.b16 %v4057, %v4051
    %v4592 = vpack.c.b16 %v4058, %v4052
    %v4593 = vpack.c.b16 %v4059, %v4053
    %v4594 = vpack.c.b16 %v4060, %v4054
    %v4595 = vpack.c.b16 %v4061, %v4055
    %v4596 = vpack.c.b16 %v4068, %v4062
    %v4597 = vpack.c.b16 %v4069, %v4063
    %v4598 = vpack.c.b16 %v4070, %v4064
    %v4599 = vpack.c.b16 %v4071, %v4065
    %v4600 = vpack.c.b16 %v4072, %v4066
    %v4601 = vpack.c.b16 %v4073, %v4067
    %v4602 = vpack.c.b16 %v4080, %v4074
    %v4603 = vpack.c.b16 %v4081, %v4075
    %v4604 = vpack.c.b16 %v4082, %v4076
    %v4605 = vpack.c.b16 %v4083, %v4077
    %v4606 = vpack.c.b16 %v4084, %v4078
    %v4607 = vpack.c.b16 %v4085, %v4079
    %v4608 = vpack.c.b16 %v4092, %v4086
    %v4609 = vpack.c.b16 %v4093, %v4087
    %v4610 = vpack.c.b16 %v4094, %v4088
    %v4611 = vpack.c.b16 %v4095, %v4089
    %v4612 = vpack.c.b16 %v4096, %v4090
    %v4613 = vpack.c.b16 %v4097, %v4091
    %v4614 = vpack.c.b16 %v4104, %v4098
    %v4615 = vpack.c.b16 %v4105, %v4099
    %v4616 = vpack.c.b16 %v4106, %v4100
    %v4617 = vpack.c.b16 %v4107, %v4101
    %v4618 = vpack.c.b16 %v4108, %v4102
    %v4619 = vpack.c.b16 %v4109, %v4103
    %v4620 = vpack.c.b16 %v4116, %v4110
    %v4621 = vpack.c.b16 %v4117, %v4111
    %v4622 = vpack.c.b16 %v4118, %v4112
    %v4623 = vpack.c.b16 %v4119, %v4113
    %v4624 = vpack.c.b16 %v4120, %v4114
    %v4625 = vpack.c.b16 %v4121, %v4115
    %v4626 = vpack.c.b16 %v4128, %v4122
    %v4627 = vpack.c.b16 %v4129, %v4123
    %v4628 = vpack.c.b16 %v4130, %v4124
    %v4629 = vpack.c.b16 %v4131, %v4125
    %v4630 = vpack.c.b16 %v4132, %v4126
    %v4631 = vpack.c.b16 %v4133, %v4127
    %v4632 = vpack.c.b16 %v4140, %v4134
    %v4633 = vpack.c.b16 %v4141, %v4135
    %v4634 = vpack.c.b16 %v4142, %v4136
    %v4635 = vpack.c.b16 %v4143, %v4137
    %v4636 = vpack.c.b16 %v4144, %v4138
    %v4637 = vpack.c.b16 %v4145, %v4139
    %v4638 = vpack.c.b16 %v4152, %v4146
    %v4639 = vpack.c.b16 %v4153, %v4147
    %v4640 = vpack.c.b16 %v4154, %v4148
    %v4641 = vpack.c.b16 %v4155, %v4149
    %v4642 = vpack.c.b16 %v4156, %v4150
    %v4643 = vpack.c.b16 %v4157, %v4151
    %v4644 = vpack.c.b16 %v4164, %v4158
    %v4645 = vpack.c.b16 %v4165, %v4159
    %v4646 = vpack.c.b16 %v4166, %v4160
    %v4647 = vpack.c.b16 %v4167, %v4161
    %v4648 = vpack.c.b16 %v4168, %v4162
    %v4649 = vpack.c.b16 %v4169, %v4163
    %v4650 = vpack.c.b16 %v4176, %v4170
    %v4651 = vpack.c.b16 %v4177, %v4171
    %v4652 = vpack.c.b16 %v4178, %v4172
    %v4653 = vpack.c.b16 %v4179, %v4173
    %v4654 = vpack.c.b16 %v4180, %v4174
    %v4655 = vpack.c.b16 %v4181, %v4175
    %v4656 = vpack.c.b16 %v4188, %v4182
    %v4657 = vpack.c.b16 %v4189, %v4183
    %v4658 = vpack.c.b16 %v4190, %v4184
    %v4659 = vpack.c.b16 %v4191, %v4185
    %v4660 = vpack.c.b16 %v4192, %v4186
    %v4661 = vpack.c.b16 %v4193, %v4187
    %v4662 = vpack.c.b16 %v4200, %v4194
    %v4663 = vpack.c.b16 %v4201, %v4195
    %v4664 = vpack.c.b16 %v4202, %v4196
    %v4665 = vpack.c.b16 %v4203, %v4197
    %v4666 = vpack.c.b16 %v4204, %v4198
    %v4667 = vpack.c.b16 %v4205, %v4199
    %v4668 = vpack.c.b16 %v4212, %v4206
    %v4669 = vpack.c.b16 %v4213, %v4207
    %v4670 = vpack.c.b16 %v4214, %v4208
    %v4671 = vpack.c.b16 %v4215, %v4209
    %v4672 = vpack.c.b16 %v4216, %v4210
    %v4673 = vpack.c.b16 %v4217, %v4211
    %v4674 = vpack.c.b16 %v4224, %v4218
    %v4675 = vpack.c.b16 %v4225, %v4219
    %v4676 = vpack.c.b16 %v4226, %v4220
    %v4677 = vpack.c.b16 %v4227, %v4221
    %v4678 = vpack.c.b16 %v4228, %v4222
    %v4679 = vpack.c.b16 %v4229, %v4223
    %v4680 = vpack.c.b16 %v4236, %v4230
    %v4681 = vpack.c.b16 %v4237, %v4231
    %v4682 = vpack.c.b16 %v4238, %v4232
    %v4683 = vpack.c.b16 %v4239, %v4233
    %v4684 = vpack.c.b16 %v4240, %v4234
    %v4685 = vpack.c.b16 %v4241, %v4235
    %v4686 = vpack.c.b16 %v4248, %v4242
    %v4687 = vpack.c.b16 %v4249, %v4243
    %v4688 = vpack.c.b16 %v4250, %v4244
    %v4689 = vpack.c.b16 %v4251, %v4245
    %v4690 = vpack.c.b16 %v4252, %v4246
    %v4691 = vpack.c.b16 %v4253, %v4247
    %v4692 = vpack.c.b16 %v4260, %v4254
    %v4693 = vpack.c.b16 %v4261, %v4255
    %v4694 = vpack.c.b16 %v4262, %v4256
    %v4695 = vpack.c.b16 %v4263, %v4257
    %v4696 = vpack.c.b16 %v4264, %v4258
    %v4697 = vpack.c.b16 %v4265, %v4259
    %v4698 = vpack.c.b16 %v4272, %v4266
    %v4699 = vpack.c.b16 %v4273, %v4267
    %v4700 = vpack.c.b16 %v4274, %v4268
    %v4701 = vpack.c.b16 %v4275, %v4269
    %v4702 = vpack.c.b16 %v4276, %v4270
    %v4703 = vpack.c.b16 %v4277, %v4271
    %v4704 = vpack.c.b16 %v4284, %v4278
    %v4705 = vpack.c.b16 %v4285, %v4279
    %v4706 = vpack.c.b16 %v4286, %v4280
    %v4707 = vpack.c.b16 %v4287, %v4281
    %v4708 = vpack.c.b16 %v4288, %v4282
    %v4709 = vpack.c.b16 %v4289, %v4283
    %v4710 = vpack.c.b16 %v4296, %v4290
    %v4711 = vpack.c.b16 %v4297, %v4291
    %v4712 = vpack.c.b16 %v4298, %v4292
    %v4713 = vpack.c.b16 %v4299, %v4293
    %v4714 = vpack.c.b16 %v4300, %v4294
    %v4715 = vpack.c.b16 %v4301, %v4295
    %v4716 = vpack.c.b16 %v4308, %v4302
    %v4717 = vpack.c.b16 %v4309, %v4303
    %v4718 = vpack.c.b16 %v4310, %v4304
    %v4719 = vpack.c.b16 %v4311, %v4305
    %v4720 = vpack.c.b16 %v4312, %v4306
    %v4721 = vpack.c.b16 %v4313, %v4307
    %v4722 = vpack.c.b16 %v4320, %v4314
    %v4723 = vpack.c.b16 %v4321, %v4315
    %v4724 = vpack.c.b16 %v4322, %v4316
    %v4725 = vpack.c.b16 %v4323, %v4317
    %v4726 = vpack.c.b16 %v4324, %v4318
    %v4727 = vpack.c.b16 %v4325, %v4319
    %v4728 = vpack.c.b16 %v4332, %v4326
    %v4729 = vpack.c.b16 %v4333, %v4327
    %v4730 = vpack.c.b16 %v4334, %v4328
    %v4731 = vpack.c.b16 %v4335, %v4329
    %v4732 = vpack.c.b16 %v4336, %v4330
    %v4733 = vpack.c.b16 %v4337, %v4331
    %v4734 = vpack.c.b16 %v4344, %v4338
    %v4735 = vpack.c.b16 %v4345, %v4339
    %v4736 = vpack.c.b16 %v4346, %v4340
    %v4737 = vpack.c.b16 %v4347, %v4341
    %v4738 = vpack.c.b16 %v4348, %v4342
    %v4739 = vpack.c.b16 %v4349, %v4343
    %v4740 = vpack.c.b16 %v4356, %v4350
    %v4741 = vpack.c.b16 %v4357, %v4351
    %v4742 = vpack.c.b16 %v4358, %v4352
    %v4743 = vpack.c.b16 %v4359, %v4353
    %v4744 = vpack.c.b16 %v4360, %v4354
    %v4745 = vpack.c.b16 %v4361, %v4355
    %5130 = vmatpush.bf16.msra.mxu0 %v4404
    %5131 = vmatpush.bf16.msra.mxu0 %v4398
    %5132 = vmatpush.bf16.msra.mxu0 %v4392
    %5133 = vmatpush.bf16.msra.mxu0 %v4386
    %5134 = vmatpush.bf16.msra.mxu0 %v4380
    %5135 = vmatpush.bf16.msra.mxu0 %v4374
    %5136 = vmatpush.bf16.msra.mxu0 %v4368
    %5137 = vmatpush.bf16.msra.mxu0 %v4362
    %5138 = vmatmul.bf16.gmra.mxu0 %v2804
    %v5139 = vpop.f32.mrf.mxu0
    %v5140 = vadd.f32 %v3198, %v5139
    %v5141 = vpop.f32.mrf.mxu0
    %5142 = vdwg.mxu0
    %5143 = vmatpush.bf16.msra.mxu0 %v4452
    %5144 = vmatpush.bf16.msra.mxu0 %v4446
    %5145 = vmatpush.bf16.msra.mxu0 %v4440
    %5146 = vmatpush.bf16.msra.mxu0 %v4434
    %5147 = vmatpush.bf16.msra.mxu0 %v4428
    %5148 = vmatpush.bf16.msra.mxu0 %v4422
    %5149 = vmatpush.bf16.msra.mxu0 %v4416
    %5150 = vmatpush.bf16.msra.mxu0 %v4410
    %5151 = vmatmul.bf16.gmra.mxu0 %v2805
    %v5152 = vpop.f32.mrf.mxu0
    %v5153 = vadd.f32 %v5140, %v5152
    %v5154 = vpop.f32.mrf.mxu0
    %5155 = vdwg.mxu0
    %5156 = vmatpush.bf16.msra.mxu0 %v4500
    %5157 = vmatpush.bf16.msra.mxu0 %v4494
    %5158 = vmatpush.bf16.msra.mxu0 %v4488
    %5159 = vmatpush.bf16.msra.mxu0 %v4482
    %5160 = vmatpush.bf16.msra.mxu0 %v4476
    %5161 = vmatpush.bf16.msra.mxu0 %v4470
    %5162 = vmatpush.bf16.msra.mxu0 %v4464
    %5163 = vmatpush.bf16.msra.mxu0 %v4458
    %5164 = vmatmul.bf16.gmra.mxu0 %v2806
    %v5165 = vpop.f32.mrf.mxu0
    %v5166 = vadd.f32 %v5153, %v5165
    %v5167 = vpop.f32.mrf.mxu0
    %5168 = vdwg.mxu0
    %5169 = vmatpush.bf16.msra.mxu0 %v4548
    %5170 = vmatpush.bf16.msra.mxu0 %v4542
    %5171 = vmatpush.bf16.msra.mxu0 %v4536
    %5172 = vmatpush.bf16.msra.mxu0 %v4530
    %5173 = vmatpush.bf16.msra.mxu0 %v4524
    %5174 = vmatpush.bf16.msra.mxu0 %v4518
    %5175 = vmatpush.bf16.msra.mxu0 %v4512
    %5176 = vmatpush.bf16.msra.mxu0 %v4506
    %5177 = vmatmul.bf16.gmra.mxu0 %v2807
    %v5178 = vpop.f32.mrf.mxu0
    %v5179 = vadd.f32 %v5166, %v5178
    %v5180 = vpop.f32.mrf.mxu0
    %5181 = vdwg.mxu0
    %5182 = vmatpush.bf16.msra.mxu0 %v4596
    %5183 = vmatpush.bf16.msra.mxu0 %v4590
    %5184 = vmatpush.bf16.msra.mxu0 %v4584
    %5185 = vmatpush.bf16.msra.mxu0 %v4578
    %5186 = vmatpush.bf16.msra.mxu0 %v4572
    %5187 = vmatpush.bf16.msra.mxu0 %v4566
    %5188 = vmatpush.bf16.msra.mxu0 %v4560
    %5189 = vmatpush.bf16.msra.mxu0 %v4554
    %5190 = vmatmul.bf16.gmra.mxu0 %v2808
    %v5191 = vpop.f32.mrf.mxu0
    %v5192 = vadd.f32 %v5179, %v5191
    %v5193 = vpop.f32.mrf.mxu0
    %5194 = vdwg.mxu0
    %5195 = vmatpush.bf16.msra.mxu0 %v4644
    %5196 = vmatpush.bf16.msra.mxu0 %v4638
    %5197 = vmatpush.bf16.msra.mxu0 %v4632
    %5198 = vmatpush.bf16.msra.mxu0 %v4626
    %5199 = vmatpush.bf16.msra.mxu0 %v4620
    %5200 = vmatpush.bf16.msra.mxu0 %v4614
    %5201 = vmatpush.bf16.msra.mxu0 %v4608
    %5202 = vmatpush.bf16.msra.mxu0 %v4602
    %5203 = vmatmul.bf16.gmra.mxu0 %v2809
    %v5204 = vpop.f32.mrf.mxu0
    %v5205 = vadd.f32 %v5192, %v5204
    %v5206 = vpop.f32.mrf.mxu0
    %5207 = vdwg.mxu0
    %5208 = vmatpush.bf16.msra.mxu0 %v4692
    %5209 = vmatpush.bf16.msra.mxu0 %v4686
    %5210 = vmatpush.bf16.msra.mxu0 %v4680
    %5211 = vmatpush.bf16.msra.mxu0 %v4674
    %5212 = vmatpush.bf16.msra.mxu0 %v4668
    %5213 = vmatpush.bf16.msra.mxu0 %v4662
    %5214 = vmatpush.bf16.msra.mxu0 %v4656
    %5215 = vmatpush.bf16.msra.mxu0 %v4650
    %5216 = vmatmul.bf16.gmra.mxu0 %v2810
    %v5217 = vpop.f32.mrf.mxu0
    %v5218 = vadd.f32 %v5205, %v5217
    %v5219 = vpop.f32.mrf.mxu0
    %5220 = vdwg.mxu0
    %5221 = vmatpush.bf16.msra.mxu0 %v4740
    %5222 = vmatpush.bf16.msra.mxu0 %v4734
    %5223 = vmatpush.bf16.msra.mxu0 %v4728
    %5224 = vmatpush.bf16.msra.mxu0 %v4722
    %5225 = vmatpush.bf16.msra.mxu0 %v4716
    %5226 = vmatpush.bf16.msra.mxu0 %v4710
    %5227 = vmatpush.bf16.msra.mxu0 %v4704
    %5228 = vmatpush.bf16.msra.mxu0 %v4698
    %5229 = vmatmul.bf16.gmra.mxu0 %v2811
    %v5230 = vpop.f32.mrf.mxu0
    %v5231 = vadd.f32 %v5218, %v5230
    %v5232 = vpop.f32.mrf.mxu0
    %5233 = vdwg.mxu0
    %5234 = vmatpush.bf16.msra.mxu0 %v4405
    %5235 = vmatpush.bf16.msra.mxu0 %v4399
    %5236 = vmatpush.bf16.msra.mxu0 %v4393
    %5237 = vmatpush.bf16.msra.mxu0 %v4387
    %5238 = vmatpush.bf16.msra.mxu0 %v4381
    %5239 = vmatpush.bf16.msra.mxu0 %v4375
    %5240 = vmatpush.bf16.msra.mxu0 %v4369
    %5241 = vmatpush.bf16.msra.mxu0 %v4363
    %5242 = vmatmul.bf16.gmra.mxu0 %v2804
    %v5243 = vpop.f32.mrf.mxu0
    %v5244 = vadd.f32 %v3199, %v5243
    %v5245 = vpop.f32.mrf.mxu0
    %5246 = vdwg.mxu0
    %5247 = vmatpush.bf16.msra.mxu0 %v4453
    %5248 = vmatpush.bf16.msra.mxu0 %v4447
    %5249 = vmatpush.bf16.msra.mxu0 %v4441
    %5250 = vmatpush.bf16.msra.mxu0 %v4435
    %5251 = vmatpush.bf16.msra.mxu0 %v4429
    %5252 = vmatpush.bf16.msra.mxu0 %v4423
    %5253 = vmatpush.bf16.msra.mxu0 %v4417
    %5254 = vmatpush.bf16.msra.mxu0 %v4411
    %5255 = vmatmul.bf16.gmra.mxu0 %v2805
    %v5256 = vpop.f32.mrf.mxu0
    %v5257 = vadd.f32 %v5244, %v5256
    %v5258 = vpop.f32.mrf.mxu0
    %5259 = vdwg.mxu0
    %5260 = vmatpush.bf16.msra.mxu0 %v4501
    %5261 = vmatpush.bf16.msra.mxu0 %v4495
    %5262 = vmatpush.bf16.msra.mxu0 %v4489
    %5263 = vmatpush.bf16.msra.mxu0 %v4483
    %5264 = vmatpush.bf16.msra.mxu0 %v4477
    %5265 = vmatpush.bf16.msra.mxu0 %v4471
    %5266 = vmatpush.bf16.msra.mxu0 %v4465
    %5267 = vmatpush.bf16.msra.mxu0 %v4459
    %5268 = vmatmul.bf16.gmra.mxu0 %v2806
    %v5269 = vpop.f32.mrf.mxu0
    %v5270 = vadd.f32 %v5257, %v5269
    %v5271 = vpop.f32.mrf.mxu0
    %5272 = vdwg.mxu0
    %5273 = vmatpush.bf16.msra.mxu0 %v4549
    %5274 = vmatpush.bf16.msra.mxu0 %v4543
    %5275 = vmatpush.bf16.msra.mxu0 %v4537
    %5276 = vmatpush.bf16.msra.mxu0 %v4531
    %5277 = vmatpush.bf16.msra.mxu0 %v4525
    %5278 = vmatpush.bf16.msra.mxu0 %v4519
    %5279 = vmatpush.bf16.msra.mxu0 %v4513
    %5280 = vmatpush.bf16.msra.mxu0 %v4507
    %5281 = vmatmul.bf16.gmra.mxu0 %v2807
    %v5282 = vpop.f32.mrf.mxu0
    %v5283 = vadd.f32 %v5270, %v5282
    %v5284 = vpop.f32.mrf.mxu0
    %5285 = vdwg.mxu0
    %5286 = vmatpush.bf16.msra.mxu0 %v4597
    %5287 = vmatpush.bf16.msra.mxu0 %v4591
    %5288 = vmatpush.bf16.msra.mxu0 %v4585
    %5289 = vmatpush.bf16.msra.mxu0 %v4579
    %5290 = vmatpush.bf16.msra.mxu0 %v4573
    %5291 = vmatpush.bf16.msra.mxu0 %v4567
    %5292 = vmatpush.bf16.msra.mxu0 %v4561
    %5293 = vmatpush.bf16.msra.mxu0 %v4555
    %5294 = vmatmul.bf16.gmra.mxu0 %v2808
    %v5295 = vpop.f32.mrf.mxu0
    %v5296 = vadd.f32 %v5283, %v5295
    %v5297 = vpop.f32.mrf.mxu0
    %5298 = vdwg.mxu0
    %5299 = vmatpush.bf16.msra.mxu0 %v4645
    %5300 = vmatpush.bf16.msra.mxu0 %v4639
    %5301 = vmatpush.bf16.msra.mxu0 %v4633
    %5302 = vmatpush.bf16.msra.mxu0 %v4627
    %5303 = vmatpush.bf16.msra.mxu0 %v4621
    %5304 = vmatpush.bf16.msra.mxu0 %v4615
    %5305 = vmatpush.bf16.msra.mxu0 %v4609
    %5306 = vmatpush.bf16.msra.mxu0 %v4603
    %5307 = vmatmul.bf16.gmra.mxu0 %v2809
    %v5308 = vpop.f32.mrf.mxu0
    %v5309 = vadd.f32 %v5296, %v5308
    %v5310 = vpop.f32.mrf.mxu0
    %5311 = vdwg.mxu0
    %5312 = vmatpush.bf16.msra.mxu0 %v4693
    %5313 = vmatpush.bf16.msra.mxu0 %v4687
    %5314 = vmatpush.bf16.msra.mxu0 %v4681
    %5315 = vmatpush.bf16.msra.mxu0 %v4675
    %5316 = vmatpush.bf16.msra.mxu0 %v4669
    %5317 = vmatpush.bf16.msra.mxu0 %v4663
    %5318 = vmatpush.bf16.msra.mxu0 %v4657
    %5319 = vmatpush.bf16.msra.mxu0 %v4651
    %5320 = vmatmul.bf16.gmra.mxu0 %v2810
    %v5321 = vpop.f32.mrf.mxu0
    %v5322 = vadd.f32 %v5309, %v5321
    %v5323 = vpop.f32.mrf.mxu0
    %5324 = vdwg.mxu0
    %5325 = vmatpush.bf16.msra.mxu0 %v4741
    %5326 = vmatpush.bf16.msra.mxu0 %v4735
    %5327 = vmatpush.bf16.msra.mxu0 %v4729
    %5328 = vmatpush.bf16.msra.mxu0 %v4723
    %5329 = vmatpush.bf16.msra.mxu0 %v4717
    %5330 = vmatpush.bf16.msra.mxu0 %v4711
    %5331 = vmatpush.bf16.msra.mxu0 %v4705
    %5332 = vmatpush.bf16.msra.mxu0 %v4699
    %5333 = vmatmul.bf16.gmra.mxu0 %v2811
    %v5334 = vpop.f32.mrf.mxu0
    %v5335 = vadd.f32 %v5322, %v5334
    %v5336 = vpop.f32.mrf.mxu0
    %5337 = vdwg.mxu0
    %5338 = vmatpush.bf16.msra.mxu0 %v4406
    %5339 = vmatpush.bf16.msra.mxu0 %v4400
    %5340 = vmatpush.bf16.msra.mxu0 %v4394
    %5341 = vmatpush.bf16.msra.mxu0 %v4388
    %5342 = vmatpush.bf16.msra.mxu0 %v4382
    %5343 = vmatpush.bf16.msra.mxu0 %v4376
    %5344 = vmatpush.bf16.msra.mxu0 %v4370
    %5345 = vmatpush.bf16.msra.mxu0 %v4364
    %5346 = vmatmul.bf16.gmra.mxu0 %v2804
    %v5347 = vpop.f32.mrf.mxu0
    %v5348 = vadd.f32 %v3200, %v5347
    %v5349 = vpop.f32.mrf.mxu0
    %5350 = vdwg.mxu0
    %5351 = vmatpush.bf16.msra.mxu0 %v4454
    %5352 = vmatpush.bf16.msra.mxu0 %v4448
    %5353 = vmatpush.bf16.msra.mxu0 %v4442
    %5354 = vmatpush.bf16.msra.mxu0 %v4436
    %5355 = vmatpush.bf16.msra.mxu0 %v4430
    %5356 = vmatpush.bf16.msra.mxu0 %v4424
    %5357 = vmatpush.bf16.msra.mxu0 %v4418
    %5358 = vmatpush.bf16.msra.mxu0 %v4412
    %5359 = vmatmul.bf16.gmra.mxu0 %v2805
    %v5360 = vpop.f32.mrf.mxu0
    %v5361 = vadd.f32 %v5348, %v5360
    %v5362 = vpop.f32.mrf.mxu0
    %5363 = vdwg.mxu0
    %5364 = vmatpush.bf16.msra.mxu0 %v4502
    %5365 = vmatpush.bf16.msra.mxu0 %v4496
    %5366 = vmatpush.bf16.msra.mxu0 %v4490
    %5367 = vmatpush.bf16.msra.mxu0 %v4484
    %5368 = vmatpush.bf16.msra.mxu0 %v4478
    %5369 = vmatpush.bf16.msra.mxu0 %v4472
    %5370 = vmatpush.bf16.msra.mxu0 %v4466
    %5371 = vmatpush.bf16.msra.mxu0 %v4460
    %5372 = vmatmul.bf16.gmra.mxu0 %v2806
    %v5373 = vpop.f32.mrf.mxu0
    %v5374 = vadd.f32 %v5361, %v5373
    %v5375 = vpop.f32.mrf.mxu0
    %5376 = vdwg.mxu0
    %5377 = vmatpush.bf16.msra.mxu0 %v4550
    %5378 = vmatpush.bf16.msra.mxu0 %v4544
    %5379 = vmatpush.bf16.msra.mxu0 %v4538
    %5380 = vmatpush.bf16.msra.mxu0 %v4532
    %5381 = vmatpush.bf16.msra.mxu0 %v4526
    %5382 = vmatpush.bf16.msra.mxu0 %v4520
    %5383 = vmatpush.bf16.msra.mxu0 %v4514
    %5384 = vmatpush.bf16.msra.mxu0 %v4508
    %5385 = vmatmul.bf16.gmra.mxu0 %v2807
    %v5386 = vpop.f32.mrf.mxu0
    %v5387 = vadd.f32 %v5374, %v5386
    %v5388 = vpop.f32.mrf.mxu0
    %5389 = vdwg.mxu0
    %5390 = vmatpush.bf16.msra.mxu0 %v4598
    %5391 = vmatpush.bf16.msra.mxu0 %v4592
    %5392 = vmatpush.bf16.msra.mxu0 %v4586
    %5393 = vmatpush.bf16.msra.mxu0 %v4580
    %5394 = vmatpush.bf16.msra.mxu0 %v4574
    %5395 = vmatpush.bf16.msra.mxu0 %v4568
    %5396 = vmatpush.bf16.msra.mxu0 %v4562
    %5397 = vmatpush.bf16.msra.mxu0 %v4556
    %5398 = vmatmul.bf16.gmra.mxu0 %v2808
    %v5399 = vpop.f32.mrf.mxu0
    %v5400 = vadd.f32 %v5387, %v5399
    %v5401 = vpop.f32.mrf.mxu0
    %5402 = vdwg.mxu0
    %5403 = vmatpush.bf16.msra.mxu0 %v4646
    %5404 = vmatpush.bf16.msra.mxu0 %v4640
    %5405 = vmatpush.bf16.msra.mxu0 %v4634
    %5406 = vmatpush.bf16.msra.mxu0 %v4628
    %5407 = vmatpush.bf16.msra.mxu0 %v4622
    %5408 = vmatpush.bf16.msra.mxu0 %v4616
    %5409 = vmatpush.bf16.msra.mxu0 %v4610
    %5410 = vmatpush.bf16.msra.mxu0 %v4604
    %5411 = vmatmul.bf16.gmra.mxu0 %v2809
    %v5412 = vpop.f32.mrf.mxu0
    %v5413 = vadd.f32 %v5400, %v5412
    %v5414 = vpop.f32.mrf.mxu0
    %5415 = vdwg.mxu0
    %5416 = vmatpush.bf16.msra.mxu0 %v4694
    %5417 = vmatpush.bf16.msra.mxu0 %v4688
    %5418 = vmatpush.bf16.msra.mxu0 %v4682
    %5419 = vmatpush.bf16.msra.mxu0 %v4676
    %5420 = vmatpush.bf16.msra.mxu0 %v4670
    %5421 = vmatpush.bf16.msra.mxu0 %v4664
    %5422 = vmatpush.bf16.msra.mxu0 %v4658
    %5423 = vmatpush.bf16.msra.mxu0 %v4652
    %5424 = vmatmul.bf16.gmra.mxu0 %v2810
    %v5425 = vpop.f32.mrf.mxu0
    %v5426 = vadd.f32 %v5413, %v5425
    %v5427 = vpop.f32.mrf.mxu0
    %5428 = vdwg.mxu0
    %5429 = vmatpush.bf16.msra.mxu0 %v4742
    %5430 = vmatpush.bf16.msra.mxu0 %v4736
    %5431 = vmatpush.bf16.msra.mxu0 %v4730
    %5432 = vmatpush.bf16.msra.mxu0 %v4724
    %5433 = vmatpush.bf16.msra.mxu0 %v4718
    %5434 = vmatpush.bf16.msra.mxu0 %v4712
    %5435 = vmatpush.bf16.msra.mxu0 %v4706
    %5436 = vmatpush.bf16.msra.mxu0 %v4700
    %5437 = vmatmul.bf16.gmra.mxu0 %v2811
    %v5438 = vpop.f32.mrf.mxu0
    %v5439 = vadd.f32 %v5426, %v5438
    %v5440 = vpop.f32.mrf.mxu0
    %5441 = vdwg.mxu0
    %5442 = vmatpush.bf16.msra.mxu0 %v4407
    %5443 = vmatpush.bf16.msra.mxu0 %v4401
    %5444 = vmatpush.bf16.msra.mxu0 %v4395
    %5445 = vmatpush.bf16.msra.mxu0 %v4389
    %5446 = vmatpush.bf16.msra.mxu0 %v4383
    %5447 = vmatpush.bf16.msra.mxu0 %v4377
    %5448 = vmatpush.bf16.msra.mxu0 %v4371
    %5449 = vmatpush.bf16.msra.mxu0 %v4365
    %5450 = vmatmul.bf16.gmra.mxu0 %v2804
    %v5451 = vpop.f32.mrf.mxu0
    %v5452 = vadd.f32 %v3201, %v5451
    %v5453 = vpop.f32.mrf.mxu0
    %5454 = vdwg.mxu0
    %5455 = vmatpush.bf16.msra.mxu0 %v4455
    %5456 = vmatpush.bf16.msra.mxu0 %v4449
    %5457 = vmatpush.bf16.msra.mxu0 %v4443
    %5458 = vmatpush.bf16.msra.mxu0 %v4437
    %5459 = vmatpush.bf16.msra.mxu0 %v4431
    %5460 = vmatpush.bf16.msra.mxu0 %v4425
    %5461 = vmatpush.bf16.msra.mxu0 %v4419
    %5462 = vmatpush.bf16.msra.mxu0 %v4413
    %5463 = vmatmul.bf16.gmra.mxu0 %v2805
    %v5464 = vpop.f32.mrf.mxu0
    %v5465 = vadd.f32 %v5452, %v5464
    %v5466 = vpop.f32.mrf.mxu0
    %5467 = vdwg.mxu0
    %5468 = vmatpush.bf16.msra.mxu0 %v4503
    %5469 = vmatpush.bf16.msra.mxu0 %v4497
    %5470 = vmatpush.bf16.msra.mxu0 %v4491
    %5471 = vmatpush.bf16.msra.mxu0 %v4485
    %5472 = vmatpush.bf16.msra.mxu0 %v4479
    %5473 = vmatpush.bf16.msra.mxu0 %v4473
    %5474 = vmatpush.bf16.msra.mxu0 %v4467
    %5475 = vmatpush.bf16.msra.mxu0 %v4461
    %5476 = vmatmul.bf16.gmra.mxu0 %v2806
    %v5477 = vpop.f32.mrf.mxu0
    %v5478 = vadd.f32 %v5465, %v5477
    %v5479 = vpop.f32.mrf.mxu0
    %5480 = vdwg.mxu0
    %5481 = vmatpush.bf16.msra.mxu0 %v4551
    %5482 = vmatpush.bf16.msra.mxu0 %v4545
    %5483 = vmatpush.bf16.msra.mxu0 %v4539
    %5484 = vmatpush.bf16.msra.mxu0 %v4533
    %5485 = vmatpush.bf16.msra.mxu0 %v4527
    %5486 = vmatpush.bf16.msra.mxu0 %v4521
    %5487 = vmatpush.bf16.msra.mxu0 %v4515
    %5488 = vmatpush.bf16.msra.mxu0 %v4509
    %5489 = vmatmul.bf16.gmra.mxu0 %v2807
    %v5490 = vpop.f32.mrf.mxu0
    %v5491 = vadd.f32 %v5478, %v5490
    %v5492 = vpop.f32.mrf.mxu0
    %5493 = vdwg.mxu0
    %5494 = vmatpush.bf16.msra.mxu0 %v4599
    %5495 = vmatpush.bf16.msra.mxu0 %v4593
    %5496 = vmatpush.bf16.msra.mxu0 %v4587
    %5497 = vmatpush.bf16.msra.mxu0 %v4581
    %5498 = vmatpush.bf16.msra.mxu0 %v4575
    %5499 = vmatpush.bf16.msra.mxu0 %v4569
    %5500 = vmatpush.bf16.msra.mxu0 %v4563
    %5501 = vmatpush.bf16.msra.mxu0 %v4557
    %5502 = vmatmul.bf16.gmra.mxu0 %v2808
    %v5503 = vpop.f32.mrf.mxu0
    %v5504 = vadd.f32 %v5491, %v5503
    %v5505 = vpop.f32.mrf.mxu0
    %5506 = vdwg.mxu0
    %5507 = vmatpush.bf16.msra.mxu0 %v4647
    %5508 = vmatpush.bf16.msra.mxu0 %v4641
    %5509 = vmatpush.bf16.msra.mxu0 %v4635
    %5510 = vmatpush.bf16.msra.mxu0 %v4629
    %5511 = vmatpush.bf16.msra.mxu0 %v4623
    %5512 = vmatpush.bf16.msra.mxu0 %v4617
    %5513 = vmatpush.bf16.msra.mxu0 %v4611
    %5514 = vmatpush.bf16.msra.mxu0 %v4605
    %5515 = vmatmul.bf16.gmra.mxu0 %v2809
    %v5516 = vpop.f32.mrf.mxu0
    %v5517 = vadd.f32 %v5504, %v5516
    %v5518 = vpop.f32.mrf.mxu0
    %5519 = vdwg.mxu0
    %5520 = vmatpush.bf16.msra.mxu0 %v4695
    %5521 = vmatpush.bf16.msra.mxu0 %v4689
    %5522 = vmatpush.bf16.msra.mxu0 %v4683
    %5523 = vmatpush.bf16.msra.mxu0 %v4677
    %5524 = vmatpush.bf16.msra.mxu0 %v4671
    %5525 = vmatpush.bf16.msra.mxu0 %v4665
    %5526 = vmatpush.bf16.msra.mxu0 %v4659
    %5527 = vmatpush.bf16.msra.mxu0 %v4653
    %5528 = vmatmul.bf16.gmra.mxu0 %v2810
    %v5529 = vpop.f32.mrf.mxu0
    %v5530 = vadd.f32 %v5517, %v5529
    %v5531 = vpop.f32.mrf.mxu0
    %5532 = vdwg.mxu0
    %5533 = vmatpush.bf16.msra.mxu0 %v4743
    %5534 = vmatpush.bf16.msra.mxu0 %v4737
    %5535 = vmatpush.bf16.msra.mxu0 %v4731
    %5536 = vmatpush.bf16.msra.mxu0 %v4725
    %5537 = vmatpush.bf16.msra.mxu0 %v4719
    %5538 = vmatpush.bf16.msra.mxu0 %v4713
    %5539 = vmatpush.bf16.msra.mxu0 %v4707
    %5540 = vmatpush.bf16.msra.mxu0 %v4701
    %5541 = vmatmul.bf16.gmra.mxu0 %v2811
    %v5542 = vpop.f32.mrf.mxu0
    %v5543 = vadd.f32 %v5530, %v5542
    %v5544 = vpop.f32.mrf.mxu0
    %5545 = vdwg.mxu0
    %5546 = vmatpush.bf16.msra.mxu0 %v4408
    %5547 = vmatpush.bf16.msra.mxu0 %v4402
    %5548 = vmatpush.bf16.msra.mxu0 %v4396
    %5549 = vmatpush.bf16.msra.mxu0 %v4390
    %5550 = vmatpush.bf16.msra.mxu0 %v4384
    %5551 = vmatpush.bf16.msra.mxu0 %v4378
    %5552 = vmatpush.bf16.msra.mxu0 %v4372
    %5553 = vmatpush.bf16.msra.mxu0 %v4366
    %5554 = vmatmul.bf16.gmra.mxu0 %v2804
    %v5555 = vpop.f32.mrf.mxu0
    %v5556 = vadd.f32 %v3202, %v5555
    %v5557 = vpop.f32.mrf.mxu0
    %5558 = vdwg.mxu0
    %5559 = vmatpush.bf16.msra.mxu0 %v4456
    %5560 = vmatpush.bf16.msra.mxu0 %v4450
    %5561 = vmatpush.bf16.msra.mxu0 %v4444
    %5562 = vmatpush.bf16.msra.mxu0 %v4438
    %5563 = vmatpush.bf16.msra.mxu0 %v4432
    %5564 = vmatpush.bf16.msra.mxu0 %v4426
    %5565 = vmatpush.bf16.msra.mxu0 %v4420
    %5566 = vmatpush.bf16.msra.mxu0 %v4414
    %5567 = vmatmul.bf16.gmra.mxu0 %v2805
    %v5568 = vpop.f32.mrf.mxu0
    %v5569 = vadd.f32 %v5556, %v5568
    %v5570 = vpop.f32.mrf.mxu0
    %5571 = vdwg.mxu0
    %5572 = vmatpush.bf16.msra.mxu0 %v4504
    %5573 = vmatpush.bf16.msra.mxu0 %v4498
    %5574 = vmatpush.bf16.msra.mxu0 %v4492
    %5575 = vmatpush.bf16.msra.mxu0 %v4486
    %5576 = vmatpush.bf16.msra.mxu0 %v4480
    %5577 = vmatpush.bf16.msra.mxu0 %v4474
    %5578 = vmatpush.bf16.msra.mxu0 %v4468
    %5579 = vmatpush.bf16.msra.mxu0 %v4462
    %5580 = vmatmul.bf16.gmra.mxu0 %v2806
    %v5581 = vpop.f32.mrf.mxu0
    %v5582 = vadd.f32 %v5569, %v5581
    %v5583 = vpop.f32.mrf.mxu0
    %5584 = vdwg.mxu0
    %5585 = vmatpush.bf16.msra.mxu0 %v4552
    %5586 = vmatpush.bf16.msra.mxu0 %v4546
    %5587 = vmatpush.bf16.msra.mxu0 %v4540
    %5588 = vmatpush.bf16.msra.mxu0 %v4534
    %5589 = vmatpush.bf16.msra.mxu0 %v4528
    %5590 = vmatpush.bf16.msra.mxu0 %v4522
    %5591 = vmatpush.bf16.msra.mxu0 %v4516
    %5592 = vmatpush.bf16.msra.mxu0 %v4510
    %5593 = vmatmul.bf16.gmra.mxu0 %v2807
    %v5594 = vpop.f32.mrf.mxu0
    %v5595 = vadd.f32 %v5582, %v5594
    %v5596 = vpop.f32.mrf.mxu0
    %5597 = vdwg.mxu0
    %5598 = vmatpush.bf16.msra.mxu0 %v4600
    %5599 = vmatpush.bf16.msra.mxu0 %v4594
    %5600 = vmatpush.bf16.msra.mxu0 %v4588
    %5601 = vmatpush.bf16.msra.mxu0 %v4582
    %5602 = vmatpush.bf16.msra.mxu0 %v4576
    %5603 = vmatpush.bf16.msra.mxu0 %v4570
    %5604 = vmatpush.bf16.msra.mxu0 %v4564
    %5605 = vmatpush.bf16.msra.mxu0 %v4558
    %5606 = vmatmul.bf16.gmra.mxu0 %v2808
    %v5607 = vpop.f32.mrf.mxu0
    %v5608 = vadd.f32 %v5595, %v5607
    %v5609 = vpop.f32.mrf.mxu0
    %5610 = vdwg.mxu0
    %5611 = vmatpush.bf16.msra.mxu0 %v4648
    %5612 = vmatpush.bf16.msra.mxu0 %v4642
    %5613 = vmatpush.bf16.msra.mxu0 %v4636
    %5614 = vmatpush.bf16.msra.mxu0 %v4630
    %5615 = vmatpush.bf16.msra.mxu0 %v4624
    %5616 = vmatpush.bf16.msra.mxu0 %v4618
    %5617 = vmatpush.bf16.msra.mxu0 %v4612
    %5618 = vmatpush.bf16.msra.mxu0 %v4606
    %5619 = vmatmul.bf16.gmra.mxu0 %v2809
    %v5620 = vpop.f32.mrf.mxu0
    %v5621 = vadd.f32 %v5608, %v5620
    %v5622 = vpop.f32.mrf.mxu0
    %5623 = vdwg.mxu0
    %5624 = vmatpush.bf16.msra.mxu0 %v4696
    %5625 = vmatpush.bf16.msra.mxu0 %v4690
    %5626 = vmatpush.bf16.msra.mxu0 %v4684
    %5627 = vmatpush.bf16.msra.mxu0 %v4678
    %5628 = vmatpush.bf16.msra.mxu0 %v4672
    %5629 = vmatpush.bf16.msra.mxu0 %v4666
    %5630 = vmatpush.bf16.msra.mxu0 %v4660
    %5631 = vmatpush.bf16.msra.mxu0 %v4654
    %5632 = vmatmul.bf16.gmra.mxu0 %v2810
    %v5633 = vpop.f32.mrf.mxu0
    %v5634 = vadd.f32 %v5621, %v5633
    %v5635 = vpop.f32.mrf.mxu0
    %5636 = vdwg.mxu0
    %5637 = vmatpush.bf16.msra.mxu0 %v4744
    %5638 = vmatpush.bf16.msra.mxu0 %v4738
    %5639 = vmatpush.bf16.msra.mxu0 %v4732
    %5640 = vmatpush.bf16.msra.mxu0 %v4726
    %5641 = vmatpush.bf16.msra.mxu0 %v4720
    %5642 = vmatpush.bf16.msra.mxu0 %v4714
    %5643 = vmatpush.bf16.msra.mxu0 %v4708
    %5644 = vmatpush.bf16.msra.mxu0 %v4702
    %5645 = vmatmul.bf16.gmra.mxu0 %v2811
    %v5646 = vpop.f32.mrf.mxu0
    %v5647 = vadd.f32 %v5634, %v5646
    %v5648 = vpop.f32.mrf.mxu0
    %5649 = vdwg.mxu0
    %5650 = vmatpush.bf16.msra.mxu0 %v4409
    %5651 = vmatpush.bf16.msra.mxu0 %v4403
    %5652 = vmatpush.bf16.msra.mxu0 %v4397
    %5653 = vmatpush.bf16.msra.mxu0 %v4391
    %5654 = vmatpush.bf16.msra.mxu0 %v4385
    %5655 = vmatpush.bf16.msra.mxu0 %v4379
    %5656 = vmatpush.bf16.msra.mxu0 %v4373
    %5657 = vmatpush.bf16.msra.mxu0 %v4367
    %5658 = vmatmul.bf16.gmra.mxu0 %v2804
    %v5659 = vpop.f32.mrf.mxu0
    %v5660 = vadd.f32 %v3203, %v5659
    %v5661 = vpop.f32.mrf.mxu0
    %5662 = vdwg.mxu0
    %5663 = vmatpush.bf16.msra.mxu0 %v4457
    %5664 = vmatpush.bf16.msra.mxu0 %v4451
    %5665 = vmatpush.bf16.msra.mxu0 %v4445
    %5666 = vmatpush.bf16.msra.mxu0 %v4439
    %5667 = vmatpush.bf16.msra.mxu0 %v4433
    %5668 = vmatpush.bf16.msra.mxu0 %v4427
    %5669 = vmatpush.bf16.msra.mxu0 %v4421
    %5670 = vmatpush.bf16.msra.mxu0 %v4415
    %5671 = vmatmul.bf16.gmra.mxu0 %v2805
    %v5672 = vpop.f32.mrf.mxu0
    %v5673 = vadd.f32 %v5660, %v5672
    %v5674 = vpop.f32.mrf.mxu0
    %5675 = vdwg.mxu0
    %5676 = vmatpush.bf16.msra.mxu0 %v4505
    %5677 = vmatpush.bf16.msra.mxu0 %v4499
    %5678 = vmatpush.bf16.msra.mxu0 %v4493
    %5679 = vmatpush.bf16.msra.mxu0 %v4487
    %5680 = vmatpush.bf16.msra.mxu0 %v4481
    %5681 = vmatpush.bf16.msra.mxu0 %v4475
    %5682 = vmatpush.bf16.msra.mxu0 %v4469
    %5683 = vmatpush.bf16.msra.mxu0 %v4463
    %5684 = vmatmul.bf16.gmra.mxu0 %v2806
    %v5685 = vpop.f32.mrf.mxu0
    %v5686 = vadd.f32 %v5673, %v5685
    %v5687 = vpop.f32.mrf.mxu0
    %5688 = vdwg.mxu0
    %5689 = vmatpush.bf16.msra.mxu0 %v4553
    %5690 = vmatpush.bf16.msra.mxu0 %v4547
    %5691 = vmatpush.bf16.msra.mxu0 %v4541
    %5692 = vmatpush.bf16.msra.mxu0 %v4535
    %5693 = vmatpush.bf16.msra.mxu0 %v4529
    %5694 = vmatpush.bf16.msra.mxu0 %v4523
    %5695 = vmatpush.bf16.msra.mxu0 %v4517
    %5696 = vmatpush.bf16.msra.mxu0 %v4511
    %5697 = vmatmul.bf16.gmra.mxu0 %v2807
    %v5698 = vpop.f32.mrf.mxu0
    %v5699 = vadd.f32 %v5686, %v5698
    %v5700 = vpop.f32.mrf.mxu0
    %5701 = vdwg.mxu0
    %5702 = vmatpush.bf16.msra.mxu0 %v4601
    %5703 = vmatpush.bf16.msra.mxu0 %v4595
    %5704 = vmatpush.bf16.msra.mxu0 %v4589
    %5705 = vmatpush.bf16.msra.mxu0 %v4583
    %5706 = vmatpush.bf16.msra.mxu0 %v4577
    %5707 = vmatpush.bf16.msra.mxu0 %v4571
    %5708 = vmatpush.bf16.msra.mxu0 %v4565
    %5709 = vmatpush.bf16.msra.mxu0 %v4559
    %5710 = vmatmul.bf16.gmra.mxu0 %v2808
    %v5711 = vpop.f32.mrf.mxu0
    %v5712 = vadd.f32 %v5699, %v5711
    %v5713 = vpop.f32.mrf.mxu0
    %5714 = vdwg.mxu0
    %5715 = vmatpush.bf16.msra.mxu0 %v4649
    %5716 = vmatpush.bf16.msra.mxu0 %v4643
    %5717 = vmatpush.bf16.msra.mxu0 %v4637
    %5718 = vmatpush.bf16.msra.mxu0 %v4631
    %5719 = vmatpush.bf16.msra.mxu0 %v4625
    %5720 = vmatpush.bf16.msra.mxu0 %v4619
    %5721 = vmatpush.bf16.msra.mxu0 %v4613
    %5722 = vmatpush.bf16.msra.mxu0 %v4607
    %5723 = vmatmul.bf16.gmra.mxu0 %v2809
    %v5724 = vpop.f32.mrf.mxu0
    %v5725 = vadd.f32 %v5712, %v5724
    %v5726 = vpop.f32.mrf.mxu0
    %5727 = vdwg.mxu0
    %5728 = vmatpush.bf16.msra.mxu0 %v4697
    %5729 = vmatpush.bf16.msra.mxu0 %v4691
    %5730 = vmatpush.bf16.msra.mxu0 %v4685
    %5731 = vmatpush.bf16.msra.mxu0 %v4679
    %5732 = vmatpush.bf16.msra.mxu0 %v4673
    %5733 = vmatpush.bf16.msra.mxu0 %v4667
    %5734 = vmatpush.bf16.msra.mxu0 %v4661
    %5735 = vmatpush.bf16.msra.mxu0 %v4655
    %5736 = vmatmul.bf16.gmra.mxu0 %v2810
    %v5737 = vpop.f32.mrf.mxu0
    %v5738 = vadd.f32 %v5725, %v5737
    %v5739 = vpop.f32.mrf.mxu0
    %5740 = vdwg.mxu0
    %5741 = vmatpush.bf16.msra.mxu0 %v4745
    %5742 = vmatpush.bf16.msra.mxu0 %v4739
    %5743 = vmatpush.bf16.msra.mxu0 %v4733
    %5744 = vmatpush.bf16.msra.mxu0 %v4727
    %5745 = vmatpush.bf16.msra.mxu0 %v4721
    %5746 = vmatpush.bf16.msra.mxu0 %v4715
    %5747 = vmatpush.bf16.msra.mxu0 %v4709
    %5748 = vmatpush.bf16.msra.mxu0 %v4703
    %5749 = vmatmul.bf16.gmra.mxu0 %v2811
    %v5750 = vpop.f32.mrf.mxu0
    %v5751 = vadd.f32 %v5738, %v5750
    %v5752 = vpop.f32.mrf.mxu0
    %5753 = vdwg.mxu0
    %v5754 = vtanh.pop %v5231
    %v5755 = vtanh.pop %v5335
    %v5756 = vtanh.pop %v5439
    %v5757 = vtanh.pop %v5543
    %v5758 = vtanh.pop %v5647
    %v5759 = vtanh.pop %v5751
    %v5760 = vld [vmem:[%s11] sm:$0xff]
    %v5761 = vld [vmem:[%s11 + $0x8] sm:$0xff]
    %v5762 = vld [vmem:[%s11 + $0x10] sm:$0xff]
    %v5763 = vld [vmem:[%s11 + $0x18] sm:$0xff]
    %v5764 = vld [vmem:[%s11 + $0x20] sm:$0xff]
    %v5765 = vld [vmem:[%s11 + $0x28] sm:$0xff]
    %v5766 = vld [vmem:[%s11 + $0x30] sm:$0xff]
    %v5767 = vld [vmem:[%s11 + $0x38] sm:$0xff]
    %v5768 = vld [vmem:[%s11 + $0x40] sm:$0xff]
    %v5769 = vld [vmem:[%s11 + $0x48] sm:$0xff]
    %v5770 = vld [vmem:[%s11 + $0x50] sm:$0xff]
    %v5771 = vld [vmem:[%s11 + $0x58] sm:$0xff]
    %v5772 = vld [vmem:[%s11 + $0x60] sm:$0xff]
    %v5773 = vld [vmem:[%s11 + $0x68] sm:$0xff]
    %v5774 = vld [vmem:[%s11 + $0x70] sm:$0xff]
    %v5775 = vld [vmem:[%s11 + $0x78] sm:$0xff]
    %v5776 = vld [vmem:[%s11 + $0x80] sm:$0xff]
    %v5777 = vld [vmem:[%s11 + $0x88] sm:$0xff]
    %v5778 = vld [vmem:[%s11 + $0x90] sm:$0xff]
    %v5779 = vld [vmem:[%s11 + $0x98] sm:$0xff]
    %v5780 = vld [vmem:[%s11 + $0xa0] sm:$0xff]
    %v5781 = vld [vmem:[%s11 + $0xa8] sm:$0xff]
    %v5782 = vld [vmem:[%s11 + $0xb0] sm:$0xff]
    %v5783 = vld [vmem:[%s11 + $0xb8] sm:$0xff]
    %v5784 = vld [vmem:[%s11 + $0xc0] sm:$0xff]
    %v5785 = vld [vmem:[%s11 + $0xc8] sm:$0xff]
    %v5786 = vld [vmem:[%s11 + $0xd0] sm:$0xff]
    %v5787 = vld [vmem:[%s11 + $0xd8] sm:$0xff]
    %v5788 = vld [vmem:[%s11 + $0xe0] sm:$0xff]
    %v5789 = vld [vmem:[%s11 + $0xe8] sm:$0xff]
    %v5790 = vld [vmem:[%s11 + $0xf0] sm:$0xff]
    %v5791 = vld [vmem:[%s11 + $0xf8] sm:$0xff]
    %v5792 = vld [vmem:[%s11 + $0x100] sm:$0xff]
    %v5793 = vld [vmem:[%s11 + $0x108] sm:$0xff]
    %v5794 = vld [vmem:[%s11 + $0x110] sm:$0xff]
    %v5795 = vld [vmem:[%s11 + $0x118] sm:$0xff]
    %v5796 = vld [vmem:[%s11 + $0x120] sm:$0xff]
    %v5797 = vld [vmem:[%s11 + $0x128] sm:$0xff]
    %v5798 = vld [vmem:[%s11 + $0x130] sm:$0xff]
    %v5799 = vld [vmem:[%s11 + $0x138] sm:$0xff]
    %v5800 = vld [vmem:[%s11 + $0x140] sm:$0xff]
    %v5801 = vld [vmem:[%s11 + $0x148] sm:$0xff]
    %v5802 = vld [vmem:[%s11 + $0x150] sm:$0xff]
    %v5803 = vld [vmem:[%s11 + $0x158] sm:$0xff]
    %v5804 = vld [vmem:[%s11 + $0x160] sm:$0xff]
    %v5805 = vld [vmem:[%s11 + $0x168] sm:$0xff]
    %v5806 = vld [vmem:[%s11 + $0x170] sm:$0xff]
    %v5807 = vld [vmem:[%s11 + $0x178] sm:$0xff]
    %v5808 = vld [vmem:[%s11 + $0x180] sm:$0xff]
    %v5809 = vld [vmem:[%s11 + $0x188] sm:$0xff]
    %v5810 = vld [vmem:[%s11 + $0x190] sm:$0xff]
    %v5811 = vld [vmem:[%s11 + $0x198] sm:$0xff]
    %v5812 = vld [vmem:[%s11 + $0x1a0] sm:$0xff]
    %v5813 = vld [vmem:[%s11 + $0x1a8] sm:$0xff]
    %v5814 = vld [vmem:[%s11 + $0x1b0] sm:$0xff]
    %v5815 = vld [vmem:[%s11 + $0x1b8] sm:$0xff]
    %v5816 = vld [vmem:[%s11 + $0x1c0] sm:$0xff]
    %v5817 = vld [vmem:[%s11 + $0x1c8] sm:$0xff]
    %v5818 = vld [vmem:[%s11 + $0x1d0] sm:$0xff]
    %v5819 = vld [vmem:[%s11 + $0x1d8] sm:$0xff]
    %v5820 = vld [vmem:[%s11 + $0x1e0] sm:$0xff]
    %v5821 = vld [vmem:[%s11 + $0x1e8] sm:$0xff]
    %v5822 = vld [vmem:[%s11 + $0x1f0] sm:$0xff]
    %v5823 = vld [vmem:[%s11 + $0x1f8] sm:$0xff]
    %v5824 = vld [vmem:[%s11 + $0x200] sm:$0xff]
    %v5825 = vld [vmem:[%s11 + $0x208] sm:$0xff]
    %v5826 = vld [vmem:[%s11 + $0x210] sm:$0xff]
    %v5827 = vld [vmem:[%s11 + $0x218] sm:$0xff]
    %v5828 = vld [vmem:[%s11 + $0x220] sm:$0xff]
    %v5829 = vld [vmem:[%s11 + $0x228] sm:$0xff]
    %v5830 = vld [vmem:[%s11 + $0x230] sm:$0xff]
    %v5831 = vld [vmem:[%s11 + $0x238] sm:$0xff]
    %v5832 = vld [vmem:[%s11 + $0x240] sm:$0xff]
    %v5833 = vld [vmem:[%s11 + $0x248] sm:$0xff]
    %v5834 = vld [vmem:[%s11 + $0x250] sm:$0xff]
    %v5835 = vld [vmem:[%s11 + $0x258] sm:$0xff]
    %v5836 = vld [vmem:[%s11 + $0x260] sm:$0xff]
    %v5837 = vld [vmem:[%s11 + $0x268] sm:$0xff]
    %v5838 = vld [vmem:[%s11 + $0x270] sm:$0xff]
    %v5839 = vld [vmem:[%s11 + $0x278] sm:$0xff]
    %v5840 = vld [vmem:[%s11 + $0x280] sm:$0xff]
    %v5841 = vld [vmem:[%s11 + $0x288] sm:$0xff]
    %v5842 = vld [vmem:[%s11 + $0x290] sm:$0xff]
    %v5843 = vld [vmem:[%s11 + $0x298] sm:$0xff]
    %v5844 = vld [vmem:[%s11 + $0x2a0] sm:$0xff]
    %v5845 = vld [vmem:[%s11 + $0x2a8] sm:$0xff]
    %v5846 = vld [vmem:[%s11 + $0x2b0] sm:$0xff]
    %v5847 = vld [vmem:[%s11 + $0x2b8] sm:$0xff]
    %v5848 = vld [vmem:[%s11 + $0x2c0] sm:$0xff]
    %v5849 = vld [vmem:[%s11 + $0x2c8] sm:$0xff]
    %v5850 = vld [vmem:[%s11 + $0x2d0] sm:$0xff]
    %v5851 = vld [vmem:[%s11 + $0x2d8] sm:$0xff]
    %v5852 = vld [vmem:[%s11 + $0x2e0] sm:$0xff]
    %v5853 = vld [vmem:[%s11 + $0x2e8] sm:$0xff]
    %v5854 = vld [vmem:[%s11 + $0x2f0] sm:$0xff]
    %v5855 = vld [vmem:[%s11 + $0x2f8] sm:$0xff]
    %v5856 = vld [vmem:[%s11 + $0x300] sm:$0xff]
    %v5857 = vld [vmem:[%s11 + $0x308] sm:$0xff]
    %v5858 = vld [vmem:[%s11 + $0x310] sm:$0xff]
    %v5859 = vld [vmem:[%s11 + $0x318] sm:$0xff]
    %v5860 = vld [vmem:[%s11 + $0x320] sm:$0xff]
    %v5861 = vld [vmem:[%s11 + $0x328] sm:$0xff]
    %v5862 = vld [vmem:[%s11 + $0x330] sm:$0xff]
    %v5863 = vld [vmem:[%s11 + $0x338] sm:$0xff]
    %v5864 = vld [vmem:[%s11 + $0x340] sm:$0xff]
    %v5865 = vld [vmem:[%s11 + $0x348] sm:$0xff]
    %v5866 = vld [vmem:[%s11 + $0x350] sm:$0xff]
    %v5867 = vld [vmem:[%s11 + $0x358] sm:$0xff]
    %v5868 = vld [vmem:[%s11 + $0x360] sm:$0xff]
    %v5869 = vld [vmem:[%s11 + $0x368] sm:$0xff]
    %v5870 = vld [vmem:[%s11 + $0x370] sm:$0xff]
    %v5871 = vld [vmem:[%s11 + $0x378] sm:$0xff]
    %v5872 = vld [vmem:[%s11 + $0x380] sm:$0xff]
    %v5873 = vld [vmem:[%s11 + $0x388] sm:$0xff]
    %v5874 = vld [vmem:[%s11 + $0x390] sm:$0xff]
    %v5875 = vld [vmem:[%s11 + $0x398] sm:$0xff]
    %v5876 = vld [vmem:[%s11 + $0x3a0] sm:$0xff]
    %v5877 = vld [vmem:[%s11 + $0x3a8] sm:$0xff]
    %v5878 = vld [vmem:[%s11 + $0x3b0] sm:$0xff]
    %v5879 = vld [vmem:[%s11 + $0x3b8] sm:$0xff]
    %v5880 = vld [vmem:[%s11 + $0x3c0] sm:$0xff]
    %v5881 = vld [vmem:[%s11 + $0x3c8] sm:$0xff]
    %v5882 = vld [vmem:[%s11 + $0x3d0] sm:$0xff]
    %v5883 = vld [vmem:[%s11 + $0x3d8] sm:$0xff]
    %v5884 = vld [vmem:[%s11 + $0x3e0] sm:$0xff]
    %v5885 = vld [vmem:[%s11 + $0x3e8] sm:$0xff]
    %v5886 = vld [vmem:[%s11 + $0x3f0] sm:$0xff]
    %v5887 = vld [vmem:[%s11 + $0x3f8] sm:$0xff]
    %v5888 = vld [vmem:[%s11 + $0x400] sm:$0xff]
    %v5889 = vld [vmem:[%s11 + $0x408] sm:$0xff]
    %v5890 = vld [vmem:[%s11 + $0x410] sm:$0xff]
    %v5891 = vld [vmem:[%s11 + $0x418] sm:$0xff]
    %v5892 = vld [vmem:[%s11 + $0x420] sm:$0xff]
    %v5893 = vld [vmem:[%s11 + $0x428] sm:$0xff]
    %v5894 = vld [vmem:[%s11 + $0x430] sm:$0xff]
    %v5895 = vld [vmem:[%s11 + $0x438] sm:$0xff]
    %v5896 = vld [vmem:[%s11 + $0x440] sm:$0xff]
    %v5897 = vld [vmem:[%s11 + $0x448] sm:$0xff]
    %v5898 = vld [vmem:[%s11 + $0x450] sm:$0xff]
    %v5899 = vld [vmem:[%s11 + $0x458] sm:$0xff]
    %v5900 = vld [vmem:[%s11 + $0x460] sm:$0xff]
    %v5901 = vld [vmem:[%s11 + $0x468] sm:$0xff]
    %v5902 = vld [vmem:[%s11 + $0x470] sm:$0xff]
    %v5903 = vld [vmem:[%s11 + $0x478] sm:$0xff]
    %v5904 = vld [vmem:[%s11 + $0x480] sm:$0xff]
    %v5905 = vld [vmem:[%s11 + $0x488] sm:$0xff]
    %v5906 = vld [vmem:[%s11 + $0x490] sm:$0xff]
    %v5907 = vld [vmem:[%s11 + $0x498] sm:$0xff]
    %v5908 = vld [vmem:[%s11 + $0x4a0] sm:$0xff]
    %v5909 = vld [vmem:[%s11 + $0x4a8] sm:$0xff]
    %v5910 = vld [vmem:[%s11 + $0x4b0] sm:$0xff]
    %v5911 = vld [vmem:[%s11 + $0x4b8] sm:$0xff]
    %v5912 = vld [vmem:[%s11 + $0x4c0] sm:$0xff]
    %v5913 = vld [vmem:[%s11 + $0x4c8] sm:$0xff]
    %v5914 = vld [vmem:[%s11 + $0x4d0] sm:$0xff]
    %v5915 = vld [vmem:[%s11 + $0x4d8] sm:$0xff]
    %v5916 = vld [vmem:[%s11 + $0x4e0] sm:$0xff]
    %v5917 = vld [vmem:[%s11 + $0x4e8] sm:$0xff]
    %v5918 = vld [vmem:[%s11 + $0x4f0] sm:$0xff]
    %v5919 = vld [vmem:[%s11 + $0x4f8] sm:$0xff]
    %v5920 = vld [vmem:[%s11 + $0x500] sm:$0xff]
    %v5921 = vld [vmem:[%s11 + $0x508] sm:$0xff]
    %v5922 = vld [vmem:[%s11 + $0x510] sm:$0xff]
    %v5923 = vld [vmem:[%s11 + $0x518] sm:$0xff]
    %v5924 = vld [vmem:[%s11 + $0x520] sm:$0xff]
    %v5925 = vld [vmem:[%s11 + $0x528] sm:$0xff]
    %v5926 = vld [vmem:[%s11 + $0x530] sm:$0xff]
    %v5927 = vld [vmem:[%s11 + $0x538] sm:$0xff]
    %v5928 = vld [vmem:[%s11 + $0x540] sm:$0xff]
    %v5929 = vld [vmem:[%s11 + $0x548] sm:$0xff]
    %v5930 = vld [vmem:[%s11 + $0x550] sm:$0xff]
    %v5931 = vld [vmem:[%s11 + $0x558] sm:$0xff]
    %v5932 = vld [vmem:[%s11 + $0x560] sm:$0xff]
    %v5933 = vld [vmem:[%s11 + $0x568] sm:$0xff]
    %v5934 = vld [vmem:[%s11 + $0x570] sm:$0xff]
    %v5935 = vld [vmem:[%s11 + $0x578] sm:$0xff]
    %v5936 = vld [vmem:[%s11 + $0x580] sm:$0xff]
    %v5937 = vld [vmem:[%s11 + $0x588] sm:$0xff]
    %v5938 = vld [vmem:[%s11 + $0x590] sm:$0xff]
    %v5939 = vld [vmem:[%s11 + $0x598] sm:$0xff]
    %v5940 = vld [vmem:[%s11 + $0x5a0] sm:$0xff]
    %v5941 = vld [vmem:[%s11 + $0x5a8] sm:$0xff]
    %v5942 = vld [vmem:[%s11 + $0x5b0] sm:$0xff]
    %v5943 = vld [vmem:[%s11 + $0x5b8] sm:$0xff]
    %v5944 = vld [vmem:[%s11 + $0x5c0] sm:$0xff]
    %v5945 = vld [vmem:[%s11 + $0x5c8] sm:$0xff]
    %v5946 = vld [vmem:[%s11 + $0x5d0] sm:$0xff]
    %v5947 = vld [vmem:[%s11 + $0x5d8] sm:$0xff]
    %v5948 = vld [vmem:[%s11 + $0x5e0] sm:$0xff]
    %v5949 = vld [vmem:[%s11 + $0x5e8] sm:$0xff]
    %v5950 = vld [vmem:[%s11 + $0x5f0] sm:$0xff]
    %v5951 = vld [vmem:[%s11 + $0x5f8] sm:$0xff]
    %5952 = vmatpush.msra.mxu0 %v5790
    %5953 = vmatpush.msra.mxu0 %v5788
    %5954 = vmatpush.msra.mxu0 %v5786
    %5955 = vmatpush.msra.mxu0 %v5784
    %5956 = vmatpush.msra.mxu0 %v5782
    %5957 = vmatpush.msra.mxu0 %v5780
    %5958 = vmatpush.msra.mxu0 %v5778
    %5959 = vmatpush.msra.mxu0 %v5776
    %5960 = vmatpush.msra.mxu0 %v5774
    %5961 = vmatpush.msra.mxu0 %v5772
    %5962 = vmatpush.msra.mxu0 %v5770
    %5963 = vmatpush.msra.mxu0 %v5768
    %5964 = vmatpush.msra.mxu0 %v5766
    %5965 = vmatpush.msra.mxu0 %v5764
    %5966 = vmatpush.msra.mxu0 %v5762
    %5967 = vmatpush.msra.mxu0 %v5760
    %5968 = vmatmul.f32.gmra.mxu0 %v5754
    %v5969 = vpop.f32.mrf.mxu0
    %v5970 = vadd.f32 0.0, %v5969
    %5971 = vdwg.mxu0
    %5972 = vmatpush.msra.mxu0 %v5822
    %5973 = vmatpush.msra.mxu0 %v5820
    %5974 = vmatpush.msra.mxu0 %v5818
    %5975 = vmatpush.msra.mxu0 %v5816
    %5976 = vmatpush.msra.mxu0 %v5814
    %5977 = vmatpush.msra.mxu0 %v5812
    %5978 = vmatpush.msra.mxu0 %v5810
    %5979 = vmatpush.msra.mxu0 %v5808
    %5980 = vmatpush.msra.mxu0 %v5806
    %5981 = vmatpush.msra.mxu0 %v5804
    %5982 = vmatpush.msra.mxu0 %v5802
    %5983 = vmatpush.msra.mxu0 %v5800
    %5984 = vmatpush.msra.mxu0 %v5798
    %5985 = vmatpush.msra.mxu0 %v5796
    %5986 = vmatpush.msra.mxu0 %v5794
    %5987 = vmatpush.msra.mxu0 %v5792
    %5988 = vmatmul.f32.gmra.mxu0 %v5755
    %v5989 = vpop.f32.mrf.mxu0
    %v5990 = vadd.f32 %v5970, %v5989
    %5991 = vdwg.mxu0
    %5992 = vmatpush.msra.mxu0 %v5854
    %5993 = vmatpush.msra.mxu0 %v5852
    %5994 = vmatpush.msra.mxu0 %v5850
    %5995 = vmatpush.msra.mxu0 %v5848
    %5996 = vmatpush.msra.mxu0 %v5846
    %5997 = vmatpush.msra.mxu0 %v5844
    %5998 = vmatpush.msra.mxu0 %v5842
    %5999 = vmatpush.msra.mxu0 %v5840
    %6000 = vmatpush.msra.mxu0 %v5838
    %6001 = vmatpush.msra.mxu0 %v5836
    %6002 = vmatpush.msra.mxu0 %v5834
    %6003 = vmatpush.msra.mxu0 %v5832
    %6004 = vmatpush.msra.mxu0 %v5830
    %6005 = vmatpush.msra.mxu0 %v5828
    %6006 = vmatpush.msra.mxu0 %v5826
    %6007 = vmatpush.msra.mxu0 %v5824
    %6008 = vmatmul.f32.gmra.mxu0 %v5756
    %v6009 = vpop.f32.mrf.mxu0
    %v6010 = vadd.f32 %v5990, %v6009
    %6011 = vdwg.mxu0
    %6012 = vmatpush.msra.mxu0 %v5886
    %6013 = vmatpush.msra.mxu0 %v5884
    %6014 = vmatpush.msra.mxu0 %v5882
    %6015 = vmatpush.msra.mxu0 %v5880
    %6016 = vmatpush.msra.mxu0 %v5878
    %6017 = vmatpush.msra.mxu0 %v5876
    %6018 = vmatpush.msra.mxu0 %v5874
    %6019 = vmatpush.msra.mxu0 %v5872
    %6020 = vmatpush.msra.mxu0 %v5870
    %6021 = vmatpush.msra.mxu0 %v5868
    %6022 = vmatpush.msra.mxu0 %v5866
    %6023 = vmatpush.msra.mxu0 %v5864
    %6024 = vmatpush.msra.mxu0 %v5862
    %6025 = vmatpush.msra.mxu0 %v5860
    %6026 = vmatpush.msra.mxu0 %v5858
    %6027 = vmatpush.msra.mxu0 %v5856
    %6028 = vmatmul.f32.gmra.mxu0 %v5757
    %v6029 = vpop.f32.mrf.mxu0
    %v6030 = vadd.f32 %v6010, %v6029
    %6031 = vdwg.mxu0
    %6032 = vmatpush.msra.mxu0 %v5918
    %6033 = vmatpush.msra.mxu0 %v5916
    %6034 = vmatpush.msra.mxu0 %v5914
    %6035 = vmatpush.msra.mxu0 %v5912
    %6036 = vmatpush.msra.mxu0 %v5910
    %6037 = vmatpush.msra.mxu0 %v5908
    %6038 = vmatpush.msra.mxu0 %v5906
    %6039 = vmatpush.msra.mxu0 %v5904
    %6040 = vmatpush.msra.mxu0 %v5902
    %6041 = vmatpush.msra.mxu0 %v5900
    %6042 = vmatpush.msra.mxu0 %v5898
    %6043 = vmatpush.msra.mxu0 %v5896
    %6044 = vmatpush.msra.mxu0 %v5894
    %6045 = vmatpush.msra.mxu0 %v5892
    %6046 = vmatpush.msra.mxu0 %v5890
    %6047 = vmatpush.msra.mxu0 %v5888
    %6048 = vmatmul.f32.gmra.mxu0 %v5758
    %v6049 = vpop.f32.mrf.mxu0
    %v6050 = vadd.f32 %v6030, %v6049
    %6051 = vdwg.mxu0
    %6052 = vmatpush.msra.mxu0 %v5950
    %6053 = vmatpush.msra.mxu0 %v5948
    %6054 = vmatpush.msra.mxu0 %v5946
    %6055 = vmatpush.msra.mxu0 %v5944
    %6056 = vmatpush.msra.mxu0 %v5942
    %6057 = vmatpush.msra.mxu0 %v5940
    %6058 = vmatpush.msra.mxu0 %v5938
    %6059 = vmatpush.msra.mxu0 %v5936
    %6060 = vmatpush.msra.mxu0 %v5934
    %6061 = vmatpush.msra.mxu0 %v5932
    %6062 = vmatpush.msra.mxu0 %v5930
    %6063 = vmatpush.msra.mxu0 %v5928
    %6064 = vmatpush.msra.mxu0 %v5926
    %6065 = vmatpush.msra.mxu0 %v5924
    %6066 = vmatpush.msra.mxu0 %v5922
    %6067 = vmatpush.msra.mxu0 %v5920
    %6068 = vmatmul.f32.gmra.mxu0 %v5759
    %v6069 = vpop.f32.mrf.mxu0
    %v6070 = vadd.f32 %v6050, %v6069
    %6071 = vdwg.mxu0
    %6072 = vmatpush.msra.mxu0 %v5791
    %6073 = vmatpush.msra.mxu0 %v5789
    %6074 = vmatpush.msra.mxu0 %v5787
    %6075 = vmatpush.msra.mxu0 %v5785
    %6076 = vmatpush.msra.mxu0 %v5783
    %6077 = vmatpush.msra.mxu0 %v5781
    %6078 = vmatpush.msra.mxu0 %v5779
    %6079 = vmatpush.msra.mxu0 %v5777
    %6080 = vmatpush.msra.mxu0 %v5775
    %6081 = vmatpush.msra.mxu0 %v5773
    %6082 = vmatpush.msra.mxu0 %v5771
    %6083 = vmatpush.msra.mxu0 %v5769
    %6084 = vmatpush.msra.mxu0 %v5767
    %6085 = vmatpush.msra.mxu0 %v5765
    %6086 = vmatpush.msra.mxu0 %v5763
    %6087 = vmatpush.msra.mxu0 %v5761
    %6088 = vmatmul.f32.gmra.mxu0 %v5754
    %v6089 = vpop.f32.mrf.mxu0
    %v6090 = vadd.f32 0.0, %v6089
    %6091 = vdwg.mxu0
    %6092 = vmatpush.msra.mxu0 %v5823
    %6093 = vmatpush.msra.mxu0 %v5821
    %6094 = vmatpush.msra.mxu0 %v5819
    %6095 = vmatpush.msra.mxu0 %v5817
    %6096 = vmatpush.msra.mxu0 %v5815
    %6097 = vmatpush.msra.mxu0 %v5813
    %6098 = vmatpush.msra.mxu0 %v5811
    %6099 = vmatpush.msra.mxu0 %v5809
    %6100 = vmatpush.msra.mxu0 %v5807
    %6101 = vmatpush.msra.mxu0 %v5805
    %6102 = vmatpush.msra.mxu0 %v5803
    %6103 = vmatpush.msra.mxu0 %v5801
    %6104 = vmatpush.msra.mxu0 %v5799
    %6105 = vmatpush.msra.mxu0 %v5797
    %6106 = vmatpush.msra.mxu0 %v5795
    %6107 = vmatpush.msra.mxu0 %v5793
    %6108 = vmatmul.f32.gmra.mxu0 %v5755
    %v6109 = vpop.f32.mrf.mxu0
    %v6110 = vadd.f32 %v6090, %v6109
    %6111 = vdwg.mxu0
    %6112 = vmatpush.msra.mxu0 %v5855
    %6113 = vmatpush.msra.mxu0 %v5853
    %6114 = vmatpush.msra.mxu0 %v5851
    %6115 = vmatpush.msra.mxu0 %v5849
    %6116 = vmatpush.msra.mxu0 %v5847
    %6117 = vmatpush.msra.mxu0 %v5845
    %6118 = vmatpush.msra.mxu0 %v5843
    %6119 = vmatpush.msra.mxu0 %v5841
    %6120 = vmatpush.msra.mxu0 %v5839
    %6121 = vmatpush.msra.mxu0 %v5837
    %6122 = vmatpush.msra.mxu0 %v5835
    %6123 = vmatpush.msra.mxu0 %v5833
    %6124 = vmatpush.msra.mxu0 %v5831
    %6125 = vmatpush.msra.mxu0 %v5829
    %6126 = vmatpush.msra.mxu0 %v5827
    %6127 = vmatpush.msra.mxu0 %v5825
    %6128 = vmatmul.f32.gmra.mxu0 %v5756
    %v6129 = vpop.f32.mrf.mxu0
    %v6130 = vadd.f32 %v6110, %v6129
    %6131 = vdwg.mxu0
    %6132 = vmatpush.msra.mxu0 %v5887
    %6133 = vmatpush.msra.mxu0 %v5885
    %6134 = vmatpush.msra.mxu0 %v5883
    %6135 = vmatpush.msra.mxu0 %v5881
    %6136 = vmatpush.msra.mxu0 %v5879
    %6137 = vmatpush.msra.mxu0 %v5877
    %6138 = vmatpush.msra.mxu0 %v5875
    %6139 = vmatpush.msra.mxu0 %v5873
    %6140 = vmatpush.msra.mxu0 %v5871
    %6141 = vmatpush.msra.mxu0 %v5869
    %6142 = vmatpush.msra.mxu0 %v5867
    %6143 = vmatpush.msra.mxu0 %v5865
    %6144 = vmatpush.msra.mxu0 %v5863
    %6145 = vmatpush.msra.mxu0 %v5861
    %6146 = vmatpush.msra.mxu0 %v5859
    %6147 = vmatpush.msra.mxu0 %v5857
    %6148 = vmatmul.f32.gmra.mxu0 %v5757
    %v6149 = vpop.f32.mrf.mxu0
    %v6150 = vadd.f32 %v6130, %v6149
    %6151 = vdwg.mxu0
    %6152 = vmatpush.msra.mxu0 %v5919
    %6153 = vmatpush.msra.mxu0 %v5917
    %6154 = vmatpush.msra.mxu0 %v5915
    %6155 = vmatpush.msra.mxu0 %v5913
    %6156 = vmatpush.msra.mxu0 %v5911
    %6157 = vmatpush.msra.mxu0 %v5909
    %6158 = vmatpush.msra.mxu0 %v5907
    %6159 = vmatpush.msra.mxu0 %v5905
    %6160 = vmatpush.msra.mxu0 %v5903
    %6161 = vmatpush.msra.mxu0 %v5901
    %6162 = vmatpush.msra.mxu0 %v5899
    %6163 = vmatpush.msra.mxu0 %v5897
    %6164 = vmatpush.msra.mxu0 %v5895
    %6165 = vmatpush.msra.mxu0 %v5893
    %6166 = vmatpush.msra.mxu0 %v5891
    %6167 = vmatpush.msra.mxu0 %v5889
    %6168 = vmatmul.f32.gmra.mxu0 %v5758
    %v6169 = vpop.f32.mrf.mxu0
    %v6170 = vadd.f32 %v6150, %v6169
    %6171 = vdwg.mxu0
    %6172 = vmatpush.msra.mxu0 %v5951
    %6173 = vmatpush.msra.mxu0 %v5949
    %6174 = vmatpush.msra.mxu0 %v5947
    %6175 = vmatpush.msra.mxu0 %v5945
    %6176 = vmatpush.msra.mxu0 %v5943
    %6177 = vmatpush.msra.mxu0 %v5941
    %6178 = vmatpush.msra.mxu0 %v5939
    %6179 = vmatpush.msra.mxu0 %v5937
    %6180 = vmatpush.msra.mxu0 %v5935
    %6181 = vmatpush.msra.mxu0 %v5933
    %6182 = vmatpush.msra.mxu0 %v5931
    %6183 = vmatpush.msra.mxu0 %v5929
    %6184 = vmatpush.msra.mxu0 %v5927
    %6185 = vmatpush.msra.mxu0 %v5925
    %6186 = vmatpush.msra.mxu0 %v5923
    %6187 = vmatpush.msra.mxu0 %v5921
    %6188 = vmatmul.f32.gmra.mxu0 %v5759
    %v6189 = vpop.f32.mrf.mxu0
    %v6190 = vadd.f32 %v6170, %v6189
    %6191 = vdwg.mxu0
    %v6194 = vrot.slane %v6190, 6
    %v6195 = vsel %vm1543, %v6070, %v6194
    %vm6197 = vcmask 519170
    %vm6198 = vmor %vm6197, %vm1543
    %6199 = vst.msk [vmem:[#allocation21] sm:$0xf] %vm6198, %v6195
    // Predicated region
    $region94: #{tpu_custom_call.1} parent=1 // pred_check
      _
    $region95: #{tpu_custom_call.1} parent=1 // pred_check_branch
      %6201 = sbr.rel (0) target = $region97
    $region96: #{tpu_custom_call.1} parent=1 // pred_region
      %6203 = vsyncadd [#allocation5], 0
      %s6205 = sshll.u32 [#allocation21], 4
      %s6206 = int_to_ptr.vmem [resolvable:$true] %s6205
      %s6207 = sshll.u32 %s12, 4
      %s6208 = int_to_ptr.hbm [resolvable:$true] %s6207
      %6210 = dma.vmem_to_hbm [thread:$0]  %s6206, 64, %s6208, [#allocation5]
    $region97: #{tpu_custom_call.1} parent=1 // pred_fallthru
      _
    // Predicated region
    $region98: #{tpu_custom_call.1} parent=1 // pred_check
      _
    $region99: #{tpu_custom_call.1} parent=1 // pred_check_branch
      %6212 = sbr.rel (0) target = $region101
    $region100: #{tpu_custom_call.1} parent=1 // pred_region
      %6214 = dma.done [#allocation5], 64
    $region101: #{tpu_custom_call.1} parent=1 // pred_fallthru
      _
    %6215 = vsyncpa [#allocation4], 1
    %6216 = vsyncpa [#allocation7], 1
    %6217 = vsyncpa [#allocation10], 1
    %6218 = vsyncpa [#allocation13], 1
    %6219 = vsyncpa [#allocation16], 1
    %6220 = vsyncpa [#allocation19], 1
    %6221 = vsyncpa [#allocation5], 1

</llo_original>
